<compile_context>
chip_gen: v5e
topology: v5e:2x2
jax: 0.10.0
libtpu: 0.0.40
codegen_flags: <defaults>
</compile_context>

<pallas_src>
import functools

import jax
import jax.numpy as jnp
from jax.experimental import pallas as pl
from jax.experimental.pallas import tpu as pltpu


# ----------------------------- Pallas kernel --------------------------------
def _make_fused_kernel(*, H, W, Cin, Cout, K, s, pad_d, pad_same, qlo):
    """Fused shortcut-conv + same-conv + downscale-conv + residual kernel."""
    OH, OW = H // s, W // s
    M = OH * OW
    Pmax = max(pad_d, pad_same)
    Dd = Pmax - pad_d      # frame offset for the stride-s convs on x
    Dm = Pmax - pad_same   # frame offset for the stride-1 'same' conv

    def kernel(x_ref, w_cv_ref, b_cv_ref, w_dn_ref, b_dn_ref,
               w_sc_ref, b_sc_ref, o_ref, xr_ref, hph_ref):
        # x_ref block: (1, s*s, HS, WS, Cin) = space-to-depth of the Pmax-padded
        # NHWC input for one batch element (phase index p = py*s + px).

        # relu(x) computed once; relu(0) == 0 so applying it on the zero-padded
        # tile is exact.  All window reads below come from VMEM.
        xr_ref[...] = jnp.maximum(x_ref[0], 0.0)

        def x_window(row0, col0):
            """(M, Cin) window of raw x whose padded-frame rows are {row0 + s*i}
            and cols {col0 + s*j}; contiguous in the phase layout."""
            qy, ry = divmod(row0, s)
            qx, rx = divmod(col0, s)
            return x_ref[0, ry * s + rx,
                         qy:qy + OH, qx:qx + OW, :].reshape(M, Cin)

        def xr_window(row0, col0):
            """Same window but on the precomputed relu(x) scratch."""
            qy, ry = divmod(row0, s)
            qx, rx = divmod(col0, s)
            return xr_ref[ry * s + rx,
                          qy:qy + OH, qx:qx + OW, :].reshape(M, Cin)

        # ---- shortcut: Conv2d(Cin->Cout, stride=s, pad=pad_d) on raw x ------
        acc_sc = jnp.broadcast_to(b_sc_ref[...], (M, Cout)).astype(jnp.float32)
        for ky in range(K):
            for kx in range(K):
                acc_sc += jnp.dot(x_window(ky + Dd, kx + Dd),
                                  w_sc_ref[ky, kx],
                                  preferred_element_type=jnp.float32)

        # ---- middle: Conv2d(Cin->Cin, 'same') on relu(x), then relu ---------
        # Computed directly per output phase so the downscale conv below reads
        # contiguous windows; result lives only in VMEM scratch (never HBM).
        hph_ref[...] = jnp.zeros_like(hph_ref)      # zero halo == conv padding
        for py in range(s):
            for px in range(s):
                acc_h = jnp.broadcast_to(b_cv_ref[...],
                                         (M, Cin)).astype(jnp.float32)
                for ky in range(K):
                    for kx in range(K):
                        acc_h += jnp.dot(
                            xr_window(py + ky + Dm, px + kx + Dm),
                            w_cv_ref[ky, kx],
                            preferred_element_type=jnp.float32)
                hp = jnp.maximum(acc_h, 0.0)
                hph_ref[py * s + px, qlo:qlo + OH, qlo:qlo + OW, :] = (
                    hp.reshape(OH, OW, Cin))

        # ---- downscale: Conv2d(Cin->Cout, stride=s, pad=pad_d) on relu(h),
        #      with the residual (shortcut) add fused into the accumulator ----
        acc = acc_sc + jnp.broadcast_to(b_dn_ref[...],
                                        (M, Cout)).astype(jnp.float32)
        for ky in range(K):
            qy, ry = divmod(ky - pad_d, s)
            for kx in range(K):
                qx, rx = divmod(kx - pad_d, s)
                ht = hph_ref[ry * s + rx,
                             qy + qlo:qy + qlo + OH,
                             qx + qlo:qx + qlo + OW, :]
                acc += jnp.dot(ht.reshape(M, Cin), w_dn_ref[ky, kx],
                               preferred_element_type=jnp.float32)
        o_ref[0] = acc.astype(o_ref.dtype)

    return kernel


# ------------------------------- wrapper -------------------------------------
def down_conv_block_forward(x_nchw, params, *, pad, stride):
    """Pallas implementation of Down_Conv_block.forward. NCHW in / NCHW out."""
    w_cv, b_cv = params["w_conv"], params["b_conv"]
    w_dn, b_dn = params["w_down"], params["b_down"]
    w_sc, b_sc = params["w_sc"], params["b_sc"]

    B, Cin, H, W = x_nchw.shape
    Cout, Cin_w, K, K2 = w_sc.shape
    assert Cin_w == Cin and K2 == K and K % 2 == 1
    s, pad_d = stride, pad
    pad_same = (K - 1) // 2
    OH = (H + 2 * pad_d - K) // s + 1
    OW = (W + 2 * pad_d - K) // s + 1
    # TODO(synk): generalize to pad/stride combos that do not tile H/W exactly
    #             and add a spatial grid axis with halo tiles for huge images.
    assert H % s == 0 and W % s == 0 and OH == H // s and OW == W // s

    Pmax = max(pad_d, pad_same)
    Hp2 = -(-(H + 2 * Pmax) // s) * s       # padded extent rounded up to a
    Wp2 = -(-(W + 2 * Pmax) // s) * s       # multiple of the stride
    HS, WS = Hp2 // s, Wp2 // s

    # NCHW -> NHWC, zero-pad once, space-to-depth.  Pure XLA layout plumbing on
    # the un-expanded activation -> no 9x im2col materialisation in HBM.
    x = jnp.transpose(x_nchw, (0, 2, 3, 1)).astype(jnp.float32)
    x = jnp.pad(x, ((0, 0), (Pmax, Hp2 - H - Pmax),
                    (Pmax, Wp2 - W - Pmax), (0, 0)))
    x_s2d = x.reshape(B, HS, s, WS, s, Cin).transpose(0, 2, 4, 1, 3, 5)
    x_s2d = x_s2d.reshape(B, s * s, HS, WS, Cin)

    # PyTorch OIHW -> (K, K, I, O); biases as (1, O) rows.
    kkio = lambda w: jnp.transpose(w, (2, 3, 1, 0)).astype(jnp.float32)
    args = (x_s2d,
            kkio(w_cv), b_cv.reshape(1, Cin).astype(jnp.float32),
            kkio(w_dn), b_dn.reshape(1, Cout).astype(jnp.float32),
            kkio(w_sc), b_sc.reshape(1, Cout).astype(jnp.float32))

    # VMEM scratch holding relu(h) in phase layout with a zero halo that
    # realises the downscale conv's zero padding.
    qlo = max(0, -((0 - pad_d) // s))
    qhi = max(0, (K - 1 - pad_d) // s)
    PH, PW = OH + qlo + qhi, OW + qlo + qhi
    M = OH * OW

    kernel = _make_fused_kernel(H=H, W=W, Cin=Cin, Cout=Cout, K=K, s=s,
                                pad_d=pad_d, pad_same=pad_same, qlo=qlo)

    const = lambda n: (lambda b: (0,) * n)   # weights/biases: resident blocks
    out = pl.pallas_call(
        kernel,
        out_shape=jax.ShapeDtypeStruct((B, M, Cout), jnp.float32),
        grid=(B,),
        in_specs=[
            pl.BlockSpec((1, s * s, HS, WS, Cin), lambda b: (b, 0, 0, 0, 0)),
            pl.BlockSpec((K, K, Cin, Cin), const(4)),
            pl.BlockSpec((1, Cin), const(2)),
            pl.BlockSpec((K, K, Cin, Cout), const(4)),
            pl.BlockSpec((1, Cout), const(2)),
            pl.BlockSpec((K, K, Cin, Cout), const(4)),
            pl.BlockSpec((1, Cout), const(2)),
        ],
        out_specs=pl.BlockSpec((1, M, Cout), lambda b: (b, 0, 0)),
        scratch_shapes=[pltpu.VMEM((s * s, HS, WS, Cin), jnp.float32),
                        pltpu.VMEM((s * s, PH, PW, Cin), jnp.float32)],
        compiler_params=pltpu.CompilerParams(
            dimension_semantics=("parallel",),   # v7x: shard batch over 2 TCs
            vmem_limit_bytes=32 * 1024 * 1024),
    )(*args)

    out = out.reshape(B, OH, OW, Cout)
    return jnp.transpose(out, (0, 3, 1, 2))      # back to NCHW


# ------------------------- pure-JAX reference --------------------------------
def _ref_conv(x, w, b, stride, pad):
    out = jax.lax.conv_general_dilated(
        x, w, window_strides=(stride, stride),
        padding=((pad, pad), (pad, pad)),
        dimension_numbers=("NCHW", "OIHW", "NCHW"))
    return out + b[None, :, None, None]


def _ref_forward(x, params, *, pad, stride):
    k = params["w_conv"].shape[-1]
    x_sc = _ref_conv(x, params["w_sc"], params["b_sc"], stride, pad)
    h = jax.nn.relu(x)
    h = _ref_conv(h, params["w_conv"], params["b_conv"], 1, (k - 1) // 2)
    h = jax.nn.relu(h)
    h = _ref_conv(h, params["w_down"], params["b_down"], stride, pad)
    return h + x_sc


# --------------------------------- main --------------------------------------
if __name__ == "__main__":
    B, Cin, Cout, H, W = 2, 4, 8, 16, 16
    K, PAD, STRIDE = 3, 1, 2   # 'same'-style padding for k=3, downscale_factor=2

    key = jax.random.PRNGKey(0)
    ks = jax.random.split(key, 7)
    params = {
        "w_sc":   jax.random.normal(ks[0], (Cout, Cin, K, K), jnp.float32) * 0.1,
        "b_sc":   jax.random.normal(ks[1], (Cout,), jnp.float32) * 0.1,
        "w_conv": jax.random.normal(ks[2], (Cin, Cin, K, K), jnp.float32) * 0.1,
        "b_conv": jax.random.normal(ks[3], (Cin,), jnp.float32) * 0.1,
        "w_down": jax.random.normal(ks[4], (Cout, Cin, K, K), jnp.float32) * 0.1,
        "b_down": jax.random.normal(ks[5], (Cout,), jnp.float32) * 0.1,
    }
    x = jax.random.normal(ks[6], (B, Cin, H, W), jnp.float32)

    fwd = jax.jit(functools.partial(down_conv_block_forward, pad=PAD, stride=STRIDE))
    out = jax.block_until_ready(fwd(x, params))

    ref = _ref_forward(x, params, pad=PAD, stride=STRIDE)
    assert out.shape == (B, Cout, H // STRIDE, W // STRIDE), out.shape
    assert jnp.allclose(out, ref, rtol=1e-4, atol=1e-4), \
        float(jnp.max(jnp.abs(out - ref)))

    print("KERNEL_OK")
</pallas_src>

<mosaic_0001>
module attributes {stable_mosaic.version = 11 : i64} {
  func.func @kernel(%arg0: i32, %arg1: memref<1x4x9x9x4xf32, #tpu.memory_space<vmem>>, %arg2: memref<3x3x4x4xf32, #tpu.memory_space<vmem>>, %arg3: memref<1x4xf32, #tpu.memory_space<vmem>>, %arg4: memref<3x3x4x8xf32, #tpu.memory_space<vmem>>, %arg5: memref<1x8xf32, #tpu.memory_space<vmem>>, %arg6: memref<3x3x4x8xf32, #tpu.memory_space<vmem>>, %arg7: memref<1x8xf32, #tpu.memory_space<vmem>>, %arg8: memref<1x64x8xf32, #tpu.memory_space<vmem>>, %arg9: memref<4x9x9x4xf32, #tpu.memory_space<vmem>>, %arg10: memref<4x9x9x4xf32, #tpu.memory_space<vmem>>) attributes {dimension_semantics = [#tpu.dimension_semantics<parallel>], iteration_bounds = array<i64: 2>, scalar_prefetch = 0 : i64, scratch_operands = 2 : i64, tpu.core_type = #tpu.core_type<tc>, window_params = [{transform_indices = @transform_0, window_bounds = array<i64: 1, 4, 9, 9, 4>}, {pipeline_mode = #tpu.pipeline_mode<synchronous>, transform_indices = @transform_1, window_bounds = array<i64: 3, 3, 4, 4>}, {pipeline_mode = #tpu.pipeline_mode<synchronous>, transform_indices = @transform_2, window_bounds = array<i64: 1, 4>}, {pipeline_mode = #tpu.pipeline_mode<synchronous>, transform_indices = @transform_3, window_bounds = array<i64: 3, 3, 4, 8>}, {pipeline_mode = #tpu.pipeline_mode<synchronous>, transform_indices = @transform_4, window_bounds = array<i64: 1, 8>}, {pipeline_mode = #tpu.pipeline_mode<synchronous>, transform_indices = @transform_5, window_bounds = array<i64: 3, 3, 4, 8>}, {pipeline_mode = #tpu.pipeline_mode<synchronous>, transform_indices = @transform_6, window_bounds = array<i64: 1, 8>}, {transform_indices = @transform_7, window_bounds = array<i64: 1, 64, 8>}]} {
    %c0 = arith.constant 0 : index
    %c0_0 = arith.constant 0 : index
    %c0_1 = arith.constant 0 : index
    %c0_2 = arith.constant 0 : index
    %c0_3 = arith.constant 0 : index
    %0 = vector.load %arg1[%c0, %c0_0, %c0_1, %c0_2, %c0_3] : memref<1x4x9x9x4xf32, #tpu.memory_space<vmem>>, vector<1x4x9x9x4xf32>
    %1 = vector.shape_cast %0 : vector<1x4x9x9x4xf32> to vector<4x9x9x4xf32>
    %cst = arith.constant 0.000000e+00 : f32
    %2 = vector.broadcast %cst : f32 to vector<4x9x9x4xf32>
    %3 = arith.maximumf %1, %2 : vector<4x9x9x4xf32>
    %c0_4 = arith.constant 0 : index
    %c0_5 = arith.constant 0 : index
    %c0_6 = arith.constant 0 : index
    %c0_7 = arith.constant 0 : index
    %4 = vector.load %arg9[%c0_4, %c0_5, %c0_6, %c0_7] : memref<4x9x9x4xf32, #tpu.memory_space<vmem>>, vector<4x9x9x4xf32>
    tpu.vector_store %arg9[%c0_4, %c0_5, %c0_6, %c0_7], %3 {strides = array<i32>} : memref<4x9x9x4xf32, #tpu.memory_space<vmem>>, vector<4x9x9x4xf32>,
    %c0_8 = arith.constant 0 : index
    %c0_9 = arith.constant 0 : index
    %5 = vector.load %arg7[%c0_8, %c0_9] : memref<1x8xf32, #tpu.memory_space<vmem>>, vector<1x8xf32>
    %6 = vector.shape_cast %5 : vector<1x8xf32> to vector<1x8xf32>
    %7 = vector.broadcast %6 : vector<1x8xf32> to vector<64x8xf32>
    %c0_10 = arith.constant 0 : index
    %c0_11 = arith.constant 0 : index
    %c0_12 = arith.constant 0 : index
    %c0_13 = arith.constant 0 : index
    %c0_14 = arith.constant 0 : index
    %8 = vector.load %arg1[%c0_10, %c0_11, %c0_12, %c0_13, %c0_14] : memref<1x4x9x9x4xf32, #tpu.memory_space<vmem>>, vector<1x1x8x8x4xf32>
    %9 = vector.shape_cast %8 : vector<1x1x8x8x4xf32> to vector<8x8x4xf32>
    %10 = vector.shape_cast %9 : vector<8x8x4xf32> to vector<64x4xf32>
    %c0_15 = arith.constant 0 : index
    %c0_16 = arith.constant 0 : index
    %c0_17 = arith.constant 0 : index
    %c0_18 = arith.constant 0 : index
    %11 = vector.load %arg6[%c0_15, %c0_16, %c0_17, %c0_18] : memref<3x3x4x8xf32, #tpu.memory_space<vmem>>, vector<1x1x4x8xf32>
    %12 = vector.shape_cast %11 : vector<1x1x4x8xf32> to vector<4x8xf32>
    %cst_19 = arith.constant dense<0.000000e+00> : vector<64x8xf32>
    %13 = tpu.matmul %10, %12, %cst_19 {dimension_numbers = #tpu.dot_dimension_numbers<[1], [0], [0], [1], [0, 0, 1, 1], [], []>} : vector<64x4xf32>, vector<4x8xf32>, vector<64x8xf32> -> vector<64x8xf32>
    %14 = arith.addf %7, %13 : vector<64x8xf32>
    %c0_20 = arith.constant 0 : index
    %c1 = arith.constant 1 : index
    %c0_21 = arith.constant 0 : index
    %c0_22 = arith.constant 0 : index
    %c0_23 = arith.constant 0 : index
    %15 = vector.load %arg1[%c0_20, %c1, %c0_21, %c0_22, %c0_23] : memref<1x4x9x9x4xf32, #tpu.memory_space<vmem>>, vector<1x1x8x8x4xf32>
    %16 = vector.shape_cast %15 : vector<1x1x8x8x4xf32> to vector<8x8x4xf32>
    %17 = vector.shape_cast %16 : vector<8x8x4xf32> to vector<64x4xf32>
    %c0_24 = arith.constant 0 : index
    %c1_25 = arith.constant 1 : index
    %c0_26 = arith.constant 0 : index
    %c0_27 = arith.constant 0 : index
    %18 = vector.load %arg6[%c0_24, %c1_25, %c0_26, %c0_27] : memref<3x3x4x8xf32, #tpu.memory_space<vmem>>, vector<1x1x4x8xf32>
    %19 = vector.shape_cast %18 : vector<1x1x4x8xf32> to vector<4x8xf32>
    %cst_28 = arith.constant dense<0.000000e+00> : vector<64x8xf32>
    %20 = tpu.matmul %17, %19, %cst_28 {dimension_numbers = #tpu.dot_dimension_numbers<[1], [0], [0], [1], [0, 0, 1, 1], [], []>} : vector<64x4xf32>, vector<4x8xf32>, vector<64x8xf32> -> vector<64x8xf32>
    %21 = arith.addf %14, %20 : vector<64x8xf32>
    %c0_29 = arith.constant 0 : index
    %c0_30 = arith.constant 0 : index
    %c0_31 = arith.constant 0 : index
    %c1_32 = arith.constant 1 : index
    %c0_33 = arith.constant 0 : index
    %22 = vector.load %arg1[%c0_29, %c0_30, %c0_31, %c1_32, %c0_33] : memref<1x4x9x9x4xf32, #tpu.memory_space<vmem>>, vector<1x1x8x8x4xf32>
    %23 = vector.shape_cast %22 : vector<1x1x8x8x4xf32> to vector<8x8x4xf32>
    %24 = vector.shape_cast %23 : vector<8x8x4xf32> to vector<64x4xf32>
    %c0_34 = arith.constant 0 : index
    %c2 = arith.constant 2 : index
    %c0_35 = arith.constant 0 : index
    %c0_36 = arith.constant 0 : index
    %25 = vector.load %arg6[%c0_34, %c2, %c0_35, %c0_36] : memref<3x3x4x8xf32, #tpu.memory_space<vmem>>, vector<1x1x4x8xf32>
    %26 = vector.shape_cast %25 : vector<1x1x4x8xf32> to vector<4x8xf32>
    %cst_37 = arith.constant dense<0.000000e+00> : vector<64x8xf32>
    %27 = tpu.matmul %24, %26, %cst_37 {dimension_numbers = #tpu.dot_dimension_numbers<[1], [0], [0], [1], [0, 0, 1, 1], [], []>} : vector<64x4xf32>, vector<4x8xf32>, vector<64x8xf32> -> vector<64x8xf32>
    %28 = arith.addf %21, %27 : vector<64x8xf32>
    %c0_38 = arith.constant 0 : index
    %c2_39 = arith.constant 2 : index
    %c0_40 = arith.constant 0 : index
    %c0_41 = arith.constant 0 : index
    %c0_42 = arith.constant 0 : index
    %29 = vector.load %arg1[%c0_38, %c2_39, %c0_40, %c0_41, %c0_42] : memref<1x4x9x9x4xf32, #tpu.memory_space<vmem>>, vector<1x1x8x8x4xf32>
    %30 = vector.shape_cast %29 : vector<1x1x8x8x4xf32> to vector<8x8x4xf32>
    %31 = vector.shape_cast %30 : vector<8x8x4xf32> to vector<64x4xf32>
    %c1_43 = arith.constant 1 : index
    %c0_44 = arith.constant 0 : index
    %c0_45 = arith.constant 0 : index
    %c0_46 = arith.constant 0 : index
    %32 = vector.load %arg6[%c1_43, %c0_44, %c0_45, %c0_46] : memref<3x3x4x8xf32, #tpu.memory_space<vmem>>, vector<1x1x4x8xf32>
    %33 = vector.shape_cast %32 : vector<1x1x4x8xf32> to vector<4x8xf32>
    %cst_47 = arith.constant dense<0.000000e+00> : vector<64x8xf32>
    %34 = tpu.matmul %31, %33, %cst_47 {dimension_numbers = #tpu.dot_dimension_numbers<[1], [0], [0], [1], [0, 0, 1, 1], [], []>} : vector<64x4xf32>, vector<4x8xf32>, vector<64x8xf32> -> vector<64x8xf32>
    %35 = arith.addf %28, %34 : vector<64x8xf32>
    %c0_48 = arith.constant 0 : index
    %c3 = arith.constant 3 : index
    %c0_49 = arith.constant 0 : index
    %c0_50 = arith.constant 0 : index
    %c0_51 = arith.constant 0 : index
    %36 = vector.load %arg1[%c0_48, %c3, %c0_49, %c0_50, %c0_51] : memref<1x4x9x9x4xf32, #tpu.memory_space<vmem>>, vector<1x1x8x8x4xf32>
    %37 = vector.shape_cast %36 : vector<1x1x8x8x4xf32> to vector<8x8x4xf32>
    %38 = vector.shape_cast %37 : vector<8x8x4xf32> to vector<64x4xf32>
    %c1_52 = arith.constant 1 : index
    %c1_53 = arith.constant 1 : index
    %c0_54 = arith.constant 0 : index
    %c0_55 = arith.constant 0 : index
    %39 = vector.load %arg6[%c1_52, %c1_53, %c0_54, %c0_55] : memref<3x3x4x8xf32, #tpu.memory_space<vmem>>, vector<1x1x4x8xf32>
    %40 = vector.shape_cast %39 : vector<1x1x4x8xf32> to vector<4x8xf32>
    %cst_56 = arith.constant dense<0.000000e+00> : vector<64x8xf32>
    %41 = tpu.matmul %38, %40, %cst_56 {dimension_numbers = #tpu.dot_dimension_numbers<[1], [0], [0], [1], [0, 0, 1, 1], [], []>} : vector<64x4xf32>, vector<4x8xf32>, vector<64x8xf32> -> vector<64x8xf32>
    %42 = arith.addf %35, %41 : vector<64x8xf32>
    %c0_57 = arith.constant 0 : index
    %c2_58 = arith.constant 2 : index
    %c0_59 = arith.constant 0 : index
    %c1_60 = arith.constant 1 : index
    %c0_61 = arith.constant 0 : index
    %43 = vector.load %arg1[%c0_57, %c2_58, %c0_59, %c1_60, %c0_61] : memref<1x4x9x9x4xf32, #tpu.memory_space<vmem>>, vector<1x1x8x8x4xf32>
    %44 = vector.shape_cast %43 : vector<1x1x8x8x4xf32> to vector<8x8x4xf32>
    %45 = vector.shape_cast %44 : vector<8x8x4xf32> to vector<64x4xf32>
    %c1_62 = arith.constant 1 : index
    %c2_63 = arith.constant 2 : index
    %c0_64 = arith.constant 0 : index
    %c0_65 = arith.constant 0 : index
    %46 = vector.load %arg6[%c1_62, %c2_63, %c0_64, %c0_65] : memref<3x3x4x8xf32, #tpu.memory_space<vmem>>, vector<1x1x4x8xf32>
    %47 = vector.shape_cast %46 : vector<1x1x4x8xf32> to vector<4x8xf32>
    %cst_66 = arith.constant dense<0.000000e+00> : vector<64x8xf32>
    %48 = tpu.matmul %45, %47, %cst_66 {dimension_numbers = #tpu.dot_dimension_numbers<[1], [0], [0], [1], [0, 0, 1, 1], [], []>} : vector<64x4xf32>, vector<4x8xf32>, vector<64x8xf32> -> vector<64x8xf32>
    %49 = arith.addf %42, %48 : vector<64x8xf32>
    %c0_67 = arith.constant 0 : index
    %c0_68 = arith.constant 0 : index
    %c1_69 = arith.constant 1 : index
    %c0_70 = arith.constant 0 : index
    %c0_71 = arith.constant 0 : index
    %50 = vector.load %arg1[%c0_67, %c0_68, %c1_69, %c0_70, %c0_71] : memref<1x4x9x9x4xf32, #tpu.memory_space<vmem>>, vector<1x1x8x8x4xf32>
    %51 = vector.shape_cast %50 : vector<1x1x8x8x4xf32> to vector<8x8x4xf32>
    %52 = vector.shape_cast %51 : vector<8x8x4xf32> to vector<64x4xf32>
    %c2_72 = arith.constant 2 : index
    %c0_73 = arith.constant 0 : index
    %c0_74 = arith.constant 0 : index
    %c0_75 = arith.constant 0 : index
    %53 = vector.load %arg6[%c2_72, %c0_73, %c0_74, %c0_75] : memref<3x3x4x8xf32, #tpu.memory_space<vmem>>, vector<1x1x4x8xf32>
    %54 = vector.shape_cast %53 : vector<1x1x4x8xf32> to vector<4x8xf32>
    %cst_76 = arith.constant dense<0.000000e+00> : vector<64x8xf32>
    %55 = tpu.matmul %52, %54, %cst_76 {dimension_numbers = #tpu.dot_dimension_numbers<[1], [0], [0], [1], [0, 0, 1, 1], [], []>} : vector<64x4xf32>, vector<4x8xf32>, vector<64x8xf32> -> vector<64x8xf32>
    %56 = arith.addf %49, %55 : vector<64x8xf32>
    %c0_77 = arith.constant 0 : index
    %c1_78 = arith.constant 1 : index
    %c1_79 = arith.constant 1 : index
    %c0_80 = arith.constant 0 : index
    %c0_81 = arith.constant 0 : index
    %57 = vector.load %arg1[%c0_77, %c1_78, %c1_79, %c0_80, %c0_81] : memref<1x4x9x9x4xf32, #tpu.memory_space<vmem>>, vector<1x1x8x8x4xf32>
    %58 = vector.shape_cast %57 : vector<1x1x8x8x4xf32> to vector<8x8x4xf32>
    %59 = vector.shape_cast %58 : vector<8x8x4xf32> to vector<64x4xf32>
    %c2_82 = arith.constant 2 : index
    %c1_83 = arith.constant 1 : index
    %c0_84 = arith.constant 0 : index
    %c0_85 = arith.constant 0 : index
    %60 = vector.load %arg6[%c2_82, %c1_83, %c0_84, %c0_85] : memref<3x3x4x8xf32, #tpu.memory_space<vmem>>, vector<1x1x4x8xf32>
    %61 = vector.shape_cast %60 : vector<1x1x4x8xf32> to vector<4x8xf32>
    %cst_86 = arith.constant dense<0.000000e+00> : vector<64x8xf32>
    %62 = tpu.matmul %59, %61, %cst_86 {dimension_numbers = #tpu.dot_dimension_numbers<[1], [0], [0], [1], [0, 0, 1, 1], [], []>} : vector<64x4xf32>, vector<4x8xf32>, vector<64x8xf32> -> vector<64x8xf32>
    %63 = arith.addf %56, %62 : vector<64x8xf32>
    %c0_87 = arith.constant 0 : index
    %c0_88 = arith.constant 0 : index
    %c1_89 = arith.constant 1 : index
    %c1_90 = arith.constant 1 : index
    %c0_91 = arith.constant 0 : index
    %64 = vector.load %arg1[%c0_87, %c0_88, %c1_89, %c1_90, %c0_91] : memref<1x4x9x9x4xf32, #tpu.memory_space<vmem>>, vector<1x1x8x8x4xf32>
    %65 = vector.shape_cast %64 : vector<1x1x8x8x4xf32> to vector<8x8x4xf32>
    %66 = vector.shape_cast %65 : vector<8x8x4xf32> to vector<64x4xf32>
    %c2_92 = arith.constant 2 : index
    %c2_93 = arith.constant 2 : index
    %c0_94 = arith.constant 0 : index
    %c0_95 = arith.constant 0 : index
    %67 = vector.load %arg6[%c2_92, %c2_93, %c0_94, %c0_95] : memref<3x3x4x8xf32, #tpu.memory_space<vmem>>, vector<1x1x4x8xf32>
    %68 = vector.shape_cast %67 : vector<1x1x4x8xf32> to vector<4x8xf32>
    %cst_96 = arith.constant dense<0.000000e+00> : vector<64x8xf32>
    %69 = tpu.matmul %66, %68, %cst_96 {dimension_numbers = #tpu.dot_dimension_numbers<[1], [0], [0], [1], [0, 0, 1, 1], [], []>} : vector<64x4xf32>, vector<4x8xf32>, vector<64x8xf32> -> vector<64x8xf32>
    %70 = arith.addf %63, %69 : vector<64x8xf32>
    %cst_97 = arith.constant 0.000000e+00 : f32
    %71 = vector.broadcast %cst_97 : f32 to vector<4x9x9x4xf32>
    %c0_98 = arith.constant 0 : index
    %c0_99 = arith.constant 0 : index
    %c0_100 = arith.constant 0 : index
    %c0_101 = arith.constant 0 : index
    %72 = vector.load %arg10[%c0_98, %c0_99, %c0_100, %c0_101] : memref<4x9x9x4xf32, #tpu.memory_space<vmem>>, vector<4x9x9x4xf32>
    tpu.vector_store %arg10[%c0_98, %c0_99, %c0_100, %c0_101], %71 {strides = array<i32>} : memref<4x9x9x4xf32, #tpu.memory_space<vmem>>, vector<4x9x9x4xf32>,
    %c0_102 = arith.constant 0 : index
    %c0_103 = arith.constant 0 : index
    %73 = vector.load %arg3[%c0_102, %c0_103] : memref<1x4xf32, #tpu.memory_space<vmem>>, vector<1x4xf32>
    %74 = vector.shape_cast %73 : vector<1x4xf32> to vector<1x4xf32>
    %75 = vector.broadcast %74 : vector<1x4xf32> to vector<64x4xf32>
    %c0_104 = arith.constant 0 : index
    %c0_105 = arith.constant 0 : index
    %c0_106 = arith.constant 0 : index
    %c0_107 = arith.constant 0 : index
    %76 = vector.load %arg9[%c0_104, %c0_105, %c0_106, %c0_107] : memref<4x9x9x4xf32, #tpu.memory_space<vmem>>, vector<1x8x8x4xf32>
    %77 = vector.shape_cast %76 : vector<1x8x8x4xf32> to vector<8x8x4xf32>
    %78 = vector.shape_cast %77 : vector<8x8x4xf32> to vector<64x4xf32>
    %c0_108 = arith.constant 0 : index
    %c0_109 = arith.constant 0 : index
    %c0_110 = arith.constant 0 : index
    %c0_111 = arith.constant 0 : index
    %79 = vector.load %arg2[%c0_108, %c0_109, %c0_110, %c0_111] : memref<3x3x4x4xf32, #tpu.memory_space<vmem>>, vector<1x1x4x4xf32>
    %80 = vector.shape_cast %79 : vector<1x1x4x4xf32> to vector<4x4xf32>
    %cst_112 = arith.constant dense<0.000000e+00> : vector<64x4xf32>
    %81 = tpu.matmul %78, %80, %cst_112 {dimension_numbers = #tpu.dot_dimension_numbers<[1], [0], [0], [1], [0, 0, 1, 1], [], []>} : vector<64x4xf32>, vector<4x4xf32>, vector<64x4xf32> -> vector<64x4xf32>
    %82 = arith.addf %75, %81 : vector<64x4xf32>
    %c1_113 = arith.constant 1 : index
    %c0_114 = arith.constant 0 : index
    %c0_115 = arith.constant 0 : index
    %c0_116 = arith.constant 0 : index
    %83 = vector.load %arg9[%c1_113, %c0_114, %c0_115, %c0_116] : memref<4x9x9x4xf32, #tpu.memory_space<vmem>>, vector<1x8x8x4xf32>
    %84 = vector.shape_cast %83 : vector<1x8x8x4xf32> to vector<8x8x4xf32>
    %85 = vector.shape_cast %84 : vector<8x8x4xf32> to vector<64x4xf32>
    %c0_117 = arith.constant 0 : index
    %c1_118 = arith.constant 1 : index
    %c0_119 = arith.constant 0 : index
    %c0_120 = arith.constant 0 : index
    %86 = vector.load %arg2[%c0_117, %c1_118, %c0_119, %c0_120] : memref<3x3x4x4xf32, #tpu.memory_space<vmem>>, vector<1x1x4x4xf32>
    %87 = vector.shape_cast %86 : vector<1x1x4x4xf32> to vector<4x4xf32>
    %cst_121 = arith.constant dense<0.000000e+00> : vector<64x4xf32>
    %88 = tpu.matmul %85, %87, %cst_121 {dimension_numbers = #tpu.dot_dimension_numbers<[1], [0], [0], [1], [0, 0, 1, 1], [], []>} : vector<64x4xf32>, vector<4x4xf32>, vector<64x4xf32> -> vector<64x4xf32>
    %89 = arith.addf %82, %88 : vector<64x4xf32>
    %c0_122 = arith.constant 0 : index
    %c0_123 = arith.constant 0 : index
    %c1_124 = arith.constant 1 : index
    %c0_125 = arith.constant 0 : index
    %90 = vector.load %arg9[%c0_122, %c0_123, %c1_124, %c0_125] : memref<4x9x9x4xf32, #tpu.memory_space<vmem>>, vector<1x8x8x4xf32>
    %91 = vector.shape_cast %90 : vector<1x8x8x4xf32> to vector<8x8x4xf32>
    %92 = vector.shape_cast %91 : vector<8x8x4xf32> to vector<64x4xf32>
    %c0_126 = arith.constant 0 : index
    %c2_127 = arith.constant 2 : index
    %c0_128 = arith.constant 0 : index
    %c0_129 = arith.constant 0 : index
    %93 = vector.load %arg2[%c0_126, %c2_127, %c0_128, %c0_129] : memref<3x3x4x4xf32, #tpu.memory_space<vmem>>, vector<1x1x4x4xf32>
    %94 = vector.shape_cast %93 : vector<1x1x4x4xf32> to vector<4x4xf32>
    %cst_130 = arith.constant dense<0.000000e+00> : vector<64x4xf32>
    %95 = tpu.matmul %92, %94, %cst_130 {dimension_numbers = #tpu.dot_dimension_numbers<[1], [0], [0], [1], [0, 0, 1, 1], [], []>} : vector<64x4xf32>, vector<4x4xf32>, vector<64x4xf32> -> vector<64x4xf32>
    %96 = arith.addf %89, %95 : vector<64x4xf32>
    %c2_131 = arith.constant 2 : index
    %c0_132 = arith.constant 0 : index
    %c0_133 = arith.constant 0 : index
    %c0_134 = arith.constant 0 : index
    %97 = vector.load %arg9[%c2_131, %c0_132, %c0_133, %c0_134] : memref<4x9x9x4xf32, #tpu.memory_space<vmem>>, vector<1x8x8x4xf32>
    %98 = vector.shape_cast %97 : vector<1x8x8x4xf32> to vector<8x8x4xf32>
    %99 = vector.shape_cast %98 : vector<8x8x4xf32> to vector<64x4xf32>
    %c1_135 = arith.constant 1 : index
    %c0_136 = arith.constant 0 : index
    %c0_137 = arith.constant 0 : index
    %c0_138 = arith.constant 0 : index
    %100 = vector.load %arg2[%c1_135, %c0_136, %c0_137, %c0_138] : memref<3x3x4x4xf32, #tpu.memory_space<vmem>>, vector<1x1x4x4xf32>
    %101 = vector.shape_cast %100 : vector<1x1x4x4xf32> to vector<4x4xf32>
    %cst_139 = arith.constant dense<0.000000e+00> : vector<64x4xf32>
    %102 = tpu.matmul %99, %101, %cst_139 {dimension_numbers = #tpu.dot_dimension_numbers<[1], [0], [0], [1], [0, 0, 1, 1], [], []>} : vector<64x4xf32>, vector<4x4xf32>, vector<64x4xf32> -> vector<64x4xf32>
    %103 = arith.addf %96, %102 : vector<64x4xf32>
    %c3_140 = arith.constant 3 : index
    %c0_141 = arith.constant 0 : index
    %c0_142 = arith.constant 0 : index
    %c0_143 = arith.constant 0 : index
    %104 = vector.load %arg9[%c3_140, %c0_141, %c0_142, %c0_143] : memref<4x9x9x4xf32, #tpu.memory_space<vmem>>, vector<1x8x8x4xf32>
    %105 = vector.shape_cast %104 : vector<1x8x8x4xf32> to vector<8x8x4xf32>
    %106 = vector.shape_cast %105 : vector<8x8x4xf32> to vector<64x4xf32>
    %c1_144 = arith.constant 1 : index
    %c1_145 = arith.constant 1 : index
    %c0_146 = arith.constant 0 : index
    %c0_147 = arith.constant 0 : index
    %107 = vector.load %arg2[%c1_144, %c1_145, %c0_146, %c0_147] : memref<3x3x4x4xf32, #tpu.memory_space<vmem>>, vector<1x1x4x4xf32>
    %108 = vector.shape_cast %107 : vector<1x1x4x4xf32> to vector<4x4xf32>
    %cst_148 = arith.constant dense<0.000000e+00> : vector<64x4xf32>
    %109 = tpu.matmul %106, %108, %cst_148 {dimension_numbers = #tpu.dot_dimension_numbers<[1], [0], [0], [1], [0, 0, 1, 1], [], []>} : vector<64x4xf32>, vector<4x4xf32>, vector<64x4xf32> -> vector<64x4xf32>
    %110 = arith.addf %103, %109 : vector<64x4xf32>
    %c2_149 = arith.constant 2 : index
    %c0_150 = arith.constant 0 : index
    %c1_151 = arith.constant 1 : index
    %c0_152 = arith.constant 0 : index
    %111 = vector.load %arg9[%c2_149, %c0_150, %c1_151, %c0_152] : memref<4x9x9x4xf32, #tpu.memory_space<vmem>>, vector<1x8x8x4xf32>
    %112 = vector.shape_cast %111 : vector<1x8x8x4xf32> to vector<8x8x4xf32>
    %113 = vector.shape_cast %112 : vector<8x8x4xf32> to vector<64x4xf32>
    %c1_153 = arith.constant 1 : index
    %c2_154 = arith.constant 2 : index
    %c0_155 = arith.constant 0 : index
    %c0_156 = arith.constant 0 : index
    %114 = vector.load %arg2[%c1_153, %c2_154, %c0_155, %c0_156] : memref<3x3x4x4xf32, #tpu.memory_space<vmem>>, vector<1x1x4x4xf32>
    %115 = vector.shape_cast %114 : vector<1x1x4x4xf32> to vector<4x4xf32>
    %cst_157 = arith.constant dense<0.000000e+00> : vector<64x4xf32>
    %116 = tpu.matmul %113, %115, %cst_157 {dimension_numbers = #tpu.dot_dimension_numbers<[1], [0], [0], [1], [0, 0, 1, 1], [], []>} : vector<64x4xf32>, vector<4x4xf32>, vector<64x4xf32> -> vector<64x4xf32>
    %117 = arith.addf %110, %116 : vector<64x4xf32>
    %c0_158 = arith.constant 0 : index
    %c1_159 = arith.constant 1 : index
    %c0_160 = arith.constant 0 : index
    %c0_161 = arith.constant 0 : index
    %118 = vector.load %arg9[%c0_158, %c1_159, %c0_160, %c0_161] : memref<4x9x9x4xf32, #tpu.memory_space<vmem>>, vector<1x8x8x4xf32>
    %119 = vector.shape_cast %118 : vector<1x8x8x4xf32> to vector<8x8x4xf32>
    %120 = vector.shape_cast %119 : vector<8x8x4xf32> to vector<64x4xf32>
    %c2_162 = arith.constant 2 : index
    %c0_163 = arith.constant 0 : index
    %c0_164 = arith.constant 0 : index
    %c0_165 = arith.constant 0 : index
    %121 = vector.load %arg2[%c2_162, %c0_163, %c0_164, %c0_165] : memref<3x3x4x4xf32, #tpu.memory_space<vmem>>, vector<1x1x4x4xf32>
    %122 = vector.shape_cast %121 : vector<1x1x4x4xf32> to vector<4x4xf32>
    %cst_166 = arith.constant dense<0.000000e+00> : vector<64x4xf32>
    %123 = tpu.matmul %120, %122, %cst_166 {dimension_numbers = #tpu.dot_dimension_numbers<[1], [0], [0], [1], [0, 0, 1, 1], [], []>} : vector<64x4xf32>, vector<4x4xf32>, vector<64x4xf32> -> vector<64x4xf32>
    %124 = arith.addf %117, %123 : vector<64x4xf32>
    %c1_167 = arith.constant 1 : index
    %c1_168 = arith.constant 1 : index
    %c0_169 = arith.constant 0 : index
    %c0_170 = arith.constant 0 : index
    %125 = vector.load %arg9[%c1_167, %c1_168, %c0_169, %c0_170] : memref<4x9x9x4xf32, #tpu.memory_space<vmem>>, vector<1x8x8x4xf32>
    %126 = vector.shape_cast %125 : vector<1x8x8x4xf32> to vector<8x8x4xf32>
    %127 = vector.shape_cast %126 : vector<8x8x4xf32> to vector<64x4xf32>
    %c2_171 = arith.constant 2 : index
    %c1_172 = arith.constant 1 : index
    %c0_173 = arith.constant 0 : index
    %c0_174 = arith.constant 0 : index
    %128 = vector.load %arg2[%c2_171, %c1_172, %c0_173, %c0_174] : memref<3x3x4x4xf32, #tpu.memory_space<vmem>>, vector<1x1x4x4xf32>
    %129 = vector.shape_cast %128 : vector<1x1x4x4xf32> to vector<4x4xf32>
    %cst_175 = arith.constant dense<0.000000e+00> : vector<64x4xf32>
    %130 = tpu.matmul %127, %129, %cst_175 {dimension_numbers = #tpu.dot_dimension_numbers<[1], [0], [0], [1], [0, 0, 1, 1], [], []>} : vector<64x4xf32>, vector<4x4xf32>, vector<64x4xf32> -> vector<64x4xf32>
    %131 = arith.addf %124, %130 : vector<64x4xf32>
    %c0_176 = arith.constant 0 : index
    %c1_177 = arith.constant 1 : index
    %c1_178 = arith.constant 1 : index
    %c0_179 = arith.constant 0 : index
    %132 = vector.load %arg9[%c0_176, %c1_177, %c1_178, %c0_179] : memref<4x9x9x4xf32, #tpu.memory_space<vmem>>, vector<1x8x8x4xf32>
    %133 = vector.shape_cast %132 : vector<1x8x8x4xf32> to vector<8x8x4xf32>
    %134 = vector.shape_cast %133 : vector<8x8x4xf32> to vector<64x4xf32>
    %c2_180 = arith.constant 2 : index
    %c2_181 = arith.constant 2 : index
    %c0_182 = arith.constant 0 : index
    %c0_183 = arith.constant 0 : index
    %135 = vector.load %arg2[%c2_180, %c2_181, %c0_182, %c0_183] : memref<3x3x4x4xf32, #tpu.memory_space<vmem>>, vector<1x1x4x4xf32>
    %136 = vector.shape_cast %135 : vector<1x1x4x4xf32> to vector<4x4xf32>
    %cst_184 = arith.constant dense<0.000000e+00> : vector<64x4xf32>
    %137 = tpu.matmul %134, %136, %cst_184 {dimension_numbers = #tpu.dot_dimension_numbers<[1], [0], [0], [1], [0, 0, 1, 1], [], []>} : vector<64x4xf32>, vector<4x4xf32>, vector<64x4xf32> -> vector<64x4xf32>
    %138 = arith.addf %131, %137 : vector<64x4xf32>
    %cst_185 = arith.constant 0.000000e+00 : f32
    %139 = vector.broadcast %cst_185 : f32 to vector<64x4xf32>
    %140 = arith.maximumf %138, %139 : vector<64x4xf32>
    %141 = vector.shape_cast %140 : vector<64x4xf32> to vector<8x8x4xf32>
    %c0_186 = arith.constant 0 : index
    %c1_187 = arith.constant 1 : index
    %c1_188 = arith.constant 1 : index
    %c0_189 = arith.constant 0 : index
    %142 = vector.load %arg10[%c0_186, %c1_187, %c1_188, %c0_189] : memref<4x9x9x4xf32, #tpu.memory_space<vmem>>, vector<1x8x8x4xf32>
    %143 = vector.shape_cast %142 : vector<1x8x8x4xf32> to vector<8x8x4xf32>
    %144 = vector.shape_cast %141 : vector<8x8x4xf32> to vector<1x8x8x4xf32>
    tpu.vector_store %arg10[%c0_186, %c1_187, %c1_188, %c0_189], %144 {strides = array<i32>} : memref<4x9x9x4xf32, #tpu.memory_space<vmem>>, vector<1x8x8x4xf32>,
    %c0_190 = arith.constant 0 : index
    %c0_191 = arith.constant 0 : index
    %145 = vector.load %arg3[%c0_190, %c0_191] : memref<1x4xf32, #tpu.memory_space<vmem>>, vector<1x4xf32>
    %146 = vector.shape_cast %145 : vector<1x4xf32> to vector<1x4xf32>
    %147 = vector.broadcast %146 : vector<1x4xf32> to vector<64x4xf32>
    %c1_192 = arith.constant 1 : index
    %c0_193 = arith.constant 0 : index
    %c0_194 = arith.constant 0 : index
    %c0_195 = arith.constant 0 : index
    %148 = vector.load %arg9[%c1_192, %c0_193, %c0_194, %c0_195] : memref<4x9x9x4xf32, #tpu.memory_space<vmem>>, vector<1x8x8x4xf32>
    %149 = vector.shape_cast %148 : vector<1x8x8x4xf32> to vector<8x8x4xf32>
    %150 = vector.shape_cast %149 : vector<8x8x4xf32> to vector<64x4xf32>
    %c0_196 = arith.constant 0 : index
    %c0_197 = arith.constant 0 : index
    %c0_198 = arith.constant 0 : index
    %c0_199 = arith.constant 0 : index
    %151 = vector.load %arg2[%c0_196, %c0_197, %c0_198, %c0_199] : memref<3x3x4x4xf32, #tpu.memory_space<vmem>>, vector<1x1x4x4xf32>
    %152 = vector.shape_cast %151 : vector<1x1x4x4xf32> to vector<4x4xf32>
    %cst_200 = arith.constant dense<0.000000e+00> : vector<64x4xf32>
    %153 = tpu.matmul %150, %152, %cst_200 {dimension_numbers = #tpu.dot_dimension_numbers<[1], [0], [0], [1], [0, 0, 1, 1], [], []>} : vector<64x4xf32>, vector<4x4xf32>, vector<64x4xf32> -> vector<64x4xf32>
    %154 = arith.addf %147, %153 : vector<64x4xf32>
    %c0_201 = arith.constant 0 : index
    %c0_202 = arith.constant 0 : index
    %c1_203 = arith.constant 1 : index
    %c0_204 = arith.constant 0 : index
    %155 = vector.load %arg9[%c0_201, %c0_202, %c1_203, %c0_204] : memref<4x9x9x4xf32, #tpu.memory_space<vmem>>, vector<1x8x8x4xf32>
    %156 = vector.shape_cast %155 : vector<1x8x8x4xf32> to vector<8x8x4xf32>
    %157 = vector.shape_cast %156 : vector<8x8x4xf32> to vector<64x4xf32>
    %c0_205 = arith.constant 0 : index
    %c1_206 = arith.constant 1 : index
    %c0_207 = arith.constant 0 : index
    %c0_208 = arith.constant 0 : index
    %158 = vector.load %arg2[%c0_205, %c1_206, %c0_207, %c0_208] : memref<3x3x4x4xf32, #tpu.memory_space<vmem>>, vector<1x1x4x4xf32>
    %159 = vector.shape_cast %158 : vector<1x1x4x4xf32> to vector<4x4xf32>
    %cst_209 = arith.constant dense<0.000000e+00> : vector<64x4xf32>
    %160 = tpu.matmul %157, %159, %cst_209 {dimension_numbers = #tpu.dot_dimension_numbers<[1], [0], [0], [1], [0, 0, 1, 1], [], []>} : vector<64x4xf32>, vector<4x4xf32>, vector<64x4xf32> -> vector<64x4xf32>
    %161 = arith.addf %154, %160 : vector<64x4xf32>
    %c1_210 = arith.constant 1 : index
    %c0_211 = arith.constant 0 : index
    %c1_212 = arith.constant 1 : index
    %c0_213 = arith.constant 0 : index
    %162 = vector.load %arg9[%c1_210, %c0_211, %c1_212, %c0_213] : memref<4x9x9x4xf32, #tpu.memory_space<vmem>>, vector<1x8x8x4xf32>
    %163 = vector.shape_cast %162 : vector<1x8x8x4xf32> to vector<8x8x4xf32>
    %164 = vector.shape_cast %163 : vector<8x8x4xf32> to vector<64x4xf32>
    %c0_214 = arith.constant 0 : index
    %c2_215 = arith.constant 2 : index
    %c0_216 = arith.constant 0 : index
    %c0_217 = arith.constant 0 : index
    %165 = vector.load %arg2[%c0_214, %c2_215, %c0_216, %c0_217] : memref<3x3x4x4xf32, #tpu.memory_space<vmem>>, vector<1x1x4x4xf32>
    %166 = vector.shape_cast %165 : vector<1x1x4x4xf32> to vector<4x4xf32>
    %cst_218 = arith.constant dense<0.000000e+00> : vector<64x4xf32>
    %167 = tpu.matmul %164, %166, %cst_218 {dimension_numbers = #tpu.dot_dimension_numbers<[1], [0], [0], [1], [0, 0, 1, 1], [], []>} : vector<64x4xf32>, vector<4x4xf32>, vector<64x4xf32> -> vector<64x4xf32>
    %168 = arith.addf %161, %167 : vector<64x4xf32>
    %c3_219 = arith.constant 3 : index
    %c0_220 = arith.constant 0 : index
    %c0_221 = arith.constant 0 : index
    %c0_222 = arith.constant 0 : index
    %169 = vector.load %arg9[%c3_219, %c0_220, %c0_221, %c0_222] : memref<4x9x9x4xf32, #tpu.memory_space<vmem>>, vector<1x8x8x4xf32>
    %170 = vector.shape_cast %169 : vector<1x8x8x4xf32> to vector<8x8x4xf32>
    %171 = vector.shape_cast %170 : vector<8x8x4xf32> to vector<64x4xf32>
    %c1_223 = arith.constant 1 : index
    %c0_224 = arith.constant 0 : index
    %c0_225 = arith.constant 0 : index
    %c0_226 = arith.constant 0 : index
    %172 = vector.load %arg2[%c1_223, %c0_224, %c0_225, %c0_226] : memref<3x3x4x4xf32, #tpu.memory_space<vmem>>, vector<1x1x4x4xf32>
    %173 = vector.shape_cast %172 : vector<1x1x4x4xf32> to vector<4x4xf32>
    %cst_227 = arith.constant dense<0.000000e+00> : vector<64x4xf32>
    %174 = tpu.matmul %171, %173, %cst_227 {dimension_numbers = #tpu.dot_dimension_numbers<[1], [0], [0], [1], [0, 0, 1, 1], [], []>} : vector<64x4xf32>, vector<4x4xf32>, vector<64x4xf32> -> vector<64x4xf32>
    %175 = arith.addf %168, %174 : vector<64x4xf32>
    %c2_228 = arith.constant 2 : index
    %c0_229 = arith.constant 0 : index
    %c1_230 = arith.constant 1 : index
    %c0_231 = arith.constant 0 : index
    %176 = vector.load %arg9[%c2_228, %c0_229, %c1_230, %c0_231] : memref<4x9x9x4xf32, #tpu.memory_space<vmem>>, vector<1x8x8x4xf32>
    %177 = vector.shape_cast %176 : vector<1x8x8x4xf32> to vector<8x8x4xf32>
    %178 = vector.shape_cast %177 : vector<8x8x4xf32> to vector<64x4xf32>
    %c1_232 = arith.constant 1 : index
    %c1_233 = arith.constant 1 : index
    %c0_234 = arith.constant 0 : index
    %c0_235 = arith.constant 0 : index
    %179 = vector.load %arg2[%c1_232, %c1_233, %c0_234, %c0_235] : memref<3x3x4x4xf32, #tpu.memory_space<vmem>>, vector<1x1x4x4xf32>
    %180 = vector.shape_cast %179 : vector<1x1x4x4xf32> to vector<4x4xf32>
    %cst_236 = arith.constant dense<0.000000e+00> : vector<64x4xf32>
    %181 = tpu.matmul %178, %180, %cst_236 {dimension_numbers = #tpu.dot_dimension_numbers<[1], [0], [0], [1], [0, 0, 1, 1], [], []>} : vector<64x4xf32>, vector<4x4xf32>, vector<64x4xf32> -> vector<64x4xf32>
    %182 = arith.addf %175, %181 : vector<64x4xf32>
    %c3_237 = arith.constant 3 : index
    %c0_238 = arith.constant 0 : index
    %c1_239 = arith.constant 1 : index
    %c0_240 = arith.constant 0 : index
    %183 = vector.load %arg9[%c3_237, %c0_238, %c1_239, %c0_240] : memref<4x9x9x4xf32, #tpu.memory_space<vmem>>, vector<1x8x8x4xf32>
    %184 = vector.shape_cast %183 : vector<1x8x8x4xf32> to vector<8x8x4xf32>
    %185 = vector.shape_cast %184 : vector<8x8x4xf32> to vector<64x4xf32>
    %c1_241 = arith.constant 1 : index
    %c2_242 = arith.constant 2 : index
    %c0_243 = arith.constant 0 : index
    %c0_244 = arith.constant 0 : index
    %186 = vector.load %arg2[%c1_241, %c2_242, %c0_243, %c0_244] : memref<3x3x4x4xf32, #tpu.memory_space<vmem>>, vector<1x1x4x4xf32>
    %187 = vector.shape_cast %186 : vector<1x1x4x4xf32> to vector<4x4xf32>
    %cst_245 = arith.constant dense<0.000000e+00> : vector<64x4xf32>
    %188 = tpu.matmul %185, %187, %cst_245 {dimension_numbers = #tpu.dot_dimension_numbers<[1], [0], [0], [1], [0, 0, 1, 1], [], []>} : vector<64x4xf32>, vector<4x4xf32>, vector<64x4xf32> -> vector<64x4xf32>
    %189 = arith.addf %182, %188 : vector<64x4xf32>
    %c1_246 = arith.constant 1 : index
    %c1_247 = arith.constant 1 : index
    %c0_248 = arith.constant 0 : index
    %c0_249 = arith.constant 0 : index
    %190 = vector.load %arg9[%c1_246, %c1_247, %c0_248, %c0_249] : memref<4x9x9x4xf32, #tpu.memory_space<vmem>>, vector<1x8x8x4xf32>
    %191 = vector.shape_cast %190 : vector<1x8x8x4xf32> to vector<8x8x4xf32>
    %192 = vector.shape_cast %191 : vector<8x8x4xf32> to vector<64x4xf32>
    %c2_250 = arith.constant 2 : index
    %c0_251 = arith.constant 0 : index
    %c0_252 = arith.constant 0 : index
    %c0_253 = arith.constant 0 : index
    %193 = vector.load %arg2[%c2_250, %c0_251, %c0_252, %c0_253] : memref<3x3x4x4xf32, #tpu.memory_space<vmem>>, vector<1x1x4x4xf32>
    %194 = vector.shape_cast %193 : vector<1x1x4x4xf32> to vector<4x4xf32>
    %cst_254 = arith.constant dense<0.000000e+00> : vector<64x4xf32>
    %195 = tpu.matmul %192, %194, %cst_254 {dimension_numbers = #tpu.dot_dimension_numbers<[1], [0], [0], [1], [0, 0, 1, 1], [], []>} : vector<64x4xf32>, vector<4x4xf32>, vector<64x4xf32> -> vector<64x4xf32>
    %196 = arith.addf %189, %195 : vector<64x4xf32>
    %c0_255 = arith.constant 0 : index
    %c1_256 = arith.constant 1 : index
    %c1_257 = arith.constant 1 : index
    %c0_258 = arith.constant 0 : index
    %197 = vector.load %arg9[%c0_255, %c1_256, %c1_257, %c0_258] : memref<4x9x9x4xf32, #tpu.memory_space<vmem>>, vector<1x8x8x4xf32>
    %198 = vector.shape_cast %197 : vector<1x8x8x4xf32> to vector<8x8x4xf32>
    %199 = vector.shape_cast %198 : vector<8x8x4xf32> to vector<64x4xf32>
    %c2_259 = arith.constant 2 : index
    %c1_260 = arith.constant 1 : index
    %c0_261 = arith.constant 0 : index
    %c0_262 = arith.constant 0 : index
    %200 = vector.load %arg2[%c2_259, %c1_260, %c0_261, %c0_262] : memref<3x3x4x4xf32, #tpu.memory_space<vmem>>, vector<1x1x4x4xf32>
    %201 = vector.shape_cast %200 : vector<1x1x4x4xf32> to vector<4x4xf32>
    %cst_263 = arith.constant dense<0.000000e+00> : vector<64x4xf32>
    %202 = tpu.matmul %199, %201, %cst_263 {dimension_numbers = #tpu.dot_dimension_numbers<[1], [0], [0], [1], [0, 0, 1, 1], [], []>} : vector<64x4xf32>, vector<4x4xf32>, vector<64x4xf32> -> vector<64x4xf32>
    %203 = arith.addf %196, %202 : vector<64x4xf32>
    %c1_264 = arith.constant 1 : index
    %c1_265 = arith.constant 1 : index
    %c1_266 = arith.constant 1 : index
    %c0_267 = arith.constant 0 : index
    %204 = vector.load %arg9[%c1_264, %c1_265, %c1_266, %c0_267] : memref<4x9x9x4xf32, #tpu.memory_space<vmem>>, vector<1x8x8x4xf32>
    %205 = vector.shape_cast %204 : vector<1x8x8x4xf32> to vector<8x8x4xf32>
    %206 = vector.shape_cast %205 : vector<8x8x4xf32> to vector<64x4xf32>
    %c2_268 = arith.constant 2 : index
    %c2_269 = arith.constant 2 : index
    %c0_270 = arith.constant 0 : index
    %c0_271 = arith.constant 0 : index
    %207 = vector.load %arg2[%c2_268, %c2_269, %c0_270, %c0_271] : memref<3x3x4x4xf32, #tpu.memory_space<vmem>>, vector<1x1x4x4xf32>
    %208 = vector.shape_cast %207 : vector<1x1x4x4xf32> to vector<4x4xf32>
    %cst_272 = arith.constant dense<0.000000e+00> : vector<64x4xf32>
    %209 = tpu.matmul %206, %208, %cst_272 {dimension_numbers = #tpu.dot_dimension_numbers<[1], [0], [0], [1], [0, 0, 1, 1], [], []>} : vector<64x4xf32>, vector<4x4xf32>, vector<64x4xf32> -> vector<64x4xf32>
    %210 = arith.addf %203, %209 : vector<64x4xf32>
    %cst_273 = arith.constant 0.000000e+00 : f32
    %211 = vector.broadcast %cst_273 : f32 to vector<64x4xf32>
    %212 = arith.maximumf %210, %211 : vector<64x4xf32>
    %213 = vector.shape_cast %212 : vector<64x4xf32> to vector<8x8x4xf32>
    %c1_274 = arith.constant 1 : index
    %c1_275 = arith.constant 1 : index
    %c1_276 = arith.constant 1 : index
    %c0_277 = arith.constant 0 : index
    %214 = vector.load %arg10[%c1_274, %c1_275, %c1_276, %c0_277] : memref<4x9x9x4xf32, #tpu.memory_space<vmem>>, vector<1x8x8x4xf32>
    %215 = vector.shape_cast %214 : vector<1x8x8x4xf32> to vector<8x8x4xf32>
    %216 = vector.shape_cast %213 : vector<8x8x4xf32> to vector<1x8x8x4xf32>
    tpu.vector_store %arg10[%c1_274, %c1_275, %c1_276, %c0_277], %216 {strides = array<i32>} : memref<4x9x9x4xf32, #tpu.memory_space<vmem>>, vector<1x8x8x4xf32>,
    %c0_278 = arith.constant 0 : index
    %c0_279 = arith.constant 0 : index
    %217 = vector.load %arg3[%c0_278, %c0_279] : memref<1x4xf32, #tpu.memory_space<vmem>>, vector<1x4xf32>
    %218 = vector.shape_cast %217 : vector<1x4xf32> to vector<1x4xf32>
    %219 = vector.broadcast %218 : vector<1x4xf32> to vector<64x4xf32>
    %c2_280 = arith.constant 2 : index
    %c0_281 = arith.constant 0 : index
    %c0_282 = arith.constant 0 : index
    %c0_283 = arith.constant 0 : index
    %220 = vector.load %arg9[%c2_280, %c0_281, %c0_282, %c0_283] : memref<4x9x9x4xf32, #tpu.memory_space<vmem>>, vector<1x8x8x4xf32>
    %221 = vector.shape_cast %220 : vector<1x8x8x4xf32> to vector<8x8x4xf32>
    %222 = vector.shape_cast %221 : vector<8x8x4xf32> to vector<64x4xf32>
    %c0_284 = arith.constant 0 : index
    %c0_285 = arith.constant 0 : index
    %c0_286 = arith.constant 0 : index
    %c0_287 = arith.constant 0 : index
    %223 = vector.load %arg2[%c0_284, %c0_285, %c0_286, %c0_287] : memref<3x3x4x4xf32, #tpu.memory_space<vmem>>, vector<1x1x4x4xf32>
    %224 = vector.shape_cast %223 : vector<1x1x4x4xf32> to vector<4x4xf32>
    %cst_288 = arith.constant dense<0.000000e+00> : vector<64x4xf32>
    %225 = tpu.matmul %222, %224, %cst_288 {dimension_numbers = #tpu.dot_dimension_numbers<[1], [0], [0], [1], [0, 0, 1, 1], [], []>} : vector<64x4xf32>, vector<4x4xf32>, vector<64x4xf32> -> vector<64x4xf32>
    %226 = arith.addf %219, %225 : vector<64x4xf32>
    %c3_289 = arith.constant 3 : index
    %c0_290 = arith.constant 0 : index
    %c0_291 = arith.constant 0 : index
    %c0_292 = arith.constant 0 : index
    %227 = vector.load %arg9[%c3_289, %c0_290, %c0_291, %c0_292] : memref<4x9x9x4xf32, #tpu.memory_space<vmem>>, vector<1x8x8x4xf32>
    %228 = vector.shape_cast %227 : vector<1x8x8x4xf32> to vector<8x8x4xf32>
    %229 = vector.shape_cast %228 : vector<8x8x4xf32> to vector<64x4xf32>
    %c0_293 = arith.constant 0 : index
    %c1_294 = arith.constant 1 : index
    %c0_295 = arith.constant 0 : index
    %c0_296 = arith.constant 0 : index
    %230 = vector.load %arg2[%c0_293, %c1_294, %c0_295, %c0_296] : memref<3x3x4x4xf32, #tpu.memory_space<vmem>>, vector<1x1x4x4xf32>
    %231 = vector.shape_cast %230 : vector<1x1x4x4xf32> to vector<4x4xf32>
    %cst_297 = arith.constant dense<0.000000e+00> : vector<64x4xf32>
    %232 = tpu.matmul %229, %231, %cst_297 {dimension_numbers = #tpu.dot_dimension_numbers<[1], [0], [0], [1], [0, 0, 1, 1], [], []>} : vector<64x4xf32>, vector<4x4xf32>, vector<64x4xf32> -> vector<64x4xf32>
    %233 = arith.addf %226, %232 : vector<64x4xf32>
    %c2_298 = arith.constant 2 : index
    %c0_299 = arith.constant 0 : index
    %c1_300 = arith.constant 1 : index
    %c0_301 = arith.constant 0 : index
    %234 = vector.load %arg9[%c2_298, %c0_299, %c1_300, %c0_301] : memref<4x9x9x4xf32, #tpu.memory_space<vmem>>, vector<1x8x8x4xf32>
    %235 = vector.shape_cast %234 : vector<1x8x8x4xf32> to vector<8x8x4xf32>
    %236 = vector.shape_cast %235 : vector<8x8x4xf32> to vector<64x4xf32>
    %c0_302 = arith.constant 0 : index
    %c2_303 = arith.constant 2 : index
    %c0_304 = arith.constant 0 : index
    %c0_305 = arith.constant 0 : index
    %237 = vector.load %arg2[%c0_302, %c2_303, %c0_304, %c0_305] : memref<3x3x4x4xf32, #tpu.memory_space<vmem>>, vector<1x1x4x4xf32>
    %238 = vector.shape_cast %237 : vector<1x1x4x4xf32> to vector<4x4xf32>
    %cst_306 = arith.constant dense<0.000000e+00> : vector<64x4xf32>
    %239 = tpu.matmul %236, %238, %cst_306 {dimension_numbers = #tpu.dot_dimension_numbers<[1], [0], [0], [1], [0, 0, 1, 1], [], []>} : vector<64x4xf32>, vector<4x4xf32>, vector<64x4xf32> -> vector<64x4xf32>
    %240 = arith.addf %233, %239 : vector<64x4xf32>
    %c0_307 = arith.constant 0 : index
    %c1_308 = arith.constant 1 : index
    %c0_309 = arith.constant 0 : index
    %c0_310 = arith.constant 0 : index
    %241 = vector.load %arg9[%c0_307, %c1_308, %c0_309, %c0_310] : memref<4x9x9x4xf32, #tpu.memory_space<vmem>>, vector<1x8x8x4xf32>
    %242 = vector.shape_cast %241 : vector<1x8x8x4xf32> to vector<8x8x4xf32>
    %243 = vector.shape_cast %242 : vector<8x8x4xf32> to vector<64x4xf32>
    %c1_311 = arith.constant 1 : index
    %c0_312 = arith.constant 0 : index
    %c0_313 = arith.constant 0 : index
    %c0_314 = arith.constant 0 : index
    %244 = vector.load %arg2[%c1_311, %c0_312, %c0_313, %c0_314] : memref<3x3x4x4xf32, #tpu.memory_space<vmem>>, vector<1x1x4x4xf32>
    %245 = vector.shape_cast %244 : vector<1x1x4x4xf32> to vector<4x4xf32>
    %cst_315 = arith.constant dense<0.000000e+00> : vector<64x4xf32>
    %246 = tpu.matmul %243, %245, %cst_315 {dimension_numbers = #tpu.dot_dimension_numbers<[1], [0], [0], [1], [0, 0, 1, 1], [], []>} : vector<64x4xf32>, vector<4x4xf32>, vector<64x4xf32> -> vector<64x4xf32>
    %247 = arith.addf %240, %246 : vector<64x4xf32>
    %c1_316 = arith.constant 1 : index
    %c1_317 = arith.constant 1 : index
    %c0_318 = arith.constant 0 : index
    %c0_319 = arith.constant 0 : index
    %248 = vector.load %arg9[%c1_316, %c1_317, %c0_318, %c0_319] : memref<4x9x9x4xf32, #tpu.memory_space<vmem>>, vector<1x8x8x4xf32>
    %249 = vector.shape_cast %248 : vector<1x8x8x4xf32> to vector<8x8x4xf32>
    %250 = vector.shape_cast %249 : vector<8x8x4xf32> to vector<64x4xf32>
    %c1_320 = arith.constant 1 : index
    %c1_321 = arith.constant 1 : index
    %c0_322 = arith.constant 0 : index
    %c0_323 = arith.constant 0 : index
    %251 = vector.load %arg2[%c1_320, %c1_321, %c0_322, %c0_323] : memref<3x3x4x4xf32, #tpu.memory_space<vmem>>, vector<1x1x4x4xf32>
    %252 = vector.shape_cast %251 : vector<1x1x4x4xf32> to vector<4x4xf32>
    %cst_324 = arith.constant dense<0.000000e+00> : vector<64x4xf32>
    %253 = tpu.matmul %250, %252, %cst_324 {dimension_numbers = #tpu.dot_dimension_numbers<[1], [0], [0], [1], [0, 0, 1, 1], [], []>} : vector<64x4xf32>, vector<4x4xf32>, vector<64x4xf32> -> vector<64x4xf32>
    %254 = arith.addf %247, %253 : vector<64x4xf32>
    %c0_325 = arith.constant 0 : index
    %c1_326 = arith.constant 1 : index
    %c1_327 = arith.constant 1 : index
    %c0_328 = arith.constant 0 : index
    %255 = vector.load %arg9[%c0_325, %c1_326, %c1_327, %c0_328] : memref<4x9x9x4xf32, #tpu.memory_space<vmem>>, vector<1x8x8x4xf32>
    %256 = vector.shape_cast %255 : vector<1x8x8x4xf32> to vector<8x8x4xf32>
    %257 = vector.shape_cast %256 : vector<8x8x4xf32> to vector<64x4xf32>
    %c1_329 = arith.constant 1 : index
    %c2_330 = arith.constant 2 : index
    %c0_331 = arith.constant 0 : index
    %c0_332 = arith.constant 0 : index
    %258 = vector.load %arg2[%c1_329, %c2_330, %c0_331, %c0_332] : memref<3x3x4x4xf32, #tpu.memory_space<vmem>>, vector<1x1x4x4xf32>
    %259 = vector.shape_cast %258 : vector<1x1x4x4xf32> to vector<4x4xf32>
    %cst_333 = arith.constant dense<0.000000e+00> : vector<64x4xf32>
    %260 = tpu.matmul %257, %259, %cst_333 {dimension_numbers = #tpu.dot_dimension_numbers<[1], [0], [0], [1], [0, 0, 1, 1], [], []>} : vector<64x4xf32>, vector<4x4xf32>, vector<64x4xf32> -> vector<64x4xf32>
    %261 = arith.addf %254, %260 : vector<64x4xf32>
    %c2_334 = arith.constant 2 : index
    %c1_335 = arith.constant 1 : index
    %c0_336 = arith.constant 0 : index
    %c0_337 = arith.constant 0 : index
    %262 = vector.load %arg9[%c2_334, %c1_335, %c0_336, %c0_337] : memref<4x9x9x4xf32, #tpu.memory_space<vmem>>, vector<1x8x8x4xf32>
    %263 = vector.shape_cast %262 : vector<1x8x8x4xf32> to vector<8x8x4xf32>
    %264 = vector.shape_cast %263 : vector<8x8x4xf32> to vector<64x4xf32>
    %c2_338 = arith.constant 2 : index
    %c0_339 = arith.constant 0 : index
    %c0_340 = arith.constant 0 : index
    %c0_341 = arith.constant 0 : index
    %265 = vector.load %arg2[%c2_338, %c0_339, %c0_340, %c0_341] : memref<3x3x4x4xf32, #tpu.memory_space<vmem>>, vector<1x1x4x4xf32>
    %266 = vector.shape_cast %265 : vector<1x1x4x4xf32> to vector<4x4xf32>
    %cst_342 = arith.constant dense<0.000000e+00> : vector<64x4xf32>
    %267 = tpu.matmul %264, %266, %cst_342 {dimension_numbers = #tpu.dot_dimension_numbers<[1], [0], [0], [1], [0, 0, 1, 1], [], []>} : vector<64x4xf32>, vector<4x4xf32>, vector<64x4xf32> -> vector<64x4xf32>
    %268 = arith.addf %261, %267 : vector<64x4xf32>
    %c3_343 = arith.constant 3 : index
    %c1_344 = arith.constant 1 : index
    %c0_345 = arith.constant 0 : index
    %c0_346 = arith.constant 0 : index
    %269 = vector.load %arg9[%c3_343, %c1_344, %c0_345, %c0_346] : memref<4x9x9x4xf32, #tpu.memory_space<vmem>>, vector<1x8x8x4xf32>
    %270 = vector.shape_cast %269 : vector<1x8x8x4xf32> to vector<8x8x4xf32>
    %271 = vector.shape_cast %270 : vector<8x8x4xf32> to vector<64x4xf32>
    %c2_347 = arith.constant 2 : index
    %c1_348 = arith.constant 1 : index
    %c0_349 = arith.constant 0 : index
    %c0_350 = arith.constant 0 : index
    %272 = vector.load %arg2[%c2_347, %c1_348, %c0_349, %c0_350] : memref<3x3x4x4xf32, #tpu.memory_space<vmem>>, vector<1x1x4x4xf32>
    %273 = vector.shape_cast %272 : vector<1x1x4x4xf32> to vector<4x4xf32>
    %cst_351 = arith.constant dense<0.000000e+00> : vector<64x4xf32>
    %274 = tpu.matmul %271, %273, %cst_351 {dimension_numbers = #tpu.dot_dimension_numbers<[1], [0], [0], [1], [0, 0, 1, 1], [], []>} : vector<64x4xf32>, vector<4x4xf32>, vector<64x4xf32> -> vector<64x4xf32>
    %275 = arith.addf %268, %274 : vector<64x4xf32>
    %c2_352 = arith.constant 2 : index
    %c1_353 = arith.constant 1 : index
    %c1_354 = arith.constant 1 : index
    %c0_355 = arith.constant 0 : index
    %276 = vector.load %arg9[%c2_352, %c1_353, %c1_354, %c0_355] : memref<4x9x9x4xf32, #tpu.memory_space<vmem>>, vector<1x8x8x4xf32>
    %277 = vector.shape_cast %276 : vector<1x8x8x4xf32> to vector<8x8x4xf32>
    %278 = vector.shape_cast %277 : vector<8x8x4xf32> to vector<64x4xf32>
    %c2_356 = arith.constant 2 : index
    %c2_357 = arith.constant 2 : index
    %c0_358 = arith.constant 0 : index
    %c0_359 = arith.constant 0 : index
    %279 = vector.load %arg2[%c2_356, %c2_357, %c0_358, %c0_359] : memref<3x3x4x4xf32, #tpu.memory_space<vmem>>, vector<1x1x4x4xf32>
    %280 = vector.shape_cast %279 : vector<1x1x4x4xf32> to vector<4x4xf32>
    %cst_360 = arith.constant dense<0.000000e+00> : vector<64x4xf32>
    %281 = tpu.matmul %278, %280, %cst_360 {dimension_numbers = #tpu.dot_dimension_numbers<[1], [0], [0], [1], [0, 0, 1, 1], [], []>} : vector<64x4xf32>, vector<4x4xf32>, vector<64x4xf32> -> vector<64x4xf32>
    %282 = arith.addf %275, %281 : vector<64x4xf32>
    %cst_361 = arith.constant 0.000000e+00 : f32
    %283 = vector.broadcast %cst_361 : f32 to vector<64x4xf32>
    %284 = arith.maximumf %282, %283 : vector<64x4xf32>
    %285 = vector.shape_cast %284 : vector<64x4xf32> to vector<8x8x4xf32>
    %c2_362 = arith.constant 2 : index
    %c1_363 = arith.constant 1 : index
    %c1_364 = arith.constant 1 : index
    %c0_365 = arith.constant 0 : index
    %286 = vector.load %arg10[%c2_362, %c1_363, %c1_364, %c0_365] : memref<4x9x9x4xf32, #tpu.memory_space<vmem>>, vector<1x8x8x4xf32>
    %287 = vector.shape_cast %286 : vector<1x8x8x4xf32> to vector<8x8x4xf32>
    %288 = vector.shape_cast %285 : vector<8x8x4xf32> to vector<1x8x8x4xf32>
    tpu.vector_store %arg10[%c2_362, %c1_363, %c1_364, %c0_365], %288 {strides = array<i32>} : memref<4x9x9x4xf32, #tpu.memory_space<vmem>>, vector<1x8x8x4xf32>,
    %c0_366 = arith.constant 0 : index
    %c0_367 = arith.constant 0 : index
    %289 = vector.load %arg3[%c0_366, %c0_367] : memref<1x4xf32, #tpu.memory_space<vmem>>, vector<1x4xf32>
    %290 = vector.shape_cast %289 : vector<1x4xf32> to vector<1x4xf32>
    %291 = vector.broadcast %290 : vector<1x4xf32> to vector<64x4xf32>
    %c3_368 = arith.constant 3 : index
    %c0_369 = arith.constant 0 : index
    %c0_370 = arith.constant 0 : index
    %c0_371 = arith.constant 0 : index
    %292 = vector.load %arg9[%c3_368, %c0_369, %c0_370, %c0_371] : memref<4x9x9x4xf32, #tpu.memory_space<vmem>>, vector<1x8x8x4xf32>
    %293 = vector.shape_cast %292 : vector<1x8x8x4xf32> to vector<8x8x4xf32>
    %294 = vector.shape_cast %293 : vector<8x8x4xf32> to vector<64x4xf32>
    %c0_372 = arith.constant 0 : index
    %c0_373 = arith.constant 0 : index
    %c0_374 = arith.constant 0 : index
    %c0_375 = arith.constant 0 : index
    %295 = vector.load %arg2[%c0_372, %c0_373, %c0_374, %c0_375] : memref<3x3x4x4xf32, #tpu.memory_space<vmem>>, vector<1x1x4x4xf32>
    %296 = vector.shape_cast %295 : vector<1x1x4x4xf32> to vector<4x4xf32>
    %cst_376 = arith.constant dense<0.000000e+00> : vector<64x4xf32>
    %297 = tpu.matmul %294, %296, %cst_376 {dimension_numbers = #tpu.dot_dimension_numbers<[1], [0], [0], [1], [0, 0, 1, 1], [], []>} : vector<64x4xf32>, vector<4x4xf32>, vector<64x4xf32> -> vector<64x4xf32>
    %298 = arith.addf %291, %297 : vector<64x4xf32>
    %c2_377 = arith.constant 2 : index
    %c0_378 = arith.constant 0 : index
    %c1_379 = arith.constant 1 : index
    %c0_380 = arith.constant 0 : index
    %299 = vector.load %arg9[%c2_377, %c0_378, %c1_379, %c0_380] : memref<4x9x9x4xf32, #tpu.memory_space<vmem>>, vector<1x8x8x4xf32>
    %300 = vector.shape_cast %299 : vector<1x8x8x4xf32> to vector<8x8x4xf32>
    %301 = vector.shape_cast %300 : vector<8x8x4xf32> to vector<64x4xf32>
    %c0_381 = arith.constant 0 : index
    %c1_382 = arith.constant 1 : index
    %c0_383 = arith.constant 0 : index
    %c0_384 = arith.constant 0 : index
    %302 = vector.load %arg2[%c0_381, %c1_382, %c0_383, %c0_384] : memref<3x3x4x4xf32, #tpu.memory_space<vmem>>, vector<1x1x4x4xf32>
    %303 = vector.shape_cast %302 : vector<1x1x4x4xf32> to vector<4x4xf32>
    %cst_385 = arith.constant dense<0.000000e+00> : vector<64x4xf32>
    %304 = tpu.matmul %301, %303, %cst_385 {dimension_numbers = #tpu.dot_dimension_numbers<[1], [0], [0], [1], [0, 0, 1, 1], [], []>} : vector<64x4xf32>, vector<4x4xf32>, vector<64x4xf32> -> vector<64x4xf32>
    %305 = arith.addf %298, %304 : vector<64x4xf32>
    %c3_386 = arith.constant 3 : index
    %c0_387 = arith.constant 0 : index
    %c1_388 = arith.constant 1 : index
    %c0_389 = arith.constant 0 : index
    %306 = vector.load %arg9[%c3_386, %c0_387, %c1_388, %c0_389] : memref<4x9x9x4xf32, #tpu.memory_space<vmem>>, vector<1x8x8x4xf32>
    %307 = vector.shape_cast %306 : vector<1x8x8x4xf32> to vector<8x8x4xf32>
    %308 = vector.shape_cast %307 : vector<8x8x4xf32> to vector<64x4xf32>
    %c0_390 = arith.constant 0 : index
    %c2_391 = arith.constant 2 : index
    %c0_392 = arith.constant 0 : index
    %c0_393 = arith.constant 0 : index
    %309 = vector.load %arg2[%c0_390, %c2_391, %c0_392, %c0_393] : memref<3x3x4x4xf32, #tpu.memory_space<vmem>>, vector<1x1x4x4xf32>
    %310 = vector.shape_cast %309 : vector<1x1x4x4xf32> to vector<4x4xf32>
    %cst_394 = arith.constant dense<0.000000e+00> : vector<64x4xf32>
    %311 = tpu.matmul %308, %310, %cst_394 {dimension_numbers = #tpu.dot_dimension_numbers<[1], [0], [0], [1], [0, 0, 1, 1], [], []>} : vector<64x4xf32>, vector<4x4xf32>, vector<64x4xf32> -> vector<64x4xf32>
    %312 = arith.addf %305, %311 : vector<64x4xf32>
    %c1_395 = arith.constant 1 : index
    %c1_396 = arith.constant 1 : index
    %c0_397 = arith.constant 0 : index
    %c0_398 = arith.constant 0 : index
    %313 = vector.load %arg9[%c1_395, %c1_396, %c0_397, %c0_398] : memref<4x9x9x4xf32, #tpu.memory_space<vmem>>, vector<1x8x8x4xf32>
    %314 = vector.shape_cast %313 : vector<1x8x8x4xf32> to vector<8x8x4xf32>
    %315 = vector.shape_cast %314 : vector<8x8x4xf32> to vector<64x4xf32>
    %c1_399 = arith.constant 1 : index
    %c0_400 = arith.constant 0 : index
    %c0_401 = arith.constant 0 : index
    %c0_402 = arith.constant 0 : index
    %316 = vector.load %arg2[%c1_399, %c0_400, %c0_401, %c0_402] : memref<3x3x4x4xf32, #tpu.memory_space<vmem>>, vector<1x1x4x4xf32>
    %317 = vector.shape_cast %316 : vector<1x1x4x4xf32> to vector<4x4xf32>
    %cst_403 = arith.constant dense<0.000000e+00> : vector<64x4xf32>
    %318 = tpu.matmul %315, %317, %cst_403 {dimension_numbers = #tpu.dot_dimension_numbers<[1], [0], [0], [1], [0, 0, 1, 1], [], []>} : vector<64x4xf32>, vector<4x4xf32>, vector<64x4xf32> -> vector<64x4xf32>
    %319 = arith.addf %312, %318 : vector<64x4xf32>
    %c0_404 = arith.constant 0 : index
    %c1_405 = arith.constant 1 : index
    %c1_406 = arith.constant 1 : index
    %c0_407 = arith.constant 0 : index
    %320 = vector.load %arg9[%c0_404, %c1_405, %c1_406, %c0_407] : memref<4x9x9x4xf32, #tpu.memory_space<vmem>>, vector<1x8x8x4xf32>
    %321 = vector.shape_cast %320 : vector<1x8x8x4xf32> to vector<8x8x4xf32>
    %322 = vector.shape_cast %321 : vector<8x8x4xf32> to vector<64x4xf32>
    %c1_408 = arith.constant 1 : index
    %c1_409 = arith.constant 1 : index
    %c0_410 = arith.constant 0 : index
    %c0_411 = arith.constant 0 : index
    %323 = vector.load %arg2[%c1_408, %c1_409, %c0_410, %c0_411] : memref<3x3x4x4xf32, #tpu.memory_space<vmem>>, vector<1x1x4x4xf32>
    %324 = vector.shape_cast %323 : vector<1x1x4x4xf32> to vector<4x4xf32>
    %cst_412 = arith.constant dense<0.000000e+00> : vector<64x4xf32>
    %325 = tpu.matmul %322, %324, %cst_412 {dimension_numbers = #tpu.dot_dimension_numbers<[1], [0], [0], [1], [0, 0, 1, 1], [], []>} : vector<64x4xf32>, vector<4x4xf32>, vector<64x4xf32> -> vector<64x4xf32>
    %326 = arith.addf %319, %325 : vector<64x4xf32>
    %c1_413 = arith.constant 1 : index
    %c1_414 = arith.constant 1 : index
    %c1_415 = arith.constant 1 : index
    %c0_416 = arith.constant 0 : index
    %327 = vector.load %arg9[%c1_413, %c1_414, %c1_415, %c0_416] : memref<4x9x9x4xf32, #tpu.memory_space<vmem>>, vector<1x8x8x4xf32>
    %328 = vector.shape_cast %327 : vector<1x8x8x4xf32> to vector<8x8x4xf32>
    %329 = vector.shape_cast %328 : vector<8x8x4xf32> to vector<64x4xf32>
    %c1_417 = arith.constant 1 : index
    %c2_418 = arith.constant 2 : index
    %c0_419 = arith.constant 0 : index
    %c0_420 = arith.constant 0 : index
    %330 = vector.load %arg2[%c1_417, %c2_418, %c0_419, %c0_420] : memref<3x3x4x4xf32, #tpu.memory_space<vmem>>, vector<1x1x4x4xf32>
    %331 = vector.shape_cast %330 : vector<1x1x4x4xf32> to vector<4x4xf32>
    %cst_421 = arith.constant dense<0.000000e+00> : vector<64x4xf32>
    %332 = tpu.matmul %329, %331, %cst_421 {dimension_numbers = #tpu.dot_dimension_numbers<[1], [0], [0], [1], [0, 0, 1, 1], [], []>} : vector<64x4xf32>, vector<4x4xf32>, vector<64x4xf32> -> vector<64x4xf32>
    %333 = arith.addf %326, %332 : vector<64x4xf32>
    %c3_422 = arith.constant 3 : index
    %c1_423 = arith.constant 1 : index
    %c0_424 = arith.constant 0 : index
    %c0_425 = arith.constant 0 : index
    %334 = vector.load %arg9[%c3_422, %c1_423, %c0_424, %c0_425] : memref<4x9x9x4xf32, #tpu.memory_space<vmem>>, vector<1x8x8x4xf32>
    %335 = vector.shape_cast %334 : vector<1x8x8x4xf32> to vector<8x8x4xf32>
    %336 = vector.shape_cast %335 : vector<8x8x4xf32> to vector<64x4xf32>
    %c2_426 = arith.constant 2 : index
    %c0_427 = arith.constant 0 : index
    %c0_428 = arith.constant 0 : index
    %c0_429 = arith.constant 0 : index
    %337 = vector.load %arg2[%c2_426, %c0_427, %c0_428, %c0_429] : memref<3x3x4x4xf32, #tpu.memory_space<vmem>>, vector<1x1x4x4xf32>
    %338 = vector.shape_cast %337 : vector<1x1x4x4xf32> to vector<4x4xf32>
    %cst_430 = arith.constant dense<0.000000e+00> : vector<64x4xf32>
    %339 = tpu.matmul %336, %338, %cst_430 {dimension_numbers = #tpu.dot_dimension_numbers<[1], [0], [0], [1], [0, 0, 1, 1], [], []>} : vector<64x4xf32>, vector<4x4xf32>, vector<64x4xf32> -> vector<64x4xf32>
    %340 = arith.addf %333, %339 : vector<64x4xf32>
    %c2_431 = arith.constant 2 : index
    %c1_432 = arith.constant 1 : index
    %c1_433 = arith.constant 1 : index
    %c0_434 = arith.constant 0 : index
    %341 = vector.load %arg9[%c2_431, %c1_432, %c1_433, %c0_434] : memref<4x9x9x4xf32, #tpu.memory_space<vmem>>, vector<1x8x8x4xf32>
    %342 = vector.shape_cast %341 : vector<1x8x8x4xf32> to vector<8x8x4xf32>
    %343 = vector.shape_cast %342 : vector<8x8x4xf32> to vector<64x4xf32>
    %c2_435 = arith.constant 2 : index
    %c1_436 = arith.constant 1 : index
    %c0_437 = arith.constant 0 : index
    %c0_438 = arith.constant 0 : index
    %344 = vector.load %arg2[%c2_435, %c1_436, %c0_437, %c0_438] : memref<3x3x4x4xf32, #tpu.memory_space<vmem>>, vector<1x1x4x4xf32>
    %345 = vector.shape_cast %344 : vector<1x1x4x4xf32> to vector<4x4xf32>
    %cst_439 = arith.constant dense<0.000000e+00> : vector<64x4xf32>
    %346 = tpu.matmul %343, %345, %cst_439 {dimension_numbers = #tpu.dot_dimension_numbers<[1], [0], [0], [1], [0, 0, 1, 1], [], []>} : vector<64x4xf32>, vector<4x4xf32>, vector<64x4xf32> -> vector<64x4xf32>
    %347 = arith.addf %340, %346 : vector<64x4xf32>
    %c3_440 = arith.constant 3 : index
    %c1_441 = arith.constant 1 : index
    %c1_442 = arith.constant 1 : index
    %c0_443 = arith.constant 0 : index
    %348 = vector.load %arg9[%c3_440, %c1_441, %c1_442, %c0_443] : memref<4x9x9x4xf32, #tpu.memory_space<vmem>>, vector<1x8x8x4xf32>
    %349 = vector.shape_cast %348 : vector<1x8x8x4xf32> to vector<8x8x4xf32>
    %350 = vector.shape_cast %349 : vector<8x8x4xf32> to vector<64x4xf32>
    %c2_444 = arith.constant 2 : index
    %c2_445 = arith.constant 2 : index
    %c0_446 = arith.constant 0 : index
    %c0_447 = arith.constant 0 : index
    %351 = vector.load %arg2[%c2_444, %c2_445, %c0_446, %c0_447] : memref<3x3x4x4xf32, #tpu.memory_space<vmem>>, vector<1x1x4x4xf32>
    %352 = vector.shape_cast %351 : vector<1x1x4x4xf32> to vector<4x4xf32>
    %cst_448 = arith.constant dense<0.000000e+00> : vector<64x4xf32>
    %353 = tpu.matmul %350, %352, %cst_448 {dimension_numbers = #tpu.dot_dimension_numbers<[1], [0], [0], [1], [0, 0, 1, 1], [], []>} : vector<64x4xf32>, vector<4x4xf32>, vector<64x4xf32> -> vector<64x4xf32>
    %354 = arith.addf %347, %353 : vector<64x4xf32>
    %cst_449 = arith.constant 0.000000e+00 : f32
    %355 = vector.broadcast %cst_449 : f32 to vector<64x4xf32>
    %356 = arith.maximumf %354, %355 : vector<64x4xf32>
    %357 = vector.shape_cast %356 : vector<64x4xf32> to vector<8x8x4xf32>
    %c3_450 = arith.constant 3 : index
    %c1_451 = arith.constant 1 : index
    %c1_452 = arith.constant 1 : index
    %c0_453 = arith.constant 0 : index
    %358 = vector.load %arg10[%c3_450, %c1_451, %c1_452, %c0_453] : memref<4x9x9x4xf32, #tpu.memory_space<vmem>>, vector<1x8x8x4xf32>
    %359 = vector.shape_cast %358 : vector<1x8x8x4xf32> to vector<8x8x4xf32>
    %360 = vector.shape_cast %357 : vector<8x8x4xf32> to vector<1x8x8x4xf32>
    tpu.vector_store %arg10[%c3_450, %c1_451, %c1_452, %c0_453], %360 {strides = array<i32>} : memref<4x9x9x4xf32, #tpu.memory_space<vmem>>, vector<1x8x8x4xf32>,
    %c0_454 = arith.constant 0 : index
    %c0_455 = arith.constant 0 : index
    %361 = vector.load %arg5[%c0_454, %c0_455] : memref<1x8xf32, #tpu.memory_space<vmem>>, vector<1x8xf32>
    %362 = vector.shape_cast %361 : vector<1x8xf32> to vector<1x8xf32>
    %363 = vector.broadcast %362 : vector<1x8xf32> to vector<64x8xf32>
    %364 = arith.addf %70, %363 : vector<64x8xf32>
    %c3_456 = arith.constant 3 : index
    %c0_457 = arith.constant 0 : index
    %c0_458 = arith.constant 0 : index
    %c0_459 = arith.constant 0 : index
    %365 = vector.load %arg10[%c3_456, %c0_457, %c0_458, %c0_459] : memref<4x9x9x4xf32, #tpu.memory_space<vmem>>, vector<1x8x8x4xf32>
    %366 = vector.shape_cast %365 : vector<1x8x8x4xf32> to vector<8x8x4xf32>
    %367 = vector.shape_cast %366 : vector<8x8x4xf32> to vector<64x4xf32>
    %c0_460 = arith.constant 0 : index
    %c0_461 = arith.constant 0 : index
    %c0_462 = arith.constant 0 : index
    %c0_463 = arith.constant 0 : index
    %368 = vector.load %arg4[%c0_460, %c0_461, %c0_462, %c0_463] : memref<3x3x4x8xf32, #tpu.memory_space<vmem>>, vector<1x1x4x8xf32>
    %369 = vector.shape_cast %368 : vector<1x1x4x8xf32> to vector<4x8xf32>
    %cst_464 = arith.constant dense<0.000000e+00> : vector<64x8xf32>
    %370 = tpu.matmul %367, %369, %cst_464 {dimension_numbers = #tpu.dot_dimension_numbers<[1], [0], [0], [1], [0, 0, 1, 1], [], []>} : vector<64x4xf32>, vector<4x8xf32>, vector<64x8xf32> -> vector<64x8xf32>
    %371 = arith.addf %364, %370 : vector<64x8xf32>
    %c2_465 = arith.constant 2 : index
    %c0_466 = arith.constant 0 : index
    %c1_467 = arith.constant 1 : index
    %c0_468 = arith.constant 0 : index
    %372 = vector.load %arg10[%c2_465, %c0_466, %c1_467, %c0_468] : memref<4x9x9x4xf32, #tpu.memory_space<vmem>>, vector<1x8x8x4xf32>
    %373 = vector.shape_cast %372 : vector<1x8x8x4xf32> to vector<8x8x4xf32>
    %374 = vector.shape_cast %373 : vector<8x8x4xf32> to vector<64x4xf32>
    %c0_469 = arith.constant 0 : index
    %c1_470 = arith.constant 1 : index
    %c0_471 = arith.constant 0 : index
    %c0_472 = arith.constant 0 : index
    %375 = vector.load %arg4[%c0_469, %c1_470, %c0_471, %c0_472] : memref<3x3x4x8xf32, #tpu.memory_space<vmem>>, vector<1x1x4x8xf32>
    %376 = vector.shape_cast %375 : vector<1x1x4x8xf32> to vector<4x8xf32>
    %cst_473 = arith.constant dense<0.000000e+00> : vector<64x8xf32>
    %377 = tpu.matmul %374, %376, %cst_473 {dimension_numbers = #tpu.dot_dimension_numbers<[1], [0], [0], [1], [0, 0, 1, 1], [], []>} : vector<64x4xf32>, vector<4x8xf32>, vector<64x8xf32> -> vector<64x8xf32>
    %378 = arith.addf %371, %377 : vector<64x8xf32>
    %c3_474 = arith.constant 3 : index
    %c0_475 = arith.constant 0 : index
    %c1_476 = arith.constant 1 : index
    %c0_477 = arith.constant 0 : index
    %379 = vector.load %arg10[%c3_474, %c0_475, %c1_476, %c0_477] : memref<4x9x9x4xf32, #tpu.memory_space<vmem>>, vector<1x8x8x4xf32>
    %380 = vector.shape_cast %379 : vector<1x8x8x4xf32> to vector<8x8x4xf32>
    %381 = vector.shape_cast %380 : vector<8x8x4xf32> to vector<64x4xf32>
    %c0_478 = arith.constant 0 : index
    %c2_479 = arith.constant 2 : index
    %c0_480 = arith.constant 0 : index
    %c0_481 = arith.constant 0 : index
    %382 = vector.load %arg4[%c0_478, %c2_479, %c0_480, %c0_481] : memref<3x3x4x8xf32, #tpu.memory_space<vmem>>, vector<1x1x4x8xf32>
    %383 = vector.shape_cast %382 : vector<1x1x4x8xf32> to vector<4x8xf32>
    %cst_482 = arith.constant dense<0.000000e+00> : vector<64x8xf32>
    %384 = tpu.matmul %381, %383, %cst_482 {dimension_numbers = #tpu.dot_dimension_numbers<[1], [0], [0], [1], [0, 0, 1, 1], [], []>} : vector<64x4xf32>, vector<4x8xf32>, vector<64x8xf32> -> vector<64x8xf32>
    %385 = arith.addf %378, %384 : vector<64x8xf32>
    %c1_483 = arith.constant 1 : index
    %c1_484 = arith.constant 1 : index
    %c0_485 = arith.constant 0 : index
    %c0_486 = arith.constant 0 : index
    %386 = vector.load %arg10[%c1_483, %c1_484, %c0_485, %c0_486] : memref<4x9x9x4xf32, #tpu.memory_space<vmem>>, vector<1x8x8x4xf32>
    %387 = vector.shape_cast %386 : vector<1x8x8x4xf32> to vector<8x8x4xf32>
    %388 = vector.shape_cast %387 : vector<8x8x4xf32> to vector<64x4xf32>
    %c1_487 = arith.constant 1 : index
    %c0_488 = arith.constant 0 : index
    %c0_489 = arith.constant 0 : index
    %c0_490 = arith.constant 0 : index
    %389 = vector.load %arg4[%c1_487, %c0_488, %c0_489, %c0_490] : memref<3x3x4x8xf32, #tpu.memory_space<vmem>>, vector<1x1x4x8xf32>
    %390 = vector.shape_cast %389 : vector<1x1x4x8xf32> to vector<4x8xf32>
    %cst_491 = arith.constant dense<0.000000e+00> : vector<64x8xf32>
    %391 = tpu.matmul %388, %390, %cst_491 {dimension_numbers = #tpu.dot_dimension_numbers<[1], [0], [0], [1], [0, 0, 1, 1], [], []>} : vector<64x4xf32>, vector<4x8xf32>, vector<64x8xf32> -> vector<64x8xf32>
    %392 = arith.addf %385, %391 : vector<64x8xf32>
    %c0_492 = arith.constant 0 : index
    %c1_493 = arith.constant 1 : index
    %c1_494 = arith.constant 1 : index
    %c0_495 = arith.constant 0 : index
    %393 = vector.load %arg10[%c0_492, %c1_493, %c1_494, %c0_495] : memref<4x9x9x4xf32, #tpu.memory_space<vmem>>, vector<1x8x8x4xf32>
    %394 = vector.shape_cast %393 : vector<1x8x8x4xf32> to vector<8x8x4xf32>
    %395 = vector.shape_cast %394 : vector<8x8x4xf32> to vector<64x4xf32>
    %c1_496 = arith.constant 1 : index
    %c1_497 = arith.constant 1 : index
    %c0_498 = arith.constant 0 : index
    %c0_499 = arith.constant 0 : index
    %396 = vector.load %arg4[%c1_496, %c1_497, %c0_498, %c0_499] : memref<3x3x4x8xf32, #tpu.memory_space<vmem>>, vector<1x1x4x8xf32>
    %397 = vector.shape_cast %396 : vector<1x1x4x8xf32> to vector<4x8xf32>
    %cst_500 = arith.constant dense<0.000000e+00> : vector<64x8xf32>
    %398 = tpu.matmul %395, %397, %cst_500 {dimension_numbers = #tpu.dot_dimension_numbers<[1], [0], [0], [1], [0, 0, 1, 1], [], []>} : vector<64x4xf32>, vector<4x8xf32>, vector<64x8xf32> -> vector<64x8xf32>
    %399 = arith.addf %392, %398 : vector<64x8xf32>
    %c1_501 = arith.constant 1 : index
    %c1_502 = arith.constant 1 : index
    %c1_503 = arith.constant 1 : index
    %c0_504 = arith.constant 0 : index
    %400 = vector.load %arg10[%c1_501, %c1_502, %c1_503, %c0_504] : memref<4x9x9x4xf32, #tpu.memory_space<vmem>>, vector<1x8x8x4xf32>
    %401 = vector.shape_cast %400 : vector<1x8x8x4xf32> to vector<8x8x4xf32>
    %402 = vector.shape_cast %401 : vector<8x8x4xf32> to vector<64x4xf32>
    %c1_505 = arith.constant 1 : index
    %c2_506 = arith.constant 2 : index
    %c0_507 = arith.constant 0 : index
    %c0_508 = arith.constant 0 : index
    %403 = vector.load %arg4[%c1_505, %c2_506, %c0_507, %c0_508] : memref<3x3x4x8xf32, #tpu.memory_space<vmem>>, vector<1x1x4x8xf32>
    %404 = vector.shape_cast %403 : vector<1x1x4x8xf32> to vector<4x8xf32>
    %cst_509 = arith.constant dense<0.000000e+00> : vector<64x8xf32>
    %405 = tpu.matmul %402, %404, %cst_509 {dimension_numbers = #tpu.dot_dimension_numbers<[1], [0], [0], [1], [0, 0, 1, 1], [], []>} : vector<64x4xf32>, vector<4x8xf32>, vector<64x8xf32> -> vector<64x8xf32>
    %406 = arith.addf %399, %405 : vector<64x8xf32>
    %c3_510 = arith.constant 3 : index
    %c1_511 = arith.constant 1 : index
    %c0_512 = arith.constant 0 : index
    %c0_513 = arith.constant 0 : index
    %407 = vector.load %arg10[%c3_510, %c1_511, %c0_512, %c0_513] : memref<4x9x9x4xf32, #tpu.memory_space<vmem>>, vector<1x8x8x4xf32>
    %408 = vector.shape_cast %407 : vector<1x8x8x4xf32> to vector<8x8x4xf32>
    %409 = vector.shape_cast %408 : vector<8x8x4xf32> to vector<64x4xf32>
    %c2_514 = arith.constant 2 : index
    %c0_515 = arith.constant 0 : index
    %c0_516 = arith.constant 0 : index
    %c0_517 = arith.constant 0 : index
    %410 = vector.load %arg4[%c2_514, %c0_515, %c0_516, %c0_517] : memref<3x3x4x8xf32, #tpu.memory_space<vmem>>, vector<1x1x4x8xf32>
    %411 = vector.shape_cast %410 : vector<1x1x4x8xf32> to vector<4x8xf32>
    %cst_518 = arith.constant dense<0.000000e+00> : vector<64x8xf32>
    %412 = tpu.matmul %409, %411, %cst_518 {dimension_numbers = #tpu.dot_dimension_numbers<[1], [0], [0], [1], [0, 0, 1, 1], [], []>} : vector<64x4xf32>, vector<4x8xf32>, vector<64x8xf32> -> vector<64x8xf32>
    %413 = arith.addf %406, %412 : vector<64x8xf32>
    %c2_519 = arith.constant 2 : index
    %c1_520 = arith.constant 1 : index
    %c1_521 = arith.constant 1 : index
    %c0_522 = arith.constant 0 : index
    %414 = vector.load %arg10[%c2_519, %c1_520, %c1_521, %c0_522] : memref<4x9x9x4xf32, #tpu.memory_space<vmem>>, vector<1x8x8x4xf32>
    %415 = vector.shape_cast %414 : vector<1x8x8x4xf32> to vector<8x8x4xf32>
    %416 = vector.shape_cast %415 : vector<8x8x4xf32> to vector<64x4xf32>
    %c2_523 = arith.constant 2 : index
    %c1_524 = arith.constant 1 : index
    %c0_525 = arith.constant 0 : index
    %c0_526 = arith.constant 0 : index
    %417 = vector.load %arg4[%c2_523, %c1_524, %c0_525, %c0_526] : memref<3x3x4x8xf32, #tpu.memory_space<vmem>>, vector<1x1x4x8xf32>
    %418 = vector.shape_cast %417 : vector<1x1x4x8xf32> to vector<4x8xf32>
    %cst_527 = arith.constant dense<0.000000e+00> : vector<64x8xf32>
    %419 = tpu.matmul %416, %418, %cst_527 {dimension_numbers = #tpu.dot_dimension_numbers<[1], [0], [0], [1], [0, 0, 1, 1], [], []>} : vector<64x4xf32>, vector<4x8xf32>, vector<64x8xf32> -> vector<64x8xf32>
    %420 = arith.addf %413, %419 : vector<64x8xf32>
    %c3_528 = arith.constant 3 : index
    %c1_529 = arith.constant 1 : index
    %c1_530 = arith.constant 1 : index
    %c0_531 = arith.constant 0 : index
    %421 = vector.load %arg10[%c3_528, %c1_529, %c1_530, %c0_531] : memref<4x9x9x4xf32, #tpu.memory_space<vmem>>, vector<1x8x8x4xf32>
    %422 = vector.shape_cast %421 : vector<1x8x8x4xf32> to vector<8x8x4xf32>
    %423 = vector.shape_cast %422 : vector<8x8x4xf32> to vector<64x4xf32>
    %c2_532 = arith.constant 2 : index
    %c2_533 = arith.constant 2 : index
    %c0_534 = arith.constant 0 : index
    %c0_535 = arith.constant 0 : index
    %424 = vector.load %arg4[%c2_532, %c2_533, %c0_534, %c0_535] : memref<3x3x4x8xf32, #tpu.memory_space<vmem>>, vector<1x1x4x8xf32>
    %425 = vector.shape_cast %424 : vector<1x1x4x8xf32> to vector<4x8xf32>
    %cst_536 = arith.constant dense<0.000000e+00> : vector<64x8xf32>
    %426 = tpu.matmul %423, %425, %cst_536 {dimension_numbers = #tpu.dot_dimension_numbers<[1], [0], [0], [1], [0, 0, 1, 1], [], []>} : vector<64x4xf32>, vector<4x8xf32>, vector<64x8xf32> -> vector<64x8xf32>
    %427 = arith.addf %420, %426 : vector<64x8xf32>
    %c0_537 = arith.constant 0 : index
    %c0_538 = arith.constant 0 : index
    %c0_539 = arith.constant 0 : index
    %428 = vector.load %arg8[%c0_537, %c0_538, %c0_539] : memref<1x64x8xf32, #tpu.memory_space<vmem>>, vector<1x64x8xf32>
    %429 = vector.shape_cast %428 : vector<1x64x8xf32> to vector<64x8xf32>
    %430 = vector.shape_cast %427 : vector<64x8xf32> to vector<1x64x8xf32>
    tpu.vector_store %arg8[%c0_537, %c0_538, %c0_539], %430 {strides = array<i32>} : memref<1x64x8xf32, #tpu.memory_space<vmem>>, vector<1x64x8xf32>,
    return
  }
  func.func @transform_0(%arg0: i32) -> (i32, i32, i32, i32, i32) {
    %c0_i32 = arith.constant 0 : i32
    %c0_i32_0 = arith.constant 0 : i32
    %c0_i32_1 = arith.constant 0 : i32
    %c0_i32_2 = arith.constant 0 : i32
    %c0_i32_3 = arith.constant 0 : i32
    return %arg0, %c0_i32, %c0_i32_0, %c0_i32_1, %c0_i32_2 : i32, i32, i32, i32, i32
  }
  func.func @transform_1(%arg0: i32) -> (i32, i32, i32, i32) {
    %c0_i32 = arith.constant 0 : i32
    %c0_i32_0 = arith.constant 0 : i32
    %c0_i32_1 = arith.constant 0 : i32
    %c0_i32_2 = arith.constant 0 : i32
    %c0_i32_3 = arith.constant 0 : i32
    return %c0_i32, %c0_i32_0, %c0_i32_1, %c0_i32_2 : i32, i32, i32, i32
  }
  func.func @transform_2(%arg0: i32) -> (i32, i32) {
    %c0_i32 = arith.constant 0 : i32
    %c0_i32_0 = arith.constant 0 : i32
    %c0_i32_1 = arith.constant 0 : i32
    return %c0_i32, %c0_i32_0 : i32, i32
  }
  func.func @transform_3(%arg0: i32) -> (i32, i32, i32, i32) {
    %c0_i32 = arith.constant 0 : i32
    %c0_i32_0 = arith.constant 0 : i32
    %c0_i32_1 = arith.constant 0 : i32
    %c0_i32_2 = arith.constant 0 : i32
    %c0_i32_3 = arith.constant 0 : i32
    return %c0_i32, %c0_i32_0, %c0_i32_1, %c0_i32_2 : i32, i32, i32, i32
  }
  func.func @transform_4(%arg0: i32) -> (i32, i32) {
    %c0_i32 = arith.constant 0 : i32
    %c0_i32_0 = arith.constant 0 : i32
    %c0_i32_1 = arith.constant 0 : i32
    return %c0_i32, %c0_i32_0 : i32, i32
  }
  func.func @transform_5(%arg0: i32) -> (i32, i32, i32, i32) {
    %c0_i32 = arith.constant 0 : i32
    %c0_i32_0 = arith.constant 0 : i32
    %c0_i32_1 = arith.constant 0 : i32
    %c0_i32_2 = arith.constant 0 : i32
    %c0_i32_3 = arith.constant 0 : i32
    return %c0_i32, %c0_i32_0, %c0_i32_1, %c0_i32_2 : i32, i32, i32, i32
  }
  func.func @transform_6(%arg0: i32) -> (i32, i32) {
    %c0_i32 = arith.constant 0 : i32
    %c0_i32_0 = arith.constant 0 : i32
    %c0_i32_1 = arith.constant 0 : i32
    return %c0_i32, %c0_i32_0 : i32, i32
  }
  func.func @transform_7(%arg0: i32) -> (i32, i32, i32) {
    %c0_i32 = arith.constant 0 : i32
    %c0_i32_0 = arith.constant 0 : i32
    %c0_i32_1 = arith.constant 0 : i32
    return %arg0, %c0_i32, %c0_i32_0 : i32, i32, i32
  }
}

</mosaic_0001>

<llo_original>
// kernel: down_conv_block_forward.1
$region0: #{down_conv_block_forward.1}
  #allocation0 [shape = 'u32[]', space=smem, size = 0x4, offset = 0x4, fixed_abs, tag = 'smem constant byte address 0x4 - core index']
  #allocation1 [shape = 'u32[72,128]{1,0:T(1,128)}', space=vmem, size = 0x9000, scoped, tag = 'internal scratch']
  #allocation2 [shape = 'f32[4,9,9,4]{3,2,1,0:T(8,128)}', space=vmem, size = 0x48000, scoped, tag = 'scratch operand']
  #allocation3 [shape = 'f32[4,9,9,4]{3,2,1,0:T(8,128)}', space=vmem, size = 0x48000, scoped, tag = 'scratch operand']
  %s0 = inlined_call_operand.vmem [shape: f32[2,4,9,9,4], index: 0, kind: input, shape index: {}]
  %s1 = inlined_call_operand.vmem [shape: f32[3,3,4,4], index: 1, kind: input, shape index: {}]
  %s2 = inlined_call_operand.vmem [shape: f32[1,4], index: 2, kind: input, shape index: {}]
  %s3 = inlined_call_operand.vmem [shape: f32[3,3,4,8], index: 3, kind: input, shape index: {}]
  %s4 = inlined_call_operand.vmem [shape: f32[1,8], index: 4, kind: input, shape index: {}]
  %s5 = inlined_call_operand.vmem [shape: f32[3,3,4,8], index: 5, kind: input, shape index: {}]
  %s6 = inlined_call_operand.vmem [shape: f32[1,8], index: 6, kind: input, shape index: {}]
  %s7 = inlined_call_operand.vmem [shape: f32[2,64,8], index: 7, kind: output, shape index: {}]
  %s8 = sld [smem:[#allocation0]]
  $region61: #{down_conv_block_forward.1} parent=0
    _
  %s10 = ssub.s32 1, %s8
  %s11 = scalar_select 0, %s10, %s8
  loop: start=0, step=1, limit=4
  $region2: #{down_conv_block_forward.1} parent=0 // loop_pre_header
    _
  $region3: #{down_conv_block_forward.1} parent=0 // loop_header
    %s13 = sphi 0, %s17
    %p14 = scmp.ge.s32.totalorder %s13, 4
    %s23 = sphi 0, %s25
    %s26 = sphi 0, %s23
    %s27 = sphi 0, %s26
    %s43 = sphi 0, %s27
    %s47 = sphi 0, %s47
    %s49 = sphi 0, %s47
    %s50 = sphi 0, %s49
    %s64 = sphi 0, %s50
    %s68 = sphi 0, %s68
    %s70 = sphi 0, %s68
    %s71 = sphi 0, %s70
    %s85 = sphi 0, %s71
    %s89 = sphi 0, %s89
    %s91 = sphi 0, %s89
    %s92 = sphi 0, %s91
    %s106 = sphi 0, %s92
    %s110 = sphi 0, %s110
    %s112 = sphi 0, %s110
    %s113 = sphi 0, %s112
    %s127 = sphi 0, %s113
    %s131 = sphi 0, %s131
    %s133 = sphi 0, %s131
    %s134 = sphi 0, %s133
    %s148 = sphi 0, %s134
    %s152 = sphi 0, %s152
    %s154 = sphi 0, %s152
    %s155 = sphi 0, %s154
    %s169 = sphi 0, %s155
    %s175 = sphi 0, %s177
    %s178 = sphi 0, %s175
    %s179 = sphi 0, %s178
    %s195 = sphi 0, %s179
  $region4: #{down_conv_block_forward.1} parent=0 // loop_header_branch
    %16 = sbr.rel (%p14) target = $region8
  $region5: #{down_conv_block_forward.1} parent=0 // loop_body
    %s18 = ssub.s32 %s13, 1
    %s19 = ssub.s32 %s13, 2
    %s20 = sadd.s32 %s13, 1
    %s21 = ssub.s32 %s13, %s20
    %p22 = scmp.eq.s32.totalorder %s21, 0
    %s24 = sadd.s32 %s23, 1
    %s25 = scalar_select %p22, %s23, %s24
    %p28 = pneg %p22
    %p29 = scmp.eq.s32.totalorder %s13, 1
    %p30 = por %p28, %p29
    %p31 = scmp.ne.s32.totalorder %s23, %s26
    %p32 = scmp.eq.s32.totalorder %s13, 0
    %p33 = por %p31, %p32
    %p34 = scmp.ne.s32.totalorder %s23, %s26
    %p35 = scmp.eq.s32.totalorder %s18, 1
    %p36 = por %p34, %p35
    %p37 = scmp.ne.s32.totalorder %s26, %s27
    %p38 = scmp.eq.s32.totalorder %s18, 0
    %p39 = por %p37, %p38
    %p40 = scmp.ne.s32.totalorder %s26, %s27
    %p41 = scmp.eq.s32.totalorder %s19, 1
    %p42 = por %p40, %p41
    %p44 = scmp.ne.s32.totalorder %s27, %s43
    %p45 = scmp.eq.s32.totalorder %s19, 0
    %p46 = por %p44, %p45
    %s48 = sadd.s32 %s47, 1
    %p51 = scmp.eq.s32.totalorder %s13, 1
    %p52 = scmp.ne.s32.totalorder %s47, %s49
    %p53 = scmp.eq.s32.totalorder %s13, 0
    %p54 = por %p52, %p53
    %p55 = scmp.ne.s32.totalorder %s47, %s49
    %p56 = scmp.eq.s32.totalorder %s18, 1
    %p57 = por %p55, %p56
    %p58 = scmp.ne.s32.totalorder %s49, %s50
    %p59 = scmp.eq.s32.totalorder %s18, 0
    %p60 = por %p58, %p59
    %p61 = scmp.ne.s32.totalorder %s49, %s50
    %p62 = scmp.eq.s32.totalorder %s19, 1
    %p63 = por %p61, %p62
    %p65 = scmp.ne.s32.totalorder %s50, %s64
    %p66 = scmp.eq.s32.totalorder %s19, 0
    %p67 = por %p65, %p66
    %s69 = sadd.s32 %s68, 1
    %p72 = scmp.eq.s32.totalorder %s13, 1
    %p73 = scmp.ne.s32.totalorder %s68, %s70
    %p74 = scmp.eq.s32.totalorder %s13, 0
    %p75 = por %p73, %p74
    %p76 = scmp.ne.s32.totalorder %s68, %s70
    %p77 = scmp.eq.s32.totalorder %s18, 1
    %p78 = por %p76, %p77
    %p79 = scmp.ne.s32.totalorder %s70, %s71
    %p80 = scmp.eq.s32.totalorder %s18, 0
    %p81 = por %p79, %p80
    %p82 = scmp.ne.s32.totalorder %s70, %s71
    %p83 = scmp.eq.s32.totalorder %s19, 1
    %p84 = por %p82, %p83
    %p86 = scmp.ne.s32.totalorder %s71, %s85
    %p87 = scmp.eq.s32.totalorder %s19, 0
    %p88 = por %p86, %p87
    %s90 = sadd.s32 %s89, 1
    %p93 = scmp.eq.s32.totalorder %s13, 1
    %p94 = scmp.ne.s32.totalorder %s89, %s91
    %p95 = scmp.eq.s32.totalorder %s13, 0
    %p96 = por %p94, %p95
    %p97 = scmp.ne.s32.totalorder %s89, %s91
    %p98 = scmp.eq.s32.totalorder %s18, 1
    %p99 = por %p97, %p98
    %p100 = scmp.ne.s32.totalorder %s91, %s92
    %p101 = scmp.eq.s32.totalorder %s18, 0
    %p102 = por %p100, %p101
    %p103 = scmp.ne.s32.totalorder %s91, %s92
    %p104 = scmp.eq.s32.totalorder %s19, 1
    %p105 = por %p103, %p104
    %p107 = scmp.ne.s32.totalorder %s92, %s106
    %p108 = scmp.eq.s32.totalorder %s19, 0
    %p109 = por %p107, %p108
    %s111 = sadd.s32 %s110, 1
    %p114 = scmp.eq.s32.totalorder %s13, 1
    %p115 = scmp.ne.s32.totalorder %s110, %s112
    %p116 = scmp.eq.s32.totalorder %s13, 0
    %p117 = por %p115, %p116
    %p118 = scmp.ne.s32.totalorder %s110, %s112
    %p119 = scmp.eq.s32.totalorder %s18, 1
    %p120 = por %p118, %p119
    %p121 = scmp.ne.s32.totalorder %s112, %s113
    %p122 = scmp.eq.s32.totalorder %s18, 0
    %p123 = por %p121, %p122
    %p124 = scmp.ne.s32.totalorder %s112, %s113
    %p125 = scmp.eq.s32.totalorder %s19, 1
    %p126 = por %p124, %p125
    %p128 = scmp.ne.s32.totalorder %s113, %s127
    %p129 = scmp.eq.s32.totalorder %s19, 0
    %p130 = por %p128, %p129
    %s132 = sadd.s32 %s131, 1
    %p135 = scmp.eq.s32.totalorder %s13, 1
    %p136 = scmp.ne.s32.totalorder %s131, %s133
    %p137 = scmp.eq.s32.totalorder %s13, 0
    %p138 = por %p136, %p137
    %p139 = scmp.ne.s32.totalorder %s131, %s133
    %p140 = scmp.eq.s32.totalorder %s18, 1
    %p141 = por %p139, %p140
    %p142 = scmp.ne.s32.totalorder %s133, %s134
    %p143 = scmp.eq.s32.totalorder %s18, 0
    %p144 = por %p142, %p143
    %p145 = scmp.ne.s32.totalorder %s133, %s134
    %p146 = scmp.eq.s32.totalorder %s19, 1
    %p147 = por %p145, %p146
    %p149 = scmp.ne.s32.totalorder %s134, %s148
    %p150 = scmp.eq.s32.totalorder %s19, 0
    %p151 = por %p149, %p150
    %s153 = sadd.s32 %s152, 1
    %p156 = scmp.eq.s32.totalorder %s13, 1
    %p157 = scmp.ne.s32.totalorder %s152, %s154
    %p158 = scmp.eq.s32.totalorder %s13, 0
    %p159 = por %p157, %p158
    %p160 = scmp.ne.s32.totalorder %s152, %s154
    %p161 = scmp.eq.s32.totalorder %s18, 1
    %p162 = por %p160, %p161
    %p163 = scmp.ne.s32.totalorder %s154, %s155
    %p164 = scmp.eq.s32.totalorder %s18, 0
    %p165 = por %p163, %p164
    %p166 = scmp.ne.s32.totalorder %s154, %s155
    %p167 = scmp.eq.s32.totalorder %s19, 1
    %p168 = por %p166, %p167
    %p170 = scmp.ne.s32.totalorder %s155, %s169
    %p171 = scmp.eq.s32.totalorder %s19, 0
    %p172 = por %p170, %p171
    %s173 = ssub.s32 %s13, %s20
    %p174 = scmp.eq.s32.totalorder %s173, 0
    %s176 = sadd.s32 %s175, 1
    %s177 = scalar_select %p174, %s175, %s176
    %p180 = pneg %p174
    %p181 = scmp.eq.s32.totalorder %s13, 1
    %p182 = por %p180, %p181
    %p183 = scmp.ne.s32.totalorder %s175, %s178
    %p184 = scmp.eq.s32.totalorder %s13, 0
    %p185 = por %p183, %p184
    %p186 = scmp.ne.s32.totalorder %s175, %s178
    %p187 = scmp.eq.s32.totalorder %s18, 1
    %p188 = por %p186, %p187
    %p189 = scmp.ne.s32.totalorder %s178, %s179
    %p190 = scmp.eq.s32.totalorder %s18, 0
    %p191 = por %p189, %p190
    %p192 = scmp.ne.s32.totalorder %s178, %s179
    %p193 = scmp.eq.s32.totalorder %s19, 1
    %p194 = por %p192, %p193
    %p196 = scmp.ne.s32.totalorder %s179, %s195
    %p197 = scmp.eq.s32.totalorder %s19, 0
    %p198 = por %p196, %p197
    %p199 = scmp.le.s32.totalorder 1, %s13
    %p200 = scmp.lt.s32.totalorder %s13, 3
    %p201 = pnand %p199, %p200
    %p202 = pneg %p201
    // Predicated region
    $region9: #{down_conv_block_forward.1} parent=5 // pred_check
      _
    $region10: #{down_conv_block_forward.1} parent=5 // pred_check_branch
      %204 = sbr.rel (%p201) target = $region12
    $region11: #{down_conv_block_forward.1} parent=5 // pred_region
      %s205 = ssub.s32 %s13, 1
      // Predicated region
      $region13: #{down_conv_block_forward.1} parent=11 // pred_check
        %p206 = pneg %p60
      $region14: #{down_conv_block_forward.1} parent=11 // pred_check_branch
        %208 = sbr.rel (%p206) target = $region16
      $region15: #{down_conv_block_forward.1} parent=11 // pred_region
        _
      $region16: #{down_conv_block_forward.1} parent=11 // pred_fallthru
        _
      // Predicated region
      $region17: #{down_conv_block_forward.1} parent=11 // pred_check
        %p209 = pneg %p81
      $region18: #{down_conv_block_forward.1} parent=11 // pred_check_branch
        %211 = sbr.rel (%p209) target = $region20
      $region19: #{down_conv_block_forward.1} parent=11 // pred_region
        _
      $region20: #{down_conv_block_forward.1} parent=11 // pred_fallthru
        _
      // Predicated region
      $region21: #{down_conv_block_forward.1} parent=11 // pred_check
        %p212 = pneg %p102
      $region22: #{down_conv_block_forward.1} parent=11 // pred_check_branch
        %214 = sbr.rel (%p212) target = $region24
      $region23: #{down_conv_block_forward.1} parent=11 // pred_region
        _
      $region24: #{down_conv_block_forward.1} parent=11 // pred_fallthru
        _
      // Predicated region
      $region25: #{down_conv_block_forward.1} parent=11 // pred_check
        %p215 = pneg %p123
      $region26: #{down_conv_block_forward.1} parent=11 // pred_check_branch
        %217 = sbr.rel (%p215) target = $region28
      $region27: #{down_conv_block_forward.1} parent=11 // pred_region
        _
      $region28: #{down_conv_block_forward.1} parent=11 // pred_fallthru
        _
      // Predicated region
      $region29: #{down_conv_block_forward.1} parent=11 // pred_check
        %p218 = pneg %p144
      $region30: #{down_conv_block_forward.1} parent=11 // pred_check_branch
        %220 = sbr.rel (%p218) target = $region32
      $region31: #{down_conv_block_forward.1} parent=11 // pred_region
        _
      $region32: #{down_conv_block_forward.1} parent=11 // pred_fallthru
        _
      // Predicated region
      $region33: #{down_conv_block_forward.1} parent=11 // pred_check
        %p221 = pneg %p165
      $region34: #{down_conv_block_forward.1} parent=11 // pred_check_branch
        %223 = sbr.rel (%p221) target = $region36
      $region35: #{down_conv_block_forward.1} parent=11 // pred_region
        _
      $region36: #{down_conv_block_forward.1} parent=11 // pred_fallthru
        _
    $region12: #{down_conv_block_forward.1} parent=5 // pred_fallthru
      _
    %p224 = scmp.lt.s32.totalorder %s13, 2
    // Predicated region
    $region37: #{down_conv_block_forward.1} parent=5 // pred_check
      %p225 = pneg %p224
    $region38: #{down_conv_block_forward.1} parent=5 // pred_check_branch
      %227 = sbr.rel (%p225) target = $region40
    $region39: #{down_conv_block_forward.1} parent=5 // pred_region
      // Predicated region
      $region41: #{down_conv_block_forward.1} parent=39 // pred_check
        %p228 = pneg %p33
      $region42: #{down_conv_block_forward.1} parent=39 // pred_check_branch
        %230 = sbr.rel (%p228) target = $region44
      $region43: #{down_conv_block_forward.1} parent=39 // pred_region
        %p231 = scmp.lt.s32.totalorder %s13, 1
        %s232 = scalar_select %p231, %s13, 1
        %s233 = smul.addr %s232, 72
        %s234 = smul.addr %s233, 8
        %s235 = scalar_lea.vmem %s0, %s234
      $region44: #{down_conv_block_forward.1} parent=39 // pred_fallthru
        _
    $region40: #{down_conv_block_forward.1} parent=5 // pred_fallthru
      _
    %p236 = scmp.le.s32.totalorder 1, %s13
    %p237 = scmp.lt.s32.totalorder %s13, 3
    %p238 = pnand %p236, %p237
    %p239 = pneg %p238
    // Predicated region
    $region45: #{down_conv_block_forward.1} parent=5 // pred_check
      _
    $region46: #{down_conv_block_forward.1} parent=5 // pred_check_branch
      %241 = sbr.rel (%p238) target = $region48
    $region47: #{down_conv_block_forward.1} parent=5 // pred_region
      %s242 = ssub.s32 %s13, 1
      %p243 = scmp.lt.s32.totalorder %s18, 1
      %s244 = scalar_select %p243, %s18, 1
      %s245 = smul.addr %s244, 72
      %s246 = smul.addr %s245, 8
      %s247 = scalar_lea.vmem %s0, %s246
      %p248 = pneg %p39
      %p249 = pneg %p36
      %p250 = pneg %p60
      %p251 = pneg %p57
      %p252 = pneg %p81
      %p253 = pneg %p78
      %p254 = pneg %p102
      %p255 = pneg %p99
      %p256 = pneg %p123
      %p257 = pneg %p120
      %p258 = pneg %p144
      %p259 = pneg %p141
      %p260 = pneg %p165
      %p261 = pneg %p162
      %p262 = pneg %p191
      %p263 = pneg %p188
      %p264 = scmp.lt.s32.totalorder %s18, 1
      %s265 = scalar_select %p264, %s18, 1
      %s266 = smul.addr %s265, 8
      %s267 = smul.addr %s266, 8
      %s268 = scalar_lea.vmem %s7, %s267
      %p269 = scmp.lt.s32.totalorder %s18, 1
      %s270 = scalar_select %p269, %s18, 1
      %s271 = smul.addr %s270, 72
      %s272 = smul.addr %s271, 8
      %s273 = scalar_lea.vmem %s0, %s272
      %p274 = scmp.lt.s32.totalorder %s18, 1
      %s275 = scalar_select %p274, %s18, 1
      %s276 = smul.addr %s275, 8
      %s277 = smul.addr %s276, 8
      %s278 = scalar_lea.vmem %s7, %s277
      %v279 = vld [vmem:[%s273] sm:$0xff]
      %v280 = vld [vmem:[%s273 + $0x8] sm:$0x1]
      %v281 = vld [vmem:[%s273 + $0x10] sm:$0xff]
      %v282 = vld [vmem:[%s273 + $0x18] sm:$0x1]
      %v283 = vld [vmem:[%s273 + $0x20] sm:$0xff]
      %v284 = vld [vmem:[%s273 + $0x28] sm:$0x1]
      %v285 = vld [vmem:[%s273 + $0x30] sm:$0xff]
      %v286 = vld [vmem:[%s273 + $0x38] sm:$0x1]
      %v287 = vld [vmem:[%s273 + $0x40] sm:$0xff]
      %v288 = vld [vmem:[%s273 + $0x48] sm:$0x1]
      %v289 = vld [vmem:[%s273 + $0x50] sm:$0xff]
      %v290 = vld [vmem:[%s273 + $0x58] sm:$0x1]
      %v291 = vld [vmem:[%s273 + $0x60] sm:$0xff]
      %v292 = vld [vmem:[%s273 + $0x68] sm:$0x1]
      %v293 = vld [vmem:[%s273 + $0x70] sm:$0xff]
      %v294 = vld [vmem:[%s273 + $0x78] sm:$0x1]
      %v295 = vld [vmem:[%s273 + $0x80] sm:$0xff]
      %v296 = vld [vmem:[%s273 + $0x88] sm:$0x1]
      %v297 = vld [vmem:[%s273 + $0x90] sm:$0xff]
      %v298 = vld [vmem:[%s273 + $0x98] sm:$0x1]
      %v299 = vld [vmem:[%s273 + $0xa0] sm:$0xff]
      %v300 = vld [vmem:[%s273 + $0xa8] sm:$0x1]
      %v301 = vld [vmem:[%s273 + $0xb0] sm:$0xff]
      %v302 = vld [vmem:[%s273 + $0xb8] sm:$0x1]
      %v303 = vld [vmem:[%s273 + $0xc0] sm:$0xff]
      %v304 = vld [vmem:[%s273 + $0xc8] sm:$0x1]
      %v305 = vld [vmem:[%s273 + $0xd0] sm:$0xff]
      %v306 = vld [vmem:[%s273 + $0xd8] sm:$0x1]
      %v307 = vld [vmem:[%s273 + $0xe0] sm:$0xff]
      %v308 = vld [vmem:[%s273 + $0xe8] sm:$0x1]
      %v309 = vld [vmem:[%s273 + $0xf0] sm:$0xff]
      %v310 = vld [vmem:[%s273 + $0xf8] sm:$0x1]
      %v311 = vld [vmem:[%s273 + $0x100] sm:$0xff]
      %v312 = vld [vmem:[%s273 + $0x108] sm:$0x1]
      %v313 = vld [vmem:[%s273 + $0x110] sm:$0xff]
      %v314 = vld [vmem:[%s273 + $0x118] sm:$0x1]
      %v315 = vld [vmem:[%s273 + $0x120] sm:$0xff]
      %v316 = vld [vmem:[%s273 + $0x128] sm:$0x1]
      %v317 = vld [vmem:[%s273 + $0x130] sm:$0xff]
      %v318 = vld [vmem:[%s273 + $0x138] sm:$0x1]
      %v319 = vld [vmem:[%s273 + $0x140] sm:$0xff]
      %v320 = vld [vmem:[%s273 + $0x148] sm:$0x1]
      %v321 = vld [vmem:[%s273 + $0x150] sm:$0xff]
      %v322 = vld [vmem:[%s273 + $0x158] sm:$0x1]
      %v323 = vld [vmem:[%s273 + $0x160] sm:$0xff]
      %v324 = vld [vmem:[%s273 + $0x168] sm:$0x1]
      %v325 = vld [vmem:[%s273 + $0x170] sm:$0xff]
      %v326 = vld [vmem:[%s273 + $0x178] sm:$0x1]
      %v327 = vld [vmem:[%s273 + $0x180] sm:$0xff]
      %v328 = vld [vmem:[%s273 + $0x188] sm:$0x1]
      %v329 = vld [vmem:[%s273 + $0x190] sm:$0xff]
      %v330 = vld [vmem:[%s273 + $0x198] sm:$0x1]
      %v331 = vld [vmem:[%s273 + $0x1a0] sm:$0xff]
      %v332 = vld [vmem:[%s273 + $0x1a8] sm:$0x1]
      %v333 = vld [vmem:[%s273 + $0x1b0] sm:$0xff]
      %v334 = vld [vmem:[%s273 + $0x1b8] sm:$0x1]
      %v335 = vld [vmem:[%s273 + $0x1c0] sm:$0xff]
      %v336 = vld [vmem:[%s273 + $0x1c8] sm:$0x1]
      %v337 = vld [vmem:[%s273 + $0x1d0] sm:$0xff]
      %v338 = vld [vmem:[%s273 + $0x1d8] sm:$0x1]
      %v339 = vld [vmem:[%s273 + $0x1e0] sm:$0xff]
      %v340 = vld [vmem:[%s273 + $0x1e8] sm:$0x1]
      %v341 = vld [vmem:[%s273 + $0x1f0] sm:$0xff]
      %v342 = vld [vmem:[%s273 + $0x1f8] sm:$0x1]
      %v343 = vld [vmem:[%s273 + $0x200] sm:$0xff]
      %v344 = vld [vmem:[%s273 + $0x208] sm:$0x1]
      %v345 = vld [vmem:[%s273 + $0x210] sm:$0xff]
      %v346 = vld [vmem:[%s273 + $0x218] sm:$0x1]
      %v347 = vld [vmem:[%s273 + $0x220] sm:$0xff]
      %v348 = vld [vmem:[%s273 + $0x228] sm:$0x1]
      %v349 = vld [vmem:[%s273 + $0x230] sm:$0xff]
      %v350 = vld [vmem:[%s273 + $0x238] sm:$0x1]
      %v351 = vmax.f32 %v279, 0.0
      %v352 = vmax.f32 %v280, 0.0
      %v353 = vmax.f32 %v281, 0.0
      %v354 = vmax.f32 %v282, 0.0
      %v355 = vmax.f32 %v283, 0.0
      %v356 = vmax.f32 %v284, 0.0
      %v357 = vmax.f32 %v285, 0.0
      %v358 = vmax.f32 %v286, 0.0
      %v359 = vmax.f32 %v287, 0.0
      %v360 = vmax.f32 %v288, 0.0
      %v361 = vmax.f32 %v289, 0.0
      %v362 = vmax.f32 %v290, 0.0
      %v363 = vmax.f32 %v291, 0.0
      %v364 = vmax.f32 %v292, 0.0
      %v365 = vmax.f32 %v293, 0.0
      %v366 = vmax.f32 %v294, 0.0
      %v367 = vmax.f32 %v295, 0.0
      %v368 = vmax.f32 %v296, 0.0
      %v369 = vmax.f32 %v297, 0.0
      %v370 = vmax.f32 %v298, 0.0
      %v371 = vmax.f32 %v299, 0.0
      %v372 = vmax.f32 %v300, 0.0
      %v373 = vmax.f32 %v301, 0.0
      %v374 = vmax.f32 %v302, 0.0
      %v375 = vmax.f32 %v303, 0.0
      %v376 = vmax.f32 %v304, 0.0
      %v377 = vmax.f32 %v305, 0.0
      %v378 = vmax.f32 %v306, 0.0
      %v379 = vmax.f32 %v307, 0.0
      %v380 = vmax.f32 %v308, 0.0
      %v381 = vmax.f32 %v309, 0.0
      %v382 = vmax.f32 %v310, 0.0
      %v383 = vmax.f32 %v311, 0.0
      %v384 = vmax.f32 %v312, 0.0
      %v385 = vmax.f32 %v313, 0.0
      %v386 = vmax.f32 %v314, 0.0
      %v387 = vmax.f32 %v315, 0.0
      %v388 = vmax.f32 %v316, 0.0
      %v389 = vmax.f32 %v317, 0.0
      %v390 = vmax.f32 %v318, 0.0
      %v391 = vmax.f32 %v319, 0.0
      %v392 = vmax.f32 %v320, 0.0
      %v393 = vmax.f32 %v321, 0.0
      %v394 = vmax.f32 %v322, 0.0
      %v395 = vmax.f32 %v323, 0.0
      %v396 = vmax.f32 %v324, 0.0
      %v397 = vmax.f32 %v325, 0.0
      %v398 = vmax.f32 %v326, 0.0
      %v399 = vmax.f32 %v327, 0.0
      %v400 = vmax.f32 %v328, 0.0
      %v401 = vmax.f32 %v329, 0.0
      %v402 = vmax.f32 %v330, 0.0
      %v403 = vmax.f32 %v331, 0.0
      %v404 = vmax.f32 %v332, 0.0
      %v405 = vmax.f32 %v333, 0.0
      %v406 = vmax.f32 %v334, 0.0
      %v407 = vmax.f32 %v335, 0.0
      %v408 = vmax.f32 %v336, 0.0
      %v409 = vmax.f32 %v337, 0.0
      %v410 = vmax.f32 %v338, 0.0
      %v411 = vmax.f32 %v339, 0.0
      %v412 = vmax.f32 %v340, 0.0
      %v413 = vmax.f32 %v341, 0.0
      %v414 = vmax.f32 %v342, 0.0
      %v415 = vmax.f32 %v343, 0.0
      %v416 = vmax.f32 %v344, 0.0
      %v417 = vmax.f32 %v345, 0.0
      %v418 = vmax.f32 %v346, 0.0
      %v419 = vmax.f32 %v347, 0.0
      %v420 = vmax.f32 %v348, 0.0
      %v421 = vmax.f32 %v349, 0.0
      %v422 = vmax.f32 %v350, 0.0
      %vm423 = vcmask 31744
      %424 = vst.msk [vmem:[#allocation2] sm:$0xff] %vm423, %v351
      %vm425 = vcmask 24576
      %426 = vst.msk [vmem:[#allocation2 + $0x8] sm:$0x1] %vm425, %v352
      %427 = vst.msk [vmem:[#allocation2 + $0x10] sm:$0xff] %vm423, %v353
      %428 = vst.msk [vmem:[#allocation2 + $0x18] sm:$0x1] %vm425, %v354
      %429 = vst.msk [vmem:[#allocation2 + $0x20] sm:$0xff] %vm423, %v355
      %430 = vst.msk [vmem:[#allocation2 + $0x28] sm:$0x1] %vm425, %v356
      %431 = vst.msk [vmem:[#allocation2 + $0x30] sm:$0xff] %vm423, %v357
      %432 = vst.msk [vmem:[#allocation2 + $0x38] sm:$0x1] %vm425, %v358
      %433 = vst.msk [vmem:[#allocation2 + $0x40] sm:$0xff] %vm423, %v359
      %434 = vst.msk [vmem:[#allocation2 + $0x48] sm:$0x1] %vm425, %v360
      %435 = vst.msk [vmem:[#allocation2 + $0x50] sm:$0xff] %vm423, %v361
      %436 = vst.msk [vmem:[#allocation2 + $0x58] sm:$0x1] %vm425, %v362
      %437 = vst.msk [vmem:[#allocation2 + $0x60] sm:$0xff] %vm423, %v363
      %438 = vst.msk [vmem:[#allocation2 + $0x68] sm:$0x1] %vm425, %v364
      %439 = vst.msk [vmem:[#allocation2 + $0x70] sm:$0xff] %vm423, %v365
      %440 = vst.msk [vmem:[#allocation2 + $0x78] sm:$0x1] %vm425, %v366
      %441 = vst.msk [vmem:[#allocation2 + $0x80] sm:$0xff] %vm423, %v367
      %442 = vst.msk [vmem:[#allocation2 + $0x88] sm:$0x1] %vm425, %v368
      %443 = vst.msk [vmem:[#allocation2 + $0x90] sm:$0xff] %vm423, %v369
      %444 = vst.msk [vmem:[#allocation2 + $0x98] sm:$0x1] %vm425, %v370
      %445 = vst.msk [vmem:[#allocation2 + $0xa0] sm:$0xff] %vm423, %v371
      %446 = vst.msk [vmem:[#allocation2 + $0xa8] sm:$0x1] %vm425, %v372
      %447 = vst.msk [vmem:[#allocation2 + $0xb0] sm:$0xff] %vm423, %v373
      %448 = vst.msk [vmem:[#allocation2 + $0xb8] sm:$0x1] %vm425, %v374
      %449 = vst.msk [vmem:[#allocation2 + $0xc0] sm:$0xff] %vm423, %v375
      %450 = vst.msk [vmem:[#allocation2 + $0xc8] sm:$0x1] %vm425, %v376
      %451 = vst.msk [vmem:[#allocation2 + $0xd0] sm:$0xff] %vm423, %v377
      %452 = vst.msk [vmem:[#allocation2 + $0xd8] sm:$0x1] %vm425, %v378
      %453 = vst.msk [vmem:[#allocation2 + $0xe0] sm:$0xff] %vm423, %v379
      %454 = vst.msk [vmem:[#allocation2 + $0xe8] sm:$0x1] %vm425, %v380
      %455 = vst.msk [vmem:[#allocation2 + $0xf0] sm:$0xff] %vm423, %v381
      %456 = vst.msk [vmem:[#allocation2 + $0xf8] sm:$0x1] %vm425, %v382
      %457 = vst.msk [vmem:[#allocation2 + $0x100] sm:$0xff] %vm423, %v383
      %458 = vst.msk [vmem:[#allocation2 + $0x108] sm:$0x1] %vm425, %v384
      %459 = vst.msk [vmem:[#allocation2 + $0x110] sm:$0xff] %vm423, %v385
      %460 = vst.msk [vmem:[#allocation2 + $0x118] sm:$0x1] %vm425, %v386
      %461 = vst.msk [vmem:[#allocation2 + $0x120] sm:$0xff] %vm423, %v387
      %462 = vst.msk [vmem:[#allocation2 + $0x128] sm:$0x1] %vm425, %v388
      %463 = vst.msk [vmem:[#allocation2 + $0x130] sm:$0xff] %vm423, %v389
      %464 = vst.msk [vmem:[#allocation2 + $0x138] sm:$0x1] %vm425, %v390
      %465 = vst.msk [vmem:[#allocation2 + $0x140] sm:$0xff] %vm423, %v391
      %466 = vst.msk [vmem:[#allocation2 + $0x148] sm:$0x1] %vm425, %v392
      %467 = vst.msk [vmem:[#allocation2 + $0x150] sm:$0xff] %vm423, %v393
      %468 = vst.msk [vmem:[#allocation2 + $0x158] sm:$0x1] %vm425, %v394
      %469 = vst.msk [vmem:[#allocation2 + $0x160] sm:$0xff] %vm423, %v395
      %470 = vst.msk [vmem:[#allocation2 + $0x168] sm:$0x1] %vm425, %v396
      %471 = vst.msk [vmem:[#allocation2 + $0x170] sm:$0xff] %vm423, %v397
      %472 = vst.msk [vmem:[#allocation2 + $0x178] sm:$0x1] %vm425, %v398
      %473 = vst.msk [vmem:[#allocation2 + $0x180] sm:$0xff] %vm423, %v399
      %474 = vst.msk [vmem:[#allocation2 + $0x188] sm:$0x1] %vm425, %v400
      %475 = vst.msk [vmem:[#allocation2 + $0x190] sm:$0xff] %vm423, %v401
      %476 = vst.msk [vmem:[#allocation2 + $0x198] sm:$0x1] %vm425, %v402
      %477 = vst.msk [vmem:[#allocation2 + $0x1a0] sm:$0xff] %vm423, %v403
      %478 = vst.msk [vmem:[#allocation2 + $0x1a8] sm:$0x1] %vm425, %v404
      %479 = vst.msk [vmem:[#allocation2 + $0x1b0] sm:$0xff] %vm423, %v405
      %480 = vst.msk [vmem:[#allocation2 + $0x1b8] sm:$0x1] %vm425, %v406
      %481 = vst.msk [vmem:[#allocation2 + $0x1c0] sm:$0xff] %vm423, %v407
      %482 = vst.msk [vmem:[#allocation2 + $0x1c8] sm:$0x1] %vm425, %v408
      %483 = vst.msk [vmem:[#allocation2 + $0x1d0] sm:$0xff] %vm423, %v409
      %484 = vst.msk [vmem:[#allocation2 + $0x1d8] sm:$0x1] %vm425, %v410
      %485 = vst.msk [vmem:[#allocation2 + $0x1e0] sm:$0xff] %vm423, %v411
      %486 = vst.msk [vmem:[#allocation2 + $0x1e8] sm:$0x1] %vm425, %v412
      %487 = vst.msk [vmem:[#allocation2 + $0x1f0] sm:$0xff] %vm423, %v413
      %488 = vst.msk [vmem:[#allocation2 + $0x1f8] sm:$0x1] %vm425, %v414
      %489 = vst.msk [vmem:[#allocation2 + $0x200] sm:$0xff] %vm423, %v415
      %490 = vst.msk [vmem:[#allocation2 + $0x208] sm:$0x1] %vm425, %v416
      %491 = vst.msk [vmem:[#allocation2 + $0x210] sm:$0xff] %vm423, %v417
      %492 = vst.msk [vmem:[#allocation2 + $0x218] sm:$0x1] %vm425, %v418
      %493 = vst.msk [vmem:[#allocation2 + $0x220] sm:$0xff] %vm423, %v419
      %494 = vst.msk [vmem:[#allocation2 + $0x228] sm:$0x1] %vm425, %v420
      %495 = vst.msk [vmem:[#allocation2 + $0x230] sm:$0xff] %vm423, %v421
      %496 = vst.msk [vmem:[#allocation2 + $0x238] sm:$0x1] %vm425, %v422
      %v497 = vld [vmem:[%s6] sm:$0x1]
      %v499 = vperm.slane %v497, 0
      %v501 = vld [vmem:[%s273] sm:$0xff]
      %v502 = vld [vmem:[%s273 + $0x10] sm:$0xff]
      %v503 = vld [vmem:[%s273 + $0x20] sm:$0xff]
      %v504 = vld [vmem:[%s273 + $0x30] sm:$0xff]
      %v505 = vld [vmem:[%s273 + $0x40] sm:$0xff]
      %v506 = vld [vmem:[%s273 + $0x50] sm:$0xff]
      %v507 = vld [vmem:[%s273 + $0x60] sm:$0xff]
      %v508 = vld [vmem:[%s273 + $0x70] sm:$0xff]
      %v509 = vld [vmem:[%s5] sm:$0xf]
      %v511 = vsel %vm423, %v501, 0
      %v514 = vsel %vm423, %v502, 0
      %v517 = vsel %vm423, %v503, 0
      %v520 = vsel %vm423, %v504, 0
      %v523 = vsel %vm423, %v505, 0
      %v526 = vsel %vm423, %v506, 0
      %v529 = vsel %vm423, %v507, 0
      %v532 = vsel %vm423, %v508, 0
      %vm534 = vcmask 1043456
      %v536 = vsel %vm534, %v509, 0
      %538 = vmatpush.msra.mxu0 0.0
      %539 = vmatpush.msra.mxu0 0.0
      %540 = vmatpush.msra.mxu0 0.0
      %541 = vmatpush.msra.mxu0 0.0
      %542 = vmatpush.msra.mxu0 0.0
      %543 = vmatpush.msra.mxu0 0.0
      %544 = vmatpush.msra.mxu0 0.0
      %545 = vmatpush.msra.mxu0 0.0
      %546 = vmatpush.msra.mxu0 0.0
      %547 = vmatpush.msra.mxu0 0.0
      %548 = vmatpush.msra.mxu0 0.0
      %549 = vmatpush.msra.mxu0 0.0
      %550 = vmatpush.msra.mxu0 0.0
      %551 = vmatpush.msra.mxu0 0.0
      %552 = vmatpush.msra.mxu0 0.0
      %553 = vmatpush.msra.mxu0 %v536
      %554 = vmatmul.f32.gmra.mxu0 %v511
      %v555 = vpop.f32.mrf.mxu0
      %v556 = vadd.f32 0.0, %v555
      %557 = vmatmul.f32.gmra.mxu0 %v514
      %v558 = vpop.f32.mrf.mxu0
      %v559 = vadd.f32 0.0, %v558
      %560 = vmatmul.f32.gmra.mxu0 %v517
      %v561 = vpop.f32.mrf.mxu0
      %v562 = vadd.f32 0.0, %v561
      %563 = vmatmul.f32.gmra.mxu0 %v520
      %v564 = vpop.f32.mrf.mxu0
      %v565 = vadd.f32 0.0, %v564
      %566 = vmatmul.f32.gmra.mxu0 %v523
      %v567 = vpop.f32.mrf.mxu0
      %v568 = vadd.f32 0.0, %v567
      %569 = vmatmul.f32.gmra.mxu0 %v526
      %v570 = vpop.f32.mrf.mxu0
      %v571 = vadd.f32 0.0, %v570
      %572 = vmatmul.f32.gmra.mxu0 %v529
      %v573 = vpop.f32.mrf.mxu0
      %v574 = vadd.f32 0.0, %v573
      %575 = vmatmul.f32.gmra.mxu0 %v532
      %v576 = vpop.f32.mrf.mxu0
      %v577 = vadd.f32 0.0, %v576
      %578 = vdwg.mxu0
      %v579 = vadd.f32 %v499, %v556
      %v580 = vadd.f32 %v499, %v559
      %v581 = vadd.f32 %v499, %v562
      %v582 = vadd.f32 %v499, %v565
      %v583 = vadd.f32 %v499, %v568
      %v584 = vadd.f32 %v499, %v571
      %v585 = vadd.f32 %v499, %v574
      %v586 = vadd.f32 %v499, %v577
      %s587 = scalar_lea.vmem %s273, 144
      %v588 = vld [vmem:[%s587] sm:$0xff]
      %v589 = vld [vmem:[%s587 + $0x10] sm:$0xff]
      %v590 = vld [vmem:[%s587 + $0x20] sm:$0xff]
      %v591 = vld [vmem:[%s587 + $0x30] sm:$0xff]
      %v592 = vld [vmem:[%s587 + $0x40] sm:$0xff]
      %v593 = vld [vmem:[%s587 + $0x50] sm:$0xff]
      %v594 = vld [vmem:[%s587 + $0x60] sm:$0xff]
      %v595 = vld [vmem:[%s587 + $0x70] sm:$0xff]
      %s596 = scalar_lea.vmem %s5, 4
      %v597 = vld [vmem:[%s596] sm:$0xf]
      %v599 = vsel %vm423, %v588, 0
      %v602 = vsel %vm423, %v589, 0
      %v605 = vsel %vm423, %v590, 0
      %v608 = vsel %vm423, %v591, 0
      %v611 = vsel %vm423, %v592, 0
      %v614 = vsel %vm423, %v593, 0
      %v617 = vsel %vm423, %v594, 0
      %v620 = vsel %vm423, %v595, 0
      %v623 = vsel %vm534, %v597, 0
      %625 = vmatpush.msra.mxu0 0.0
      %626 = vmatpush.msra.mxu0 0.0
      %627 = vmatpush.msra.mxu0 0.0
      %628 = vmatpush.msra.mxu0 0.0
      %629 = vmatpush.msra.mxu0 0.0
      %630 = vmatpush.msra.mxu0 0.0
      %631 = vmatpush.msra.mxu0 0.0
      %632 = vmatpush.msra.mxu0 0.0
      %633 = vmatpush.msra.mxu0 0.0
      %634 = vmatpush.msra.mxu0 0.0
      %635 = vmatpush.msra.mxu0 0.0
      %636 = vmatpush.msra.mxu0 0.0
      %637 = vmatpush.msra.mxu0 0.0
      %638 = vmatpush.msra.mxu0 0.0
      %639 = vmatpush.msra.mxu0 0.0
      %640 = vmatpush.msra.mxu0 %v623
      %641 = vmatmul.f32.gmra.mxu0 %v599
      %v642 = vpop.f32.mrf.mxu0
      %v643 = vadd.f32 0.0, %v642
      %644 = vmatmul.f32.gmra.mxu0 %v602
      %v645 = vpop.f32.mrf.mxu0
      %v646 = vadd.f32 0.0, %v645
      %647 = vmatmul.f32.gmra.mxu0 %v605
      %v648 = vpop.f32.mrf.mxu0
      %v649 = vadd.f32 0.0, %v648
      %650 = vmatmul.f32.gmra.mxu0 %v608
      %v651 = vpop.f32.mrf.mxu0
      %v652 = vadd.f32 0.0, %v651
      %653 = vmatmul.f32.gmra.mxu0 %v611
      %v654 = vpop.f32.mrf.mxu0
      %v655 = vadd.f32 0.0, %v654
      %656 = vmatmul.f32.gmra.mxu0 %v614
      %v657 = vpop.f32.mrf.mxu0
      %v658 = vadd.f32 0.0, %v657
      %659 = vmatmul.f32.gmra.mxu0 %v617
      %v660 = vpop.f32.mrf.mxu0
      %v661 = vadd.f32 0.0, %v660
      %662 = vmatmul.f32.gmra.mxu0 %v620
      %v663 = vpop.f32.mrf.mxu0
      %v664 = vadd.f32 0.0, %v663
      %665 = vdwg.mxu0
      %v666 = vadd.f32 %v579, %v643
      %v667 = vadd.f32 %v580, %v646
      %v668 = vadd.f32 %v581, %v649
      %v669 = vadd.f32 %v582, %v652
      %v670 = vadd.f32 %v583, %v655
      %v671 = vadd.f32 %v584, %v658
      %v672 = vadd.f32 %v585, %v661
      %v673 = vadd.f32 %v586, %v664
      %v674 = vld [vmem:[%s273 + $0x1] sm:$0xff]
      %v675 = vld [vmem:[%s273 + $0x11] sm:$0xff]
      %v676 = vld [vmem:[%s273 + $0x21] sm:$0xff]
      %v677 = vld [vmem:[%s273 + $0x31] sm:$0xff]
      %v678 = vld [vmem:[%s273 + $0x41] sm:$0xff]
      %v679 = vld [vmem:[%s273 + $0x51] sm:$0xff]
      %v680 = vld [vmem:[%s273 + $0x61] sm:$0xff]
      %v681 = vld [vmem:[%s273 + $0x71] sm:$0xff]
      %s682 = scalar_lea.vmem %s5, 8
      %v683 = vld [vmem:[%s682] sm:$0xf]
      %v685 = vsel %vm423, %v674, 0
      %v688 = vsel %vm423, %v675, 0
      %v691 = vsel %vm423, %v676, 0
      %v694 = vsel %vm423, %v677, 0
      %v697 = vsel %vm423, %v678, 0
      %v700 = vsel %vm423, %v679, 0
      %v703 = vsel %vm423, %v680, 0
      %v706 = vsel %vm423, %v681, 0
      %v709 = vsel %vm534, %v683, 0
      %711 = vmatpush.msra.mxu0 0.0
      %712 = vmatpush.msra.mxu0 0.0
      %713 = vmatpush.msra.mxu0 0.0
      %714 = vmatpush.msra.mxu0 0.0
      %715 = vmatpush.msra.mxu0 0.0
      %716 = vmatpush.msra.mxu0 0.0
      %717 = vmatpush.msra.mxu0 0.0
      %718 = vmatpush.msra.mxu0 0.0
      %719 = vmatpush.msra.mxu0 0.0
      %720 = vmatpush.msra.mxu0 0.0
      %721 = vmatpush.msra.mxu0 0.0
      %722 = vmatpush.msra.mxu0 0.0
      %723 = vmatpush.msra.mxu0 0.0
      %724 = vmatpush.msra.mxu0 0.0
      %725 = vmatpush.msra.mxu0 0.0
      %726 = vmatpush.msra.mxu0 %v709
      %727 = vmatmul.f32.gmra.mxu0 %v685
      %v728 = vpop.f32.mrf.mxu0
      %v729 = vadd.f32 0.0, %v728
      %730 = vmatmul.f32.gmra.mxu0 %v688
      %v731 = vpop.f32.mrf.mxu0
      %v732 = vadd.f32 0.0, %v731
      %733 = vmatmul.f32.gmra.mxu0 %v691
      %v734 = vpop.f32.mrf.mxu0
      %v735 = vadd.f32 0.0, %v734
      %736 = vmatmul.f32.gmra.mxu0 %v694
      %v737 = vpop.f32.mrf.mxu0
      %v738 = vadd.f32 0.0, %v737
      %739 = vmatmul.f32.gmra.mxu0 %v697
      %v740 = vpop.f32.mrf.mxu0
      %v741 = vadd.f32 0.0, %v740
      %742 = vmatmul.f32.gmra.mxu0 %v700
      %v743 = vpop.f32.mrf.mxu0
      %v744 = vadd.f32 0.0, %v743
      %745 = vmatmul.f32.gmra.mxu0 %v703
      %v746 = vpop.f32.mrf.mxu0
      %v747 = vadd.f32 0.0, %v746
      %748 = vmatmul.f32.gmra.mxu0 %v706
      %v749 = vpop.f32.mrf.mxu0
      %v750 = vadd.f32 0.0, %v749
      %751 = vdwg.mxu0
      %v752 = vadd.f32 %v666, %v729
      %v753 = vadd.f32 %v667, %v732
      %v754 = vadd.f32 %v668, %v735
      %v755 = vadd.f32 %v669, %v738
      %v756 = vadd.f32 %v670, %v741
      %v757 = vadd.f32 %v671, %v744
      %v758 = vadd.f32 %v672, %v747
      %v759 = vadd.f32 %v673, %v750
      %s760 = scalar_lea.vmem %s273, 288
      %v761 = vld [vmem:[%s760] sm:$0xff]
      %v762 = vld [vmem:[%s760 + $0x10] sm:$0xff]
      %v763 = vld [vmem:[%s760 + $0x20] sm:$0xff]
      %v764 = vld [vmem:[%s760 + $0x30] sm:$0xff]
      %v765 = vld [vmem:[%s760 + $0x40] sm:$0xff]
      %v766 = vld [vmem:[%s760 + $0x50] sm:$0xff]
      %v767 = vld [vmem:[%s760 + $0x60] sm:$0xff]
      %v768 = vld [vmem:[%s760 + $0x70] sm:$0xff]
      %s769 = scalar_lea.vmem %s5, 12
      %v770 = vld [vmem:[%s769] sm:$0xf]
      %v772 = vsel %vm423, %v761, 0
      %v775 = vsel %vm423, %v762, 0
      %v778 = vsel %vm423, %v763, 0
      %v781 = vsel %vm423, %v764, 0
      %v784 = vsel %vm423, %v765, 0
      %v787 = vsel %vm423, %v766, 0
      %v790 = vsel %vm423, %v767, 0
      %v793 = vsel %vm423, %v768, 0
      %v796 = vsel %vm534, %v770, 0
      %798 = vmatpush.msra.mxu0 0.0
      %799 = vmatpush.msra.mxu0 0.0
      %800 = vmatpush.msra.mxu0 0.0
      %801 = vmatpush.msra.mxu0 0.0
      %802 = vmatpush.msra.mxu0 0.0
      %803 = vmatpush.msra.mxu0 0.0
      %804 = vmatpush.msra.mxu0 0.0
      %805 = vmatpush.msra.mxu0 0.0
      %806 = vmatpush.msra.mxu0 0.0
      %807 = vmatpush.msra.mxu0 0.0
      %808 = vmatpush.msra.mxu0 0.0
      %809 = vmatpush.msra.mxu0 0.0
      %810 = vmatpush.msra.mxu0 0.0
      %811 = vmatpush.msra.mxu0 0.0
      %812 = vmatpush.msra.mxu0 0.0
      %813 = vmatpush.msra.mxu0 %v796
      %814 = vmatmul.f32.gmra.mxu0 %v772
      %v815 = vpop.f32.mrf.mxu0
      %v816 = vadd.f32 0.0, %v815
      %817 = vmatmul.f32.gmra.mxu0 %v775
      %v818 = vpop.f32.mrf.mxu0
      %v819 = vadd.f32 0.0, %v818
      %820 = vmatmul.f32.gmra.mxu0 %v778
      %v821 = vpop.f32.mrf.mxu0
      %v822 = vadd.f32 0.0, %v821
      %823 = vmatmul.f32.gmra.mxu0 %v781
      %v824 = vpop.f32.mrf.mxu0
      %v825 = vadd.f32 0.0, %v824
      %826 = vmatmul.f32.gmra.mxu0 %v784
      %v827 = vpop.f32.mrf.mxu0
      %v828 = vadd.f32 0.0, %v827
      %829 = vmatmul.f32.gmra.mxu0 %v787
      %v830 = vpop.f32.mrf.mxu0
      %v831 = vadd.f32 0.0, %v830
      %832 = vmatmul.f32.gmra.mxu0 %v790
      %v833 = vpop.f32.mrf.mxu0
      %v834 = vadd.f32 0.0, %v833
      %835 = vmatmul.f32.gmra.mxu0 %v793
      %v836 = vpop.f32.mrf.mxu0
      %v837 = vadd.f32 0.0, %v836
      %838 = vdwg.mxu0
      %v839 = vadd.f32 %v752, %v816
      %v840 = vadd.f32 %v753, %v819
      %v841 = vadd.f32 %v754, %v822
      %v842 = vadd.f32 %v755, %v825
      %v843 = vadd.f32 %v756, %v828
      %v844 = vadd.f32 %v757, %v831
      %v845 = vadd.f32 %v758, %v834
      %v846 = vadd.f32 %v759, %v837
      %s847 = scalar_lea.vmem %s273, 432
      %v848 = vld [vmem:[%s847] sm:$0xff]
      %v849 = vld [vmem:[%s847 + $0x10] sm:$0xff]
      %v850 = vld [vmem:[%s847 + $0x20] sm:$0xff]
      %v851 = vld [vmem:[%s847 + $0x30] sm:$0xff]
      %v852 = vld [vmem:[%s847 + $0x40] sm:$0xff]
      %v853 = vld [vmem:[%s847 + $0x50] sm:$0xff]
      %v854 = vld [vmem:[%s847 + $0x60] sm:$0xff]
      %v855 = vld [vmem:[%s847 + $0x70] sm:$0xff]
      %s856 = scalar_lea.vmem %s5, 16
      %v857 = vld [vmem:[%s856] sm:$0xf]
      %v859 = vsel %vm423, %v848, 0
      %v862 = vsel %vm423, %v849, 0
      %v865 = vsel %vm423, %v850, 0
      %v868 = vsel %vm423, %v851, 0
      %v871 = vsel %vm423, %v852, 0
      %v874 = vsel %vm423, %v853, 0
      %v877 = vsel %vm423, %v854, 0
      %v880 = vsel %vm423, %v855, 0
      %v883 = vsel %vm534, %v857, 0
      %885 = vmatpush.msra.mxu0 0.0
      %886 = vmatpush.msra.mxu0 0.0
      %887 = vmatpush.msra.mxu0 0.0
      %888 = vmatpush.msra.mxu0 0.0
      %889 = vmatpush.msra.mxu0 0.0
      %890 = vmatpush.msra.mxu0 0.0
      %891 = vmatpush.msra.mxu0 0.0
      %892 = vmatpush.msra.mxu0 0.0
      %893 = vmatpush.msra.mxu0 0.0
      %894 = vmatpush.msra.mxu0 0.0
      %895 = vmatpush.msra.mxu0 0.0
      %896 = vmatpush.msra.mxu0 0.0
      %897 = vmatpush.msra.mxu0 0.0
      %898 = vmatpush.msra.mxu0 0.0
      %899 = vmatpush.msra.mxu0 0.0
      %900 = vmatpush.msra.mxu0 %v883
      %901 = vmatmul.f32.gmra.mxu0 %v859
      %v902 = vpop.f32.mrf.mxu0
      %v903 = vadd.f32 0.0, %v902
      %904 = vmatmul.f32.gmra.mxu0 %v862
      %v905 = vpop.f32.mrf.mxu0
      %v906 = vadd.f32 0.0, %v905
      %907 = vmatmul.f32.gmra.mxu0 %v865
      %v908 = vpop.f32.mrf.mxu0
      %v909 = vadd.f32 0.0, %v908
      %910 = vmatmul.f32.gmra.mxu0 %v868
      %v911 = vpop.f32.mrf.mxu0
      %v912 = vadd.f32 0.0, %v911
      %913 = vmatmul.f32.gmra.mxu0 %v871
      %v914 = vpop.f32.mrf.mxu0
      %v915 = vadd.f32 0.0, %v914
      %916 = vmatmul.f32.gmra.mxu0 %v874
      %v917 = vpop.f32.mrf.mxu0
      %v918 = vadd.f32 0.0, %v917
      %919 = vmatmul.f32.gmra.mxu0 %v877
      %v920 = vpop.f32.mrf.mxu0
      %v921 = vadd.f32 0.0, %v920
      %922 = vmatmul.f32.gmra.mxu0 %v880
      %v923 = vpop.f32.mrf.mxu0
      %v924 = vadd.f32 0.0, %v923
      %925 = vdwg.mxu0
      %v926 = vadd.f32 %v839, %v903
      %v927 = vadd.f32 %v840, %v906
      %v928 = vadd.f32 %v841, %v909
      %v929 = vadd.f32 %v842, %v912
      %v930 = vadd.f32 %v843, %v915
      %v931 = vadd.f32 %v844, %v918
      %v932 = vadd.f32 %v845, %v921
      %v933 = vadd.f32 %v846, %v924
      %v934 = vld [vmem:[%s760 + $0x1] sm:$0xff]
      %v935 = vld [vmem:[%s760 + $0x11] sm:$0xff]
      %v936 = vld [vmem:[%s760 + $0x21] sm:$0xff]
      %v937 = vld [vmem:[%s760 + $0x31] sm:$0xff]
      %v938 = vld [vmem:[%s760 + $0x41] sm:$0xff]
      %v939 = vld [vmem:[%s760 + $0x51] sm:$0xff]
      %v940 = vld [vmem:[%s760 + $0x61] sm:$0xff]
      %v941 = vld [vmem:[%s760 + $0x71] sm:$0xff]
      %s942 = scalar_lea.vmem %s5, 20
      %v943 = vld [vmem:[%s942] sm:$0xf]
      %v945 = vsel %vm423, %v934, 0
      %v948 = vsel %vm423, %v935, 0
      %v951 = vsel %vm423, %v936, 0
      %v954 = vsel %vm423, %v937, 0
      %v957 = vsel %vm423, %v938, 0
      %v960 = vsel %vm423, %v939, 0
      %v963 = vsel %vm423, %v940, 0
      %v966 = vsel %vm423, %v941, 0
      %v969 = vsel %vm534, %v943, 0
      %971 = vmatpush.msra.mxu0 0.0
      %972 = vmatpush.msra.mxu0 0.0
      %973 = vmatpush.msra.mxu0 0.0
      %974 = vmatpush.msra.mxu0 0.0
      %975 = vmatpush.msra.mxu0 0.0
      %976 = vmatpush.msra.mxu0 0.0
      %977 = vmatpush.msra.mxu0 0.0
      %978 = vmatpush.msra.mxu0 0.0
      %979 = vmatpush.msra.mxu0 0.0
      %980 = vmatpush.msra.mxu0 0.0
      %981 = vmatpush.msra.mxu0 0.0
      %982 = vmatpush.msra.mxu0 0.0
      %983 = vmatpush.msra.mxu0 0.0
      %984 = vmatpush.msra.mxu0 0.0
      %985 = vmatpush.msra.mxu0 0.0
      %986 = vmatpush.msra.mxu0 %v969
      %987 = vmatmul.f32.gmra.mxu0 %v945
      %v988 = vpop.f32.mrf.mxu0
      %v989 = vadd.f32 0.0, %v988
      %990 = vmatmul.f32.gmra.mxu0 %v948
      %v991 = vpop.f32.mrf.mxu0
      %v992 = vadd.f32 0.0, %v991
      %993 = vmatmul.f32.gmra.mxu0 %v951
      %v994 = vpop.f32.mrf.mxu0
      %v995 = vadd.f32 0.0, %v994
      %996 = vmatmul.f32.gmra.mxu0 %v954
      %v997 = vpop.f32.mrf.mxu0
      %v998 = vadd.f32 0.0, %v997
      %999 = vmatmul.f32.gmra.mxu0 %v957
      %v1000 = vpop.f32.mrf.mxu0
      %v1001 = vadd.f32 0.0, %v1000
      %1002 = vmatmul.f32.gmra.mxu0 %v960
      %v1003 = vpop.f32.mrf.mxu0
      %v1004 = vadd.f32 0.0, %v1003
      %1005 = vmatmul.f32.gmra.mxu0 %v963
      %v1006 = vpop.f32.mrf.mxu0
      %v1007 = vadd.f32 0.0, %v1006
      %1008 = vmatmul.f32.gmra.mxu0 %v966
      %v1009 = vpop.f32.mrf.mxu0
      %v1010 = vadd.f32 0.0, %v1009
      %1011 = vdwg.mxu0
      %v1012 = vadd.f32 %v926, %v989
      %v1013 = vadd.f32 %v927, %v992
      %v1014 = vadd.f32 %v928, %v995
      %v1015 = vadd.f32 %v929, %v998
      %v1016 = vadd.f32 %v930, %v1001
      %v1017 = vadd.f32 %v931, %v1004
      %v1018 = vadd.f32 %v932, %v1007
      %v1019 = vadd.f32 %v933, %v1010
      %s1020 = scalar_lea.vmem %s273, 16
      %v1021 = vld [vmem:[%s1020] sm:$0xff]
      %v1022 = vld [vmem:[%s1020 + $0x10] sm:$0xff]
      %v1023 = vld [vmem:[%s1020 + $0x20] sm:$0xff]
      %v1024 = vld [vmem:[%s1020 + $0x30] sm:$0xff]
      %v1025 = vld [vmem:[%s1020 + $0x40] sm:$0xff]
      %v1026 = vld [vmem:[%s1020 + $0x50] sm:$0xff]
      %v1027 = vld [vmem:[%s1020 + $0x60] sm:$0xff]
      %v1028 = vld [vmem:[%s1020 + $0x70] sm:$0xff]
      %s1029 = scalar_lea.vmem %s5, 24
      %v1030 = vld [vmem:[%s1029] sm:$0xf]
      %v1032 = vsel %vm423, %v1021, 0
      %v1035 = vsel %vm423, %v1022, 0
      %v1038 = vsel %vm423, %v1023, 0
      %v1041 = vsel %vm423, %v1024, 0
      %v1044 = vsel %vm423, %v1025, 0
      %v1047 = vsel %vm423, %v1026, 0
      %v1050 = vsel %vm423, %v1027, 0
      %v1053 = vsel %vm423, %v1028, 0
      %v1056 = vsel %vm534, %v1030, 0
      %1058 = vmatpush.msra.mxu0 0.0
      %1059 = vmatpush.msra.mxu0 0.0
      %1060 = vmatpush.msra.mxu0 0.0
      %1061 = vmatpush.msra.mxu0 0.0
      %1062 = vmatpush.msra.mxu0 0.0
      %1063 = vmatpush.msra.mxu0 0.0
      %1064 = vmatpush.msra.mxu0 0.0
      %1065 = vmatpush.msra.mxu0 0.0
      %1066 = vmatpush.msra.mxu0 0.0
      %1067 = vmatpush.msra.mxu0 0.0
      %1068 = vmatpush.msra.mxu0 0.0
      %1069 = vmatpush.msra.mxu0 0.0
      %1070 = vmatpush.msra.mxu0 0.0
      %1071 = vmatpush.msra.mxu0 0.0
      %1072 = vmatpush.msra.mxu0 0.0
      %1073 = vmatpush.msra.mxu0 %v1056
      %1074 = vmatmul.f32.gmra.mxu0 %v1032
      %v1075 = vpop.f32.mrf.mxu0
      %v1076 = vadd.f32 0.0, %v1075
      %1077 = vmatmul.f32.gmra.mxu0 %v1035
      %v1078 = vpop.f32.mrf.mxu0
      %v1079 = vadd.f32 0.0, %v1078
      %1080 = vmatmul.f32.gmra.mxu0 %v1038
      %v1081 = vpop.f32.mrf.mxu0
      %v1082 = vadd.f32 0.0, %v1081
      %1083 = vmatmul.f32.gmra.mxu0 %v1041
      %v1084 = vpop.f32.mrf.mxu0
      %v1085 = vadd.f32 0.0, %v1084
      %1086 = vmatmul.f32.gmra.mxu0 %v1044
      %v1087 = vpop.f32.mrf.mxu0
      %v1088 = vadd.f32 0.0, %v1087
      %1089 = vmatmul.f32.gmra.mxu0 %v1047
      %v1090 = vpop.f32.mrf.mxu0
      %v1091 = vadd.f32 0.0, %v1090
      %1092 = vmatmul.f32.gmra.mxu0 %v1050
      %v1093 = vpop.f32.mrf.mxu0
      %v1094 = vadd.f32 0.0, %v1093
      %1095 = vmatmul.f32.gmra.mxu0 %v1053
      %v1096 = vpop.f32.mrf.mxu0
      %v1097 = vadd.f32 0.0, %v1096
      %1098 = vdwg.mxu0
      %v1099 = vadd.f32 %v1012, %v1076
      %v1100 = vadd.f32 %v1013, %v1079
      %v1101 = vadd.f32 %v1014, %v1082
      %v1102 = vadd.f32 %v1015, %v1085
      %v1103 = vadd.f32 %v1016, %v1088
      %v1104 = vadd.f32 %v1017, %v1091
      %v1105 = vadd.f32 %v1018, %v1094
      %v1106 = vadd.f32 %v1019, %v1097
      %s1107 = scalar_lea.vmem %s273, 160
      %v1108 = vld [vmem:[%s1107] sm:$0xff]
      %v1109 = vld [vmem:[%s1107 + $0x10] sm:$0xff]
      %v1110 = vld [vmem:[%s1107 + $0x20] sm:$0xff]
      %v1111 = vld [vmem:[%s1107 + $0x30] sm:$0xff]
      %v1112 = vld [vmem:[%s1107 + $0x40] sm:$0xff]
      %v1113 = vld [vmem:[%s1107 + $0x50] sm:$0xff]
      %v1114 = vld [vmem:[%s1107 + $0x60] sm:$0xff]
      %v1115 = vld [vmem:[%s1107 + $0x70] sm:$0xff]
      %s1116 = scalar_lea.vmem %s5, 28
      %v1117 = vld [vmem:[%s1116] sm:$0xf]
      %v1119 = vsel %vm423, %v1108, 0
      %v1122 = vsel %vm423, %v1109, 0
      %v1125 = vsel %vm423, %v1110, 0
      %v1128 = vsel %vm423, %v1111, 0
      %v1131 = vsel %vm423, %v1112, 0
      %v1134 = vsel %vm423, %v1113, 0
      %v1137 = vsel %vm423, %v1114, 0
      %v1140 = vsel %vm423, %v1115, 0
      %v1143 = vsel %vm534, %v1117, 0
      %1145 = vmatpush.msra.mxu0 0.0
      %1146 = vmatpush.msra.mxu0 0.0
      %1147 = vmatpush.msra.mxu0 0.0
      %1148 = vmatpush.msra.mxu0 0.0
      %1149 = vmatpush.msra.mxu0 0.0
      %1150 = vmatpush.msra.mxu0 0.0
      %1151 = vmatpush.msra.mxu0 0.0
      %1152 = vmatpush.msra.mxu0 0.0
      %1153 = vmatpush.msra.mxu0 0.0
      %1154 = vmatpush.msra.mxu0 0.0
      %1155 = vmatpush.msra.mxu0 0.0
      %1156 = vmatpush.msra.mxu0 0.0
      %1157 = vmatpush.msra.mxu0 0.0
      %1158 = vmatpush.msra.mxu0 0.0
      %1159 = vmatpush.msra.mxu0 0.0
      %1160 = vmatpush.msra.mxu0 %v1143
      %1161 = vmatmul.f32.gmra.mxu0 %v1119
      %v1162 = vpop.f32.mrf.mxu0
      %v1163 = vadd.f32 0.0, %v1162
      %1164 = vmatmul.f32.gmra.mxu0 %v1122
      %v1165 = vpop.f32.mrf.mxu0
      %v1166 = vadd.f32 0.0, %v1165
      %1167 = vmatmul.f32.gmra.mxu0 %v1125
      %v1168 = vpop.f32.mrf.mxu0
      %v1169 = vadd.f32 0.0, %v1168
      %1170 = vmatmul.f32.gmra.mxu0 %v1128
      %v1171 = vpop.f32.mrf.mxu0
      %v1172 = vadd.f32 0.0, %v1171
      %1173 = vmatmul.f32.gmra.mxu0 %v1131
      %v1174 = vpop.f32.mrf.mxu0
      %v1175 = vadd.f32 0.0, %v1174
      %1176 = vmatmul.f32.gmra.mxu0 %v1134
      %v1177 = vpop.f32.mrf.mxu0
      %v1178 = vadd.f32 0.0, %v1177
      %1179 = vmatmul.f32.gmra.mxu0 %v1137
      %v1180 = vpop.f32.mrf.mxu0
      %v1181 = vadd.f32 0.0, %v1180
      %1182 = vmatmul.f32.gmra.mxu0 %v1140
      %v1183 = vpop.f32.mrf.mxu0
      %v1184 = vadd.f32 0.0, %v1183
      %1185 = vdwg.mxu0
      %v1186 = vadd.f32 %v1099, %v1163
      %v1187 = vadd.f32 %v1100, %v1166
      %v1188 = vadd.f32 %v1101, %v1169
      %v1189 = vadd.f32 %v1102, %v1172
      %v1190 = vadd.f32 %v1103, %v1175
      %v1191 = vadd.f32 %v1104, %v1178
      %v1192 = vadd.f32 %v1105, %v1181
      %v1193 = vadd.f32 %v1106, %v1184
      %v1194 = vld [vmem:[%s1020 + $0x1] sm:$0xff]
      %v1195 = vld [vmem:[%s1020 + $0x11] sm:$0xff]
      %v1196 = vld [vmem:[%s1020 + $0x21] sm:$0xff]
      %v1197 = vld [vmem:[%s1020 + $0x31] sm:$0xff]
      %v1198 = vld [vmem:[%s1020 + $0x41] sm:$0xff]
      %v1199 = vld [vmem:[%s1020 + $0x51] sm:$0xff]
      %v1200 = vld [vmem:[%s1020 + $0x61] sm:$0xff]
      %v1201 = vld [vmem:[%s1020 + $0x71] sm:$0xff]
      %s1202 = scalar_lea.vmem %s5, 32
      %v1203 = vld [vmem:[%s1202] sm:$0xf]
      %v1205 = vsel %vm423, %v1194, 0
      %v1208 = vsel %vm423, %v1195, 0
      %v1211 = vsel %vm423, %v1196, 0
      %v1214 = vsel %vm423, %v1197, 0
      %v1217 = vsel %vm423, %v1198, 0
      %v1220 = vsel %vm423, %v1199, 0
      %v1223 = vsel %vm423, %v1200, 0
      %v1226 = vsel %vm423, %v1201, 0
      %v1229 = vsel %vm534, %v1203, 0
      %1231 = vmatpush.msra.mxu0 0.0
      %1232 = vmatpush.msra.mxu0 0.0
      %1233 = vmatpush.msra.mxu0 0.0
      %1234 = vmatpush.msra.mxu0 0.0
      %1235 = vmatpush.msra.mxu0 0.0
      %1236 = vmatpush.msra.mxu0 0.0
      %1237 = vmatpush.msra.mxu0 0.0
      %1238 = vmatpush.msra.mxu0 0.0
      %1239 = vmatpush.msra.mxu0 0.0
      %1240 = vmatpush.msra.mxu0 0.0
      %1241 = vmatpush.msra.mxu0 0.0
      %1242 = vmatpush.msra.mxu0 0.0
      %1243 = vmatpush.msra.mxu0 0.0
      %1244 = vmatpush.msra.mxu0 0.0
      %1245 = vmatpush.msra.mxu0 0.0
      %1246 = vmatpush.msra.mxu0 %v1229
      %1247 = vmatmul.f32.gmra.mxu0 %v1205
      %v1248 = vpop.f32.mrf.mxu0
      %v1249 = vadd.f32 0.0, %v1248
      %1250 = vmatmul.f32.gmra.mxu0 %v1208
      %v1251 = vpop.f32.mrf.mxu0
      %v1252 = vadd.f32 0.0, %v1251
      %1253 = vmatmul.f32.gmra.mxu0 %v1211
      %v1254 = vpop.f32.mrf.mxu0
      %v1255 = vadd.f32 0.0, %v1254
      %1256 = vmatmul.f32.gmra.mxu0 %v1214
      %v1257 = vpop.f32.mrf.mxu0
      %v1258 = vadd.f32 0.0, %v1257
      %1259 = vmatmul.f32.gmra.mxu0 %v1217
      %v1260 = vpop.f32.mrf.mxu0
      %v1261 = vadd.f32 0.0, %v1260
      %1262 = vmatmul.f32.gmra.mxu0 %v1220
      %v1263 = vpop.f32.mrf.mxu0
      %v1264 = vadd.f32 0.0, %v1263
      %1265 = vmatmul.f32.gmra.mxu0 %v1223
      %v1266 = vpop.f32.mrf.mxu0
      %v1267 = vadd.f32 0.0, %v1266
      %1268 = vmatmul.f32.gmra.mxu0 %v1226
      %v1269 = vpop.f32.mrf.mxu0
      %v1270 = vadd.f32 0.0, %v1269
      %1271 = vdwg.mxu0
      %v1272 = vadd.f32 %v1186, %v1249
      %v1273 = vadd.f32 %v1187, %v1252
      %v1274 = vadd.f32 %v1188, %v1255
      %v1275 = vadd.f32 %v1189, %v1258
      %v1276 = vadd.f32 %v1190, %v1261
      %v1277 = vadd.f32 %v1191, %v1264
      %v1278 = vadd.f32 %v1192, %v1267
      %v1279 = vadd.f32 %v1193, %v1270
      %1280 = vst.msk [vmem:[#allocation3] sm:$0xff] %vm423, 0.0
      %1281 = vst.msk [vmem:[#allocation3 + $0x8] sm:$0x1] %vm425, 0.0
      %1282 = vst.msk [vmem:[#allocation3 + $0x10] sm:$0xff] %vm423, 0.0
      %1283 = vst.msk [vmem:[#allocation3 + $0x18] sm:$0x1] %vm425, 0.0
      %1284 = vst.msk [vmem:[#allocation3 + $0x20] sm:$0xff] %vm423, 0.0
      %1285 = vst.msk [vmem:[#allocation3 + $0x28] sm:$0x1] %vm425, 0.0
      %1286 = vst.msk [vmem:[#allocation3 + $0x30] sm:$0xff] %vm423, 0.0
      %1287 = vst.msk [vmem:[#allocation3 + $0x38] sm:$0x1] %vm425, 0.0
      %1288 = vst.msk [vmem:[#allocation3 + $0x40] sm:$0xff] %vm423, 0.0
      %1289 = vst.msk [vmem:[#allocation3 + $0x48] sm:$0x1] %vm425, 0.0
      %1290 = vst.msk [vmem:[#allocation3 + $0x50] sm:$0xff] %vm423, 0.0
      %1291 = vst.msk [vmem:[#allocation3 + $0x58] sm:$0x1] %vm425, 0.0
      %1292 = vst.msk [vmem:[#allocation3 + $0x60] sm:$0xff] %vm423, 0.0
      %1293 = vst.msk [vmem:[#allocation3 + $0x68] sm:$0x1] %vm425, 0.0
      %1294 = vst.msk [vmem:[#allocation3 + $0x70] sm:$0xff] %vm423, 0.0
      %1295 = vst.msk [vmem:[#allocation3 + $0x78] sm:$0x1] %vm425, 0.0
      %1296 = vst.msk [vmem:[#allocation3 + $0x80] sm:$0xff] %vm423, 0.0
      %1297 = vst.msk [vmem:[#allocation3 + $0x88] sm:$0x1] %vm425, 0.0
      %1298 = vst.msk [vmem:[#allocation3 + $0x90] sm:$0xff] %vm423, 0.0
      %1299 = vst.msk [vmem:[#allocation3 + $0x98] sm:$0x1] %vm425, 0.0
      %1300 = vst.msk [vmem:[#allocation3 + $0xa0] sm:$0xff] %vm423, 0.0
      %1301 = vst.msk [vmem:[#allocation3 + $0xa8] sm:$0x1] %vm425, 0.0
      %1302 = vst.msk [vmem:[#allocation3 + $0xb0] sm:$0xff] %vm423, 0.0
      %1303 = vst.msk [vmem:[#allocation3 + $0xb8] sm:$0x1] %vm425, 0.0
      %1304 = vst.msk [vmem:[#allocation3 + $0xc0] sm:$0xff] %vm423, 0.0
      %1305 = vst.msk [vmem:[#allocation3 + $0xc8] sm:$0x1] %vm425, 0.0
      %1306 = vst.msk [vmem:[#allocation3 + $0xd0] sm:$0xff] %vm423, 0.0
      %1307 = vst.msk [vmem:[#allocation3 + $0xd8] sm:$0x1] %vm425, 0.0
      %1308 = vst.msk [vmem:[#allocation3 + $0xe0] sm:$0xff] %vm423, 0.0
      %1309 = vst.msk [vmem:[#allocation3 + $0xe8] sm:$0x1] %vm425, 0.0
      %1310 = vst.msk [vmem:[#allocation3 + $0xf0] sm:$0xff] %vm423, 0.0
      %1311 = vst.msk [vmem:[#allocation3 + $0xf8] sm:$0x1] %vm425, 0.0
      %1312 = vst.msk [vmem:[#allocation3 + $0x100] sm:$0xff] %vm423, 0.0
      %1313 = vst.msk [vmem:[#allocation3 + $0x108] sm:$0x1] %vm425, 0.0
      %1314 = vst.msk [vmem:[#allocation3 + $0x110] sm:$0xff] %vm423, 0.0
      %1315 = vst.msk [vmem:[#allocation3 + $0x118] sm:$0x1] %vm425, 0.0
      %1316 = vst.msk [vmem:[#allocation3 + $0x120] sm:$0xff] %vm423, 0.0
      %1317 = vst.msk [vmem:[#allocation3 + $0x128] sm:$0x1] %vm425, 0.0
      %1318 = vst.msk [vmem:[#allocation3 + $0x130] sm:$0xff] %vm423, 0.0
      %1319 = vst.msk [vmem:[#allocation3 + $0x138] sm:$0x1] %vm425, 0.0
      %1320 = vst.msk [vmem:[#allocation3 + $0x140] sm:$0xff] %vm423, 0.0
      %1321 = vst.msk [vmem:[#allocation3 + $0x148] sm:$0x1] %vm425, 0.0
      %1322 = vst.msk [vmem:[#allocation3 + $0x150] sm:$0xff] %vm423, 0.0
      %1323 = vst.msk [vmem:[#allocation3 + $0x158] sm:$0x1] %vm425, 0.0
      %1324 = vst.msk [vmem:[#allocation3 + $0x160] sm:$0xff] %vm423, 0.0
      %1325 = vst.msk [vmem:[#allocation3 + $0x168] sm:$0x1] %vm425, 0.0
      %1326 = vst.msk [vmem:[#allocation3 + $0x170] sm:$0xff] %vm423, 0.0
      %1327 = vst.msk [vmem:[#allocation3 + $0x178] sm:$0x1] %vm425, 0.0
      %1328 = vst.msk [vmem:[#allocation3 + $0x180] sm:$0xff] %vm423, 0.0
      %1329 = vst.msk [vmem:[#allocation3 + $0x188] sm:$0x1] %vm425, 0.0
      %1330 = vst.msk [vmem:[#allocation3 + $0x190] sm:$0xff] %vm423, 0.0
      %1331 = vst.msk [vmem:[#allocation3 + $0x198] sm:$0x1] %vm425, 0.0
      %1332 = vst.msk [vmem:[#allocation3 + $0x1a0] sm:$0xff] %vm423, 0.0
      %1333 = vst.msk [vmem:[#allocation3 + $0x1a8] sm:$0x1] %vm425, 0.0
      %1334 = vst.msk [vmem:[#allocation3 + $0x1b0] sm:$0xff] %vm423, 0.0
      %1335 = vst.msk [vmem:[#allocation3 + $0x1b8] sm:$0x1] %vm425, 0.0
      %1336 = vst.msk [vmem:[#allocation3 + $0x1c0] sm:$0xff] %vm423, 0.0
      %1337 = vst.msk [vmem:[#allocation3 + $0x1c8] sm:$0x1] %vm425, 0.0
      %1338 = vst.msk [vmem:[#allocation3 + $0x1d0] sm:$0xff] %vm423, 0.0
      %1339 = vst.msk [vmem:[#allocation3 + $0x1d8] sm:$0x1] %vm425, 0.0
      %1340 = vst.msk [vmem:[#allocation3 + $0x1e0] sm:$0xff] %vm423, 0.0
      %1341 = vst.msk [vmem:[#allocation3 + $0x1e8] sm:$0x1] %vm425, 0.0
      %1342 = vst.msk [vmem:[#allocation3 + $0x1f0] sm:$0xff] %vm423, 0.0
      %1343 = vst.msk [vmem:[#allocation3 + $0x1f8] sm:$0x1] %vm425, 0.0
      %1344 = vst.msk [vmem:[#allocation3 + $0x200] sm:$0xff] %vm423, 0.0
      %1345 = vst.msk [vmem:[#allocation3 + $0x208] sm:$0x1] %vm425, 0.0
      %1346 = vst.msk [vmem:[#allocation3 + $0x210] sm:$0xff] %vm423, 0.0
      %1347 = vst.msk [vmem:[#allocation3 + $0x218] sm:$0x1] %vm425, 0.0
      %1348 = vst.msk [vmem:[#allocation3 + $0x220] sm:$0xff] %vm423, 0.0
      %1349 = vst.msk [vmem:[#allocation3 + $0x228] sm:$0x1] %vm425, 0.0
      %1350 = vst.msk [vmem:[#allocation3 + $0x230] sm:$0xff] %vm423, 0.0
      %1351 = vst.msk [vmem:[#allocation3 + $0x238] sm:$0x1] %vm425, 0.0
      %v1352 = vld [vmem:[%s2] sm:$0x1]
      %v1354 = vperm.slane %v1352, 0
      %v1356 = vld [vmem:[#allocation2] sm:$0xff]
      %v1357 = vld [vmem:[#allocation2 + $0x10] sm:$0xff]
      %v1358 = vld [vmem:[#allocation2 + $0x20] sm:$0xff]
      %v1359 = vld [vmem:[#allocation2 + $0x30] sm:$0xff]
      %v1360 = vld [vmem:[#allocation2 + $0x40] sm:$0xff]
      %v1361 = vld [vmem:[#allocation2 + $0x50] sm:$0xff]
      %v1362 = vld [vmem:[#allocation2 + $0x60] sm:$0xff]
      %v1363 = vld [vmem:[#allocation2 + $0x70] sm:$0xff]
      %v1364 = vld [vmem:[%s1] sm:$0xf]
      %v1366 = vsel %vm423, %v1356, 0
      %v1369 = vsel %vm423, %v1357, 0
      %v1372 = vsel %vm423, %v1358, 0
      %v1375 = vsel %vm423, %v1359, 0
      %v1378 = vsel %vm423, %v1360, 0
      %v1381 = vsel %vm423, %v1361, 0
      %v1384 = vsel %vm423, %v1362, 0
      %v1387 = vsel %vm423, %v1363, 0
      %v1390 = vsel %vm534, %v1364, 0
      %1392 = vmatpush.msra.mxu0 0.0
      %1393 = vmatpush.msra.mxu0 0.0
      %1394 = vmatpush.msra.mxu0 0.0
      %1395 = vmatpush.msra.mxu0 0.0
      %1396 = vmatpush.msra.mxu0 0.0
      %1397 = vmatpush.msra.mxu0 0.0
      %1398 = vmatpush.msra.mxu0 0.0
      %1399 = vmatpush.msra.mxu0 0.0
      %1400 = vmatpush.msra.mxu0 0.0
      %1401 = vmatpush.msra.mxu0 0.0
      %1402 = vmatpush.msra.mxu0 0.0
      %1403 = vmatpush.msra.mxu0 0.0
      %1404 = vmatpush.msra.mxu0 0.0
      %1405 = vmatpush.msra.mxu0 0.0
      %1406 = vmatpush.msra.mxu0 0.0
      %1407 = vmatpush.msra.mxu0 %v1390
      %1408 = vmatmul.f32.gmra.mxu0 %v1366
      %v1409 = vpop.f32.mrf.mxu0
      %v1410 = vadd.f32 0.0, %v1409
      %1411 = vmatmul.f32.gmra.mxu0 %v1369
      %v1412 = vpop.f32.mrf.mxu0
      %v1413 = vadd.f32 0.0, %v1412
      %1414 = vmatmul.f32.gmra.mxu0 %v1372
      %v1415 = vpop.f32.mrf.mxu0
      %v1416 = vadd.f32 0.0, %v1415
      %1417 = vmatmul.f32.gmra.mxu0 %v1375
      %v1418 = vpop.f32.mrf.mxu0
      %v1419 = vadd.f32 0.0, %v1418
      %1420 = vmatmul.f32.gmra.mxu0 %v1378
      %v1421 = vpop.f32.mrf.mxu0
      %v1422 = vadd.f32 0.0, %v1421
      %1423 = vmatmul.f32.gmra.mxu0 %v1381
      %v1424 = vpop.f32.mrf.mxu0
      %v1425 = vadd.f32 0.0, %v1424
      %1426 = vmatmul.f32.gmra.mxu0 %v1384
      %v1427 = vpop.f32.mrf.mxu0
      %v1428 = vadd.f32 0.0, %v1427
      %1429 = vmatmul.f32.gmra.mxu0 %v1387
      %v1430 = vpop.f32.mrf.mxu0
      %v1431 = vadd.f32 0.0, %v1430
      %1432 = vdwg.mxu0
      %v1433 = vadd.f32 %v1354, %v1410
      %v1434 = vadd.f32 %v1354, %v1413
      %v1435 = vadd.f32 %v1354, %v1416
      %v1436 = vadd.f32 %v1354, %v1419
      %v1437 = vadd.f32 %v1354, %v1422
      %v1438 = vadd.f32 %v1354, %v1425
      %v1439 = vadd.f32 %v1354, %v1428
      %v1440 = vadd.f32 %v1354, %v1431
      %s1441 = scalar_lea.vmem [#allocation2], 144
      %v1442 = vld [vmem:[%s1441] sm:$0xff]
      %v1443 = vld [vmem:[%s1441 + $0x10] sm:$0xff]
      %v1444 = vld [vmem:[%s1441 + $0x20] sm:$0xff]
      %v1445 = vld [vmem:[%s1441 + $0x30] sm:$0xff]
      %v1446 = vld [vmem:[%s1441 + $0x40] sm:$0xff]
      %v1447 = vld [vmem:[%s1441 + $0x50] sm:$0xff]
      %v1448 = vld [vmem:[%s1441 + $0x60] sm:$0xff]
      %v1449 = vld [vmem:[%s1441 + $0x70] sm:$0xff]
      %s1450 = scalar_lea.vmem %s1, 4
      %v1451 = vld [vmem:[%s1450] sm:$0xf]
      %v1453 = vsel %vm423, %v1442, 0
      %v1456 = vsel %vm423, %v1443, 0
      %v1459 = vsel %vm423, %v1444, 0
      %v1462 = vsel %vm423, %v1445, 0
      %v1465 = vsel %vm423, %v1446, 0
      %v1468 = vsel %vm423, %v1447, 0
      %v1471 = vsel %vm423, %v1448, 0
      %v1474 = vsel %vm423, %v1449, 0
      %v1477 = vsel %vm534, %v1451, 0
      %1479 = vmatpush.msra.mxu0 0.0
      %1480 = vmatpush.msra.mxu0 0.0
      %1481 = vmatpush.msra.mxu0 0.0
      %1482 = vmatpush.msra.mxu0 0.0
      %1483 = vmatpush.msra.mxu0 0.0
      %1484 = vmatpush.msra.mxu0 0.0
      %1485 = vmatpush.msra.mxu0 0.0
      %1486 = vmatpush.msra.mxu0 0.0
      %1487 = vmatpush.msra.mxu0 0.0
      %1488 = vmatpush.msra.mxu0 0.0
      %1489 = vmatpush.msra.mxu0 0.0
      %1490 = vmatpush.msra.mxu0 0.0
      %1491 = vmatpush.msra.mxu0 0.0
      %1492 = vmatpush.msra.mxu0 0.0
      %1493 = vmatpush.msra.mxu0 0.0
      %1494 = vmatpush.msra.mxu0 %v1477
      %1495 = vmatmul.f32.gmra.mxu0 %v1453
      %v1496 = vpop.f32.mrf.mxu0
      %v1497 = vadd.f32 0.0, %v1496
      %1498 = vmatmul.f32.gmra.mxu0 %v1456
      %v1499 = vpop.f32.mrf.mxu0
      %v1500 = vadd.f32 0.0, %v1499
      %1501 = vmatmul.f32.gmra.mxu0 %v1459
      %v1502 = vpop.f32.mrf.mxu0
      %v1503 = vadd.f32 0.0, %v1502
      %1504 = vmatmul.f32.gmra.mxu0 %v1462
      %v1505 = vpop.f32.mrf.mxu0
      %v1506 = vadd.f32 0.0, %v1505
      %1507 = vmatmul.f32.gmra.mxu0 %v1465
      %v1508 = vpop.f32.mrf.mxu0
      %v1509 = vadd.f32 0.0, %v1508
      %1510 = vmatmul.f32.gmra.mxu0 %v1468
      %v1511 = vpop.f32.mrf.mxu0
      %v1512 = vadd.f32 0.0, %v1511
      %1513 = vmatmul.f32.gmra.mxu0 %v1471
      %v1514 = vpop.f32.mrf.mxu0
      %v1515 = vadd.f32 0.0, %v1514
      %1516 = vmatmul.f32.gmra.mxu0 %v1474
      %v1517 = vpop.f32.mrf.mxu0
      %v1518 = vadd.f32 0.0, %v1517
      %1519 = vdwg.mxu0
      %v1520 = vadd.f32 %v1433, %v1497
      %v1521 = vadd.f32 %v1434, %v1500
      %v1522 = vadd.f32 %v1435, %v1503
      %v1523 = vadd.f32 %v1436, %v1506
      %v1524 = vadd.f32 %v1437, %v1509
      %v1525 = vadd.f32 %v1438, %v1512
      %v1526 = vadd.f32 %v1439, %v1515
      %v1527 = vadd.f32 %v1440, %v1518
      %v1528 = vld [vmem:[#allocation2 + $0x1] sm:$0xff]
      %v1529 = vld [vmem:[#allocation2 + $0x11] sm:$0xff]
      %v1530 = vld [vmem:[#allocation2 + $0x21] sm:$0xff]
      %v1531 = vld [vmem:[#allocation2 + $0x31] sm:$0xff]
      %v1532 = vld [vmem:[#allocation2 + $0x41] sm:$0xff]
      %v1533 = vld [vmem:[#allocation2 + $0x51] sm:$0xff]
      %v1534 = vld [vmem:[#allocation2 + $0x61] sm:$0xff]
      %v1535 = vld [vmem:[#allocation2 + $0x71] sm:$0xff]
      %s1536 = scalar_lea.vmem %s1, 8
      %v1537 = vld [vmem:[%s1536] sm:$0xf]
      %v1539 = vsel %vm423, %v1528, 0
      %v1542 = vsel %vm423, %v1529, 0
      %v1545 = vsel %vm423, %v1530, 0
      %v1548 = vsel %vm423, %v1531, 0
      %v1551 = vsel %vm423, %v1532, 0
      %v1554 = vsel %vm423, %v1533, 0
      %v1557 = vsel %vm423, %v1534, 0
      %v1560 = vsel %vm423, %v1535, 0
      %v1563 = vsel %vm534, %v1537, 0
      %1565 = vmatpush.msra.mxu0 0.0
      %1566 = vmatpush.msra.mxu0 0.0
      %1567 = vmatpush.msra.mxu0 0.0
      %1568 = vmatpush.msra.mxu0 0.0
      %1569 = vmatpush.msra.mxu0 0.0
      %1570 = vmatpush.msra.mxu0 0.0
      %1571 = vmatpush.msra.mxu0 0.0
      %1572 = vmatpush.msra.mxu0 0.0
      %1573 = vmatpush.msra.mxu0 0.0
      %1574 = vmatpush.msra.mxu0 0.0
      %1575 = vmatpush.msra.mxu0 0.0
      %1576 = vmatpush.msra.mxu0 0.0
      %1577 = vmatpush.msra.mxu0 0.0
      %1578 = vmatpush.msra.mxu0 0.0
      %1579 = vmatpush.msra.mxu0 0.0
      %1580 = vmatpush.msra.mxu0 %v1563
      %1581 = vmatmul.f32.gmra.mxu0 %v1539
      %v1582 = vpop.f32.mrf.mxu0
      %v1583 = vadd.f32 0.0, %v1582
      %1584 = vmatmul.f32.gmra.mxu0 %v1542
      %v1585 = vpop.f32.mrf.mxu0
      %v1586 = vadd.f32 0.0, %v1585
      %1587 = vmatmul.f32.gmra.mxu0 %v1545
      %v1588 = vpop.f32.mrf.mxu0
      %v1589 = vadd.f32 0.0, %v1588
      %1590 = vmatmul.f32.gmra.mxu0 %v1548
      %v1591 = vpop.f32.mrf.mxu0
      %v1592 = vadd.f32 0.0, %v1591
      %1593 = vmatmul.f32.gmra.mxu0 %v1551
      %v1594 = vpop.f32.mrf.mxu0
      %v1595 = vadd.f32 0.0, %v1594
      %1596 = vmatmul.f32.gmra.mxu0 %v1554
      %v1597 = vpop.f32.mrf.mxu0
      %v1598 = vadd.f32 0.0, %v1597
      %1599 = vmatmul.f32.gmra.mxu0 %v1557
      %v1600 = vpop.f32.mrf.mxu0
      %v1601 = vadd.f32 0.0, %v1600
      %1602 = vmatmul.f32.gmra.mxu0 %v1560
      %v1603 = vpop.f32.mrf.mxu0
      %v1604 = vadd.f32 0.0, %v1603
      %1605 = vdwg.mxu0
      %v1606 = vadd.f32 %v1520, %v1583
      %v1607 = vadd.f32 %v1521, %v1586
      %v1608 = vadd.f32 %v1522, %v1589
      %v1609 = vadd.f32 %v1523, %v1592
      %v1610 = vadd.f32 %v1524, %v1595
      %v1611 = vadd.f32 %v1525, %v1598
      %v1612 = vadd.f32 %v1526, %v1601
      %v1613 = vadd.f32 %v1527, %v1604
      %s1614 = scalar_lea.vmem [#allocation2], 288
      %v1615 = vld [vmem:[%s1614] sm:$0xff]
      %v1616 = vld [vmem:[%s1614 + $0x10] sm:$0xff]
      %v1617 = vld [vmem:[%s1614 + $0x20] sm:$0xff]
      %v1618 = vld [vmem:[%s1614 + $0x30] sm:$0xff]
      %v1619 = vld [vmem:[%s1614 + $0x40] sm:$0xff]
      %v1620 = vld [vmem:[%s1614 + $0x50] sm:$0xff]
      %v1621 = vld [vmem:[%s1614 + $0x60] sm:$0xff]
      %v1622 = vld [vmem:[%s1614 + $0x70] sm:$0xff]
      %s1623 = scalar_lea.vmem %s1, 12
      %v1624 = vld [vmem:[%s1623] sm:$0xf]
      %v1626 = vsel %vm423, %v1615, 0
      %v1629 = vsel %vm423, %v1616, 0
      %v1632 = vsel %vm423, %v1617, 0
      %v1635 = vsel %vm423, %v1618, 0
      %v1638 = vsel %vm423, %v1619, 0
      %v1641 = vsel %vm423, %v1620, 0
      %v1644 = vsel %vm423, %v1621, 0
      %v1647 = vsel %vm423, %v1622, 0
      %v1650 = vsel %vm534, %v1624, 0
      %1652 = vmatpush.msra.mxu0 0.0
      %1653 = vmatpush.msra.mxu0 0.0
      %1654 = vmatpush.msra.mxu0 0.0
      %1655 = vmatpush.msra.mxu0 0.0
      %1656 = vmatpush.msra.mxu0 0.0
      %1657 = vmatpush.msra.mxu0 0.0
      %1658 = vmatpush.msra.mxu0 0.0
      %1659 = vmatpush.msra.mxu0 0.0
      %1660 = vmatpush.msra.mxu0 0.0
      %1661 = vmatpush.msra.mxu0 0.0
      %1662 = vmatpush.msra.mxu0 0.0
      %1663 = vmatpush.msra.mxu0 0.0
      %1664 = vmatpush.msra.mxu0 0.0
      %1665 = vmatpush.msra.mxu0 0.0
      %1666 = vmatpush.msra.mxu0 0.0
      %1667 = vmatpush.msra.mxu0 %v1650
      %1668 = vmatmul.f32.gmra.mxu0 %v1626
      %v1669 = vpop.f32.mrf.mxu0
      %v1670 = vadd.f32 0.0, %v1669
      %1671 = vmatmul.f32.gmra.mxu0 %v1629
      %v1672 = vpop.f32.mrf.mxu0
      %v1673 = vadd.f32 0.0, %v1672
      %1674 = vmatmul.f32.gmra.mxu0 %v1632
      %v1675 = vpop.f32.mrf.mxu0
      %v1676 = vadd.f32 0.0, %v1675
      %1677 = vmatmul.f32.gmra.mxu0 %v1635
      %v1678 = vpop.f32.mrf.mxu0
      %v1679 = vadd.f32 0.0, %v1678
      %1680 = vmatmul.f32.gmra.mxu0 %v1638
      %v1681 = vpop.f32.mrf.mxu0
      %v1682 = vadd.f32 0.0, %v1681
      %1683 = vmatmul.f32.gmra.mxu0 %v1641
      %v1684 = vpop.f32.mrf.mxu0
      %v1685 = vadd.f32 0.0, %v1684
      %1686 = vmatmul.f32.gmra.mxu0 %v1644
      %v1687 = vpop.f32.mrf.mxu0
      %v1688 = vadd.f32 0.0, %v1687
      %1689 = vmatmul.f32.gmra.mxu0 %v1647
      %v1690 = vpop.f32.mrf.mxu0
      %v1691 = vadd.f32 0.0, %v1690
      %1692 = vdwg.mxu0
      %v1693 = vadd.f32 %v1606, %v1670
      %v1694 = vadd.f32 %v1607, %v1673
      %v1695 = vadd.f32 %v1608, %v1676
      %v1696 = vadd.f32 %v1609, %v1679
      %v1697 = vadd.f32 %v1610, %v1682
      %v1698 = vadd.f32 %v1611, %v1685
      %v1699 = vadd.f32 %v1612, %v1688
      %v1700 = vadd.f32 %v1613, %v1691
      %s1701 = scalar_lea.vmem [#allocation2], 432
      %v1702 = vld [vmem:[%s1701] sm:$0xff]
      %v1703 = vld [vmem:[%s1701 + $0x10] sm:$0xff]
      %v1704 = vld [vmem:[%s1701 + $0x20] sm:$0xff]
      %v1705 = vld [vmem:[%s1701 + $0x30] sm:$0xff]
      %v1706 = vld [vmem:[%s1701 + $0x40] sm:$0xff]
      %v1707 = vld [vmem:[%s1701 + $0x50] sm:$0xff]
      %v1708 = vld [vmem:[%s1701 + $0x60] sm:$0xff]
      %v1709 = vld [vmem:[%s1701 + $0x70] sm:$0xff]
      %s1710 = scalar_lea.vmem %s1, 16
      %v1711 = vld [vmem:[%s1710] sm:$0xf]
      %v1713 = vsel %vm423, %v1702, 0
      %v1716 = vsel %vm423, %v1703, 0
      %v1719 = vsel %vm423, %v1704, 0
      %v1722 = vsel %vm423, %v1705, 0
      %v1725 = vsel %vm423, %v1706, 0
      %v1728 = vsel %vm423, %v1707, 0
      %v1731 = vsel %vm423, %v1708, 0
      %v1734 = vsel %vm423, %v1709, 0
      %v1737 = vsel %vm534, %v1711, 0
      %1739 = vmatpush.msra.mxu0 0.0
      %1740 = vmatpush.msra.mxu0 0.0
      %1741 = vmatpush.msra.mxu0 0.0
      %1742 = vmatpush.msra.mxu0 0.0
      %1743 = vmatpush.msra.mxu0 0.0
      %1744 = vmatpush.msra.mxu0 0.0
      %1745 = vmatpush.msra.mxu0 0.0
      %1746 = vmatpush.msra.mxu0 0.0
      %1747 = vmatpush.msra.mxu0 0.0
      %1748 = vmatpush.msra.mxu0 0.0
      %1749 = vmatpush.msra.mxu0 0.0
      %1750 = vmatpush.msra.mxu0 0.0
      %1751 = vmatpush.msra.mxu0 0.0
      %1752 = vmatpush.msra.mxu0 0.0
      %1753 = vmatpush.msra.mxu0 0.0
      %1754 = vmatpush.msra.mxu0 %v1737
      %1755 = vmatmul.f32.gmra.mxu0 %v1713
      %v1756 = vpop.f32.mrf.mxu0
      %v1757 = vadd.f32 0.0, %v1756
      %1758 = vmatmul.f32.gmra.mxu0 %v1716
      %v1759 = vpop.f32.mrf.mxu0
      %v1760 = vadd.f32 0.0, %v1759
      %1761 = vmatmul.f32.gmra.mxu0 %v1719
      %v1762 = vpop.f32.mrf.mxu0
      %v1763 = vadd.f32 0.0, %v1762
      %1764 = vmatmul.f32.gmra.mxu0 %v1722
      %v1765 = vpop.f32.mrf.mxu0
      %v1766 = vadd.f32 0.0, %v1765
      %1767 = vmatmul.f32.gmra.mxu0 %v1725
      %v1768 = vpop.f32.mrf.mxu0
      %v1769 = vadd.f32 0.0, %v1768
      %1770 = vmatmul.f32.gmra.mxu0 %v1728
      %v1771 = vpop.f32.mrf.mxu0
      %v1772 = vadd.f32 0.0, %v1771
      %1773 = vmatmul.f32.gmra.mxu0 %v1731
      %v1774 = vpop.f32.mrf.mxu0
      %v1775 = vadd.f32 0.0, %v1774
      %1776 = vmatmul.f32.gmra.mxu0 %v1734
      %v1777 = vpop.f32.mrf.mxu0
      %v1778 = vadd.f32 0.0, %v1777
      %1779 = vdwg.mxu0
      %v1780 = vadd.f32 %v1693, %v1757
      %v1781 = vadd.f32 %v1694, %v1760
      %v1782 = vadd.f32 %v1695, %v1763
      %v1783 = vadd.f32 %v1696, %v1766
      %v1784 = vadd.f32 %v1697, %v1769
      %v1785 = vadd.f32 %v1698, %v1772
      %v1786 = vadd.f32 %v1699, %v1775
      %v1787 = vadd.f32 %v1700, %v1778
      %v1788 = vld [vmem:[%s1614 + $0x1] sm:$0xff]
      %v1789 = vld [vmem:[%s1614 + $0x11] sm:$0xff]
      %v1790 = vld [vmem:[%s1614 + $0x21] sm:$0xff]
      %v1791 = vld [vmem:[%s1614 + $0x31] sm:$0xff]
      %v1792 = vld [vmem:[%s1614 + $0x41] sm:$0xff]
      %v1793 = vld [vmem:[%s1614 + $0x51] sm:$0xff]
      %v1794 = vld [vmem:[%s1614 + $0x61] sm:$0xff]
      %v1795 = vld [vmem:[%s1614 + $0x71] sm:$0xff]
      %s1796 = scalar_lea.vmem %s1, 20
      %v1797 = vld [vmem:[%s1796] sm:$0xf]
      %v1799 = vsel %vm423, %v1788, 0
      %v1802 = vsel %vm423, %v1789, 0
      %v1805 = vsel %vm423, %v1790, 0
      %v1808 = vsel %vm423, %v1791, 0
      %v1811 = vsel %vm423, %v1792, 0
      %v1814 = vsel %vm423, %v1793, 0
      %v1817 = vsel %vm423, %v1794, 0
      %v1820 = vsel %vm423, %v1795, 0
      %v1823 = vsel %vm534, %v1797, 0
      %1825 = vmatpush.msra.mxu0 0.0
      %1826 = vmatpush.msra.mxu0 0.0
      %1827 = vmatpush.msra.mxu0 0.0
      %1828 = vmatpush.msra.mxu0 0.0
      %1829 = vmatpush.msra.mxu0 0.0
      %1830 = vmatpush.msra.mxu0 0.0
      %1831 = vmatpush.msra.mxu0 0.0
      %1832 = vmatpush.msra.mxu0 0.0
      %1833 = vmatpush.msra.mxu0 0.0
      %1834 = vmatpush.msra.mxu0 0.0
      %1835 = vmatpush.msra.mxu0 0.0
      %1836 = vmatpush.msra.mxu0 0.0
      %1837 = vmatpush.msra.mxu0 0.0
      %1838 = vmatpush.msra.mxu0 0.0
      %1839 = vmatpush.msra.mxu0 0.0
      %1840 = vmatpush.msra.mxu0 %v1823
      %1841 = vmatmul.f32.gmra.mxu0 %v1799
      %v1842 = vpop.f32.mrf.mxu0
      %v1843 = vadd.f32 0.0, %v1842
      %1844 = vmatmul.f32.gmra.mxu0 %v1802
      %v1845 = vpop.f32.mrf.mxu0
      %v1846 = vadd.f32 0.0, %v1845
      %1847 = vmatmul.f32.gmra.mxu0 %v1805
      %v1848 = vpop.f32.mrf.mxu0
      %v1849 = vadd.f32 0.0, %v1848
      %1850 = vmatmul.f32.gmra.mxu0 %v1808
      %v1851 = vpop.f32.mrf.mxu0
      %v1852 = vadd.f32 0.0, %v1851
      %1853 = vmatmul.f32.gmra.mxu0 %v1811
      %v1854 = vpop.f32.mrf.mxu0
      %v1855 = vadd.f32 0.0, %v1854
      %1856 = vmatmul.f32.gmra.mxu0 %v1814
      %v1857 = vpop.f32.mrf.mxu0
      %v1858 = vadd.f32 0.0, %v1857
      %1859 = vmatmul.f32.gmra.mxu0 %v1817
      %v1860 = vpop.f32.mrf.mxu0
      %v1861 = vadd.f32 0.0, %v1860
      %1862 = vmatmul.f32.gmra.mxu0 %v1820
      %v1863 = vpop.f32.mrf.mxu0
      %v1864 = vadd.f32 0.0, %v1863
      %1865 = vdwg.mxu0
      %v1866 = vadd.f32 %v1780, %v1843
      %v1867 = vadd.f32 %v1781, %v1846
      %v1868 = vadd.f32 %v1782, %v1849
      %v1869 = vadd.f32 %v1783, %v1852
      %v1870 = vadd.f32 %v1784, %v1855
      %v1871 = vadd.f32 %v1785, %v1858
      %v1872 = vadd.f32 %v1786, %v1861
      %v1873 = vadd.f32 %v1787, %v1864
      %s1874 = scalar_lea.vmem [#allocation2], 16
      %v1875 = vld [vmem:[%s1874] sm:$0xff]
      %v1876 = vld [vmem:[%s1874 + $0x10] sm:$0xff]
      %v1877 = vld [vmem:[%s1874 + $0x20] sm:$0xff]
      %v1878 = vld [vmem:[%s1874 + $0x30] sm:$0xff]
      %v1879 = vld [vmem:[%s1874 + $0x40] sm:$0xff]
      %v1880 = vld [vmem:[%s1874 + $0x50] sm:$0xff]
      %v1881 = vld [vmem:[%s1874 + $0x60] sm:$0xff]
      %v1882 = vld [vmem:[%s1874 + $0x70] sm:$0xff]
      %s1883 = scalar_lea.vmem %s1, 24
      %v1884 = vld [vmem:[%s1883] sm:$0xf]
      %v1886 = vsel %vm423, %v1875, 0
      %v1889 = vsel %vm423, %v1876, 0
      %v1892 = vsel %vm423, %v1877, 0
      %v1895 = vsel %vm423, %v1878, 0
      %v1898 = vsel %vm423, %v1879, 0
      %v1901 = vsel %vm423, %v1880, 0
      %v1904 = vsel %vm423, %v1881, 0
      %v1907 = vsel %vm423, %v1882, 0
      %v1910 = vsel %vm534, %v1884, 0
      %1912 = vmatpush.msra.mxu0 0.0
      %1913 = vmatpush.msra.mxu0 0.0
      %1914 = vmatpush.msra.mxu0 0.0
      %1915 = vmatpush.msra.mxu0 0.0
      %1916 = vmatpush.msra.mxu0 0.0
      %1917 = vmatpush.msra.mxu0 0.0
      %1918 = vmatpush.msra.mxu0 0.0
      %1919 = vmatpush.msra.mxu0 0.0
      %1920 = vmatpush.msra.mxu0 0.0
      %1921 = vmatpush.msra.mxu0 0.0
      %1922 = vmatpush.msra.mxu0 0.0
      %1923 = vmatpush.msra.mxu0 0.0
      %1924 = vmatpush.msra.mxu0 0.0
      %1925 = vmatpush.msra.mxu0 0.0
      %1926 = vmatpush.msra.mxu0 0.0
      %1927 = vmatpush.msra.mxu0 %v1910
      %1928 = vmatmul.f32.gmra.mxu0 %v1886
      %v1929 = vpop.f32.mrf.mxu0
      %v1930 = vadd.f32 0.0, %v1929
      %1931 = vmatmul.f32.gmra.mxu0 %v1889
      %v1932 = vpop.f32.mrf.mxu0
      %v1933 = vadd.f32 0.0, %v1932
      %1934 = vmatmul.f32.gmra.mxu0 %v1892
      %v1935 = vpop.f32.mrf.mxu0
      %v1936 = vadd.f32 0.0, %v1935
      %1937 = vmatmul.f32.gmra.mxu0 %v1895
      %v1938 = vpop.f32.mrf.mxu0
      %v1939 = vadd.f32 0.0, %v1938
      %1940 = vmatmul.f32.gmra.mxu0 %v1898
      %v1941 = vpop.f32.mrf.mxu0
      %v1942 = vadd.f32 0.0, %v1941
      %1943 = vmatmul.f32.gmra.mxu0 %v1901
      %v1944 = vpop.f32.mrf.mxu0
      %v1945 = vadd.f32 0.0, %v1944
      %1946 = vmatmul.f32.gmra.mxu0 %v1904
      %v1947 = vpop.f32.mrf.mxu0
      %v1948 = vadd.f32 0.0, %v1947
      %1949 = vmatmul.f32.gmra.mxu0 %v1907
      %v1950 = vpop.f32.mrf.mxu0
      %v1951 = vadd.f32 0.0, %v1950
      %1952 = vdwg.mxu0
      %v1953 = vadd.f32 %v1866, %v1930
      %v1954 = vadd.f32 %v1867, %v1933
      %v1955 = vadd.f32 %v1868, %v1936
      %v1956 = vadd.f32 %v1869, %v1939
      %v1957 = vadd.f32 %v1870, %v1942
      %v1958 = vadd.f32 %v1871, %v1945
      %v1959 = vadd.f32 %v1872, %v1948
      %v1960 = vadd.f32 %v1873, %v1951
      %s1961 = scalar_lea.vmem [#allocation2], 160
      %v1962 = vld [vmem:[%s1961] sm:$0xff]
      %v1963 = vld [vmem:[%s1961 + $0x10] sm:$0xff]
      %v1964 = vld [vmem:[%s1961 + $0x20] sm:$0xff]
      %v1965 = vld [vmem:[%s1961 + $0x30] sm:$0xff]
      %v1966 = vld [vmem:[%s1961 + $0x40] sm:$0xff]
      %v1967 = vld [vmem:[%s1961 + $0x50] sm:$0xff]
      %v1968 = vld [vmem:[%s1961 + $0x60] sm:$0xff]
      %v1969 = vld [vmem:[%s1961 + $0x70] sm:$0xff]
      %s1970 = scalar_lea.vmem %s1, 28
      %v1971 = vld [vmem:[%s1970] sm:$0xf]
      %v1973 = vsel %vm423, %v1962, 0
      %v1976 = vsel %vm423, %v1963, 0
      %v1979 = vsel %vm423, %v1964, 0
      %v1982 = vsel %vm423, %v1965, 0
      %v1985 = vsel %vm423, %v1966, 0
      %v1988 = vsel %vm423, %v1967, 0
      %v1991 = vsel %vm423, %v1968, 0
      %v1994 = vsel %vm423, %v1969, 0
      %v1997 = vsel %vm534, %v1971, 0
      %1999 = vmatpush.msra.mxu0 0.0
      %2000 = vmatpush.msra.mxu0 0.0
      %2001 = vmatpush.msra.mxu0 0.0
      %2002 = vmatpush.msra.mxu0 0.0
      %2003 = vmatpush.msra.mxu0 0.0
      %2004 = vmatpush.msra.mxu0 0.0
      %2005 = vmatpush.msra.mxu0 0.0
      %2006 = vmatpush.msra.mxu0 0.0
      %2007 = vmatpush.msra.mxu0 0.0
      %2008 = vmatpush.msra.mxu0 0.0
      %2009 = vmatpush.msra.mxu0 0.0
      %2010 = vmatpush.msra.mxu0 0.0
      %2011 = vmatpush.msra.mxu0 0.0
      %2012 = vmatpush.msra.mxu0 0.0
      %2013 = vmatpush.msra.mxu0 0.0
      %2014 = vmatpush.msra.mxu0 %v1997
      %2015 = vmatmul.f32.gmra.mxu0 %v1973
      %v2016 = vpop.f32.mrf.mxu0
      %v2017 = vadd.f32 0.0, %v2016
      %2018 = vmatmul.f32.gmra.mxu0 %v1976
      %v2019 = vpop.f32.mrf.mxu0
      %v2020 = vadd.f32 0.0, %v2019
      %2021 = vmatmul.f32.gmra.mxu0 %v1979
      %v2022 = vpop.f32.mrf.mxu0
      %v2023 = vadd.f32 0.0, %v2022
      %2024 = vmatmul.f32.gmra.mxu0 %v1982
      %v2025 = vpop.f32.mrf.mxu0
      %v2026 = vadd.f32 0.0, %v2025
      %2027 = vmatmul.f32.gmra.mxu0 %v1985
      %v2028 = vpop.f32.mrf.mxu0
      %v2029 = vadd.f32 0.0, %v2028
      %2030 = vmatmul.f32.gmra.mxu0 %v1988
      %v2031 = vpop.f32.mrf.mxu0
      %v2032 = vadd.f32 0.0, %v2031
      %2033 = vmatmul.f32.gmra.mxu0 %v1991
      %v2034 = vpop.f32.mrf.mxu0
      %v2035 = vadd.f32 0.0, %v2034
      %2036 = vmatmul.f32.gmra.mxu0 %v1994
      %v2037 = vpop.f32.mrf.mxu0
      %v2038 = vadd.f32 0.0, %v2037
      %2039 = vdwg.mxu0
      %v2040 = vadd.f32 %v1953, %v2017
      %v2041 = vadd.f32 %v1954, %v2020
      %v2042 = vadd.f32 %v1955, %v2023
      %v2043 = vadd.f32 %v1956, %v2026
      %v2044 = vadd.f32 %v1957, %v2029
      %v2045 = vadd.f32 %v1958, %v2032
      %v2046 = vadd.f32 %v1959, %v2035
      %v2047 = vadd.f32 %v1960, %v2038
      %v2048 = vld [vmem:[%s1874 + $0x1] sm:$0xff]
      %v2049 = vld [vmem:[%s1874 + $0x11] sm:$0xff]
      %v2050 = vld [vmem:[%s1874 + $0x21] sm:$0xff]
      %v2051 = vld [vmem:[%s1874 + $0x31] sm:$0xff]
      %v2052 = vld [vmem:[%s1874 + $0x41] sm:$0xff]
      %v2053 = vld [vmem:[%s1874 + $0x51] sm:$0xff]
      %v2054 = vld [vmem:[%s1874 + $0x61] sm:$0xff]
      %v2055 = vld [vmem:[%s1874 + $0x71] sm:$0xff]
      %s2056 = scalar_lea.vmem %s1, 32
      %v2057 = vld [vmem:[%s2056] sm:$0xf]
      %v2059 = vsel %vm423, %v2048, 0
      %v2062 = vsel %vm423, %v2049, 0
      %v2065 = vsel %vm423, %v2050, 0
      %v2068 = vsel %vm423, %v2051, 0
      %v2071 = vsel %vm423, %v2052, 0
      %v2074 = vsel %vm423, %v2053, 0
      %v2077 = vsel %vm423, %v2054, 0
      %v2080 = vsel %vm423, %v2055, 0
      %v2083 = vsel %vm534, %v2057, 0
      %2085 = vmatpush.msra.mxu0 0.0
      %2086 = vmatpush.msra.mxu0 0.0
      %2087 = vmatpush.msra.mxu0 0.0
      %2088 = vmatpush.msra.mxu0 0.0
      %2089 = vmatpush.msra.mxu0 0.0
      %2090 = vmatpush.msra.mxu0 0.0
      %2091 = vmatpush.msra.mxu0 0.0
      %2092 = vmatpush.msra.mxu0 0.0
      %2093 = vmatpush.msra.mxu0 0.0
      %2094 = vmatpush.msra.mxu0 0.0
      %2095 = vmatpush.msra.mxu0 0.0
      %2096 = vmatpush.msra.mxu0 0.0
      %2097 = vmatpush.msra.mxu0 0.0
      %2098 = vmatpush.msra.mxu0 0.0
      %2099 = vmatpush.msra.mxu0 0.0
      %2100 = vmatpush.msra.mxu0 %v2083
      %2101 = vmatmul.f32.gmra.mxu0 %v2059
      %v2102 = vpop.f32.mrf.mxu0
      %v2103 = vadd.f32 0.0, %v2102
      %2104 = vmatmul.f32.gmra.mxu0 %v2062
      %v2105 = vpop.f32.mrf.mxu0
      %v2106 = vadd.f32 0.0, %v2105
      %2107 = vmatmul.f32.gmra.mxu0 %v2065
      %v2108 = vpop.f32.mrf.mxu0
      %v2109 = vadd.f32 0.0, %v2108
      %2110 = vmatmul.f32.gmra.mxu0 %v2068
      %v2111 = vpop.f32.mrf.mxu0
      %v2112 = vadd.f32 0.0, %v2111
      %2113 = vmatmul.f32.gmra.mxu0 %v2071
      %v2114 = vpop.f32.mrf.mxu0
      %v2115 = vadd.f32 0.0, %v2114
      %2116 = vmatmul.f32.gmra.mxu0 %v2074
      %v2117 = vpop.f32.mrf.mxu0
      %v2118 = vadd.f32 0.0, %v2117
      %2119 = vmatmul.f32.gmra.mxu0 %v2077
      %v2120 = vpop.f32.mrf.mxu0
      %v2121 = vadd.f32 0.0, %v2120
      %2122 = vmatmul.f32.gmra.mxu0 %v2080
      %v2123 = vpop.f32.mrf.mxu0
      %v2124 = vadd.f32 0.0, %v2123
      %2125 = vdwg.mxu0
      %v2126 = vadd.f32 %v2040, %v2103
      %v2127 = vadd.f32 %v2041, %v2106
      %v2128 = vadd.f32 %v2042, %v2109
      %v2129 = vadd.f32 %v2043, %v2112
      %v2130 = vadd.f32 %v2044, %v2115
      %v2131 = vadd.f32 %v2045, %v2118
      %v2132 = vadd.f32 %v2046, %v2121
      %v2133 = vadd.f32 %v2047, %v2124
      %v2134 = vmax.f32 %v2126, 0.0
      %v2135 = vmax.f32 %v2127, 0.0
      %v2136 = vmax.f32 %v2128, 0.0
      %v2137 = vmax.f32 %v2129, 0.0
      %v2138 = vmax.f32 %v2130, 0.0
      %v2139 = vmax.f32 %v2131, 0.0
      %v2140 = vmax.f32 %v2132, 0.0
      %v2141 = vmax.f32 %v2133, 0.0
      %s2142 = scalar_lea.vmem [#allocation3], 16
      %2143 = vst.msk [vmem:[%s2142 + $0x1] sm:$0xff] %vm423, %v2134
      %2144 = vst.msk [vmem:[%s2142 + $0x11] sm:$0xff] %vm423, %v2135
      %2145 = vst.msk [vmem:[%s2142 + $0x21] sm:$0xff] %vm423, %v2136
      %2146 = vst.msk [vmem:[%s2142 + $0x31] sm:$0xff] %vm423, %v2137
      %2147 = vst.msk [vmem:[%s2142 + $0x41] sm:$0xff] %vm423, %v2138
      %2148 = vst.msk [vmem:[%s2142 + $0x51] sm:$0xff] %vm423, %v2139
      %2149 = vst.msk [vmem:[%s2142 + $0x61] sm:$0xff] %vm423, %v2140
      %2150 = vst.msk [vmem:[%s2142 + $0x71] sm:$0xff] %vm423, %v2141
      %v2151 = vld [vmem:[%s2] sm:$0x1]
      %v2153 = vperm.slane %v2151, 0
      %v2155 = vld [vmem:[%s1441] sm:$0xff]
      %v2156 = vld [vmem:[%s1441 + $0x10] sm:$0xff]
      %v2157 = vld [vmem:[%s1441 + $0x20] sm:$0xff]
      %v2158 = vld [vmem:[%s1441 + $0x30] sm:$0xff]
      %v2159 = vld [vmem:[%s1441 + $0x40] sm:$0xff]
      %v2160 = vld [vmem:[%s1441 + $0x50] sm:$0xff]
      %v2161 = vld [vmem:[%s1441 + $0x60] sm:$0xff]
      %v2162 = vld [vmem:[%s1441 + $0x70] sm:$0xff]
      %v2163 = vld [vmem:[%s1] sm:$0xf]
      %v2165 = vsel %vm423, %v2155, 0
      %v2168 = vsel %vm423, %v2156, 0
      %v2171 = vsel %vm423, %v2157, 0
      %v2174 = vsel %vm423, %v2158, 0
      %v2177 = vsel %vm423, %v2159, 0
      %v2180 = vsel %vm423, %v2160, 0
      %v2183 = vsel %vm423, %v2161, 0
      %v2186 = vsel %vm423, %v2162, 0
      %v2189 = vsel %vm534, %v2163, 0
      %2191 = vmatpush.msra.mxu0 0.0
      %2192 = vmatpush.msra.mxu0 0.0
      %2193 = vmatpush.msra.mxu0 0.0
      %2194 = vmatpush.msra.mxu0 0.0
      %2195 = vmatpush.msra.mxu0 0.0
      %2196 = vmatpush.msra.mxu0 0.0
      %2197 = vmatpush.msra.mxu0 0.0
      %2198 = vmatpush.msra.mxu0 0.0
      %2199 = vmatpush.msra.mxu0 0.0
      %2200 = vmatpush.msra.mxu0 0.0
      %2201 = vmatpush.msra.mxu0 0.0
      %2202 = vmatpush.msra.mxu0 0.0
      %2203 = vmatpush.msra.mxu0 0.0
      %2204 = vmatpush.msra.mxu0 0.0
      %2205 = vmatpush.msra.mxu0 0.0
      %2206 = vmatpush.msra.mxu0 %v2189
      %2207 = vmatmul.f32.gmra.mxu0 %v2165
      %v2208 = vpop.f32.mrf.mxu0
      %v2209 = vadd.f32 0.0, %v2208
      %2210 = vmatmul.f32.gmra.mxu0 %v2168
      %v2211 = vpop.f32.mrf.mxu0
      %v2212 = vadd.f32 0.0, %v2211
      %2213 = vmatmul.f32.gmra.mxu0 %v2171
      %v2214 = vpop.f32.mrf.mxu0
      %v2215 = vadd.f32 0.0, %v2214
      %2216 = vmatmul.f32.gmra.mxu0 %v2174
      %v2217 = vpop.f32.mrf.mxu0
      %v2218 = vadd.f32 0.0, %v2217
      %2219 = vmatmul.f32.gmra.mxu0 %v2177
      %v2220 = vpop.f32.mrf.mxu0
      %v2221 = vadd.f32 0.0, %v2220
      %2222 = vmatmul.f32.gmra.mxu0 %v2180
      %v2223 = vpop.f32.mrf.mxu0
      %v2224 = vadd.f32 0.0, %v2223
      %2225 = vmatmul.f32.gmra.mxu0 %v2183
      %v2226 = vpop.f32.mrf.mxu0
      %v2227 = vadd.f32 0.0, %v2226
      %2228 = vmatmul.f32.gmra.mxu0 %v2186
      %v2229 = vpop.f32.mrf.mxu0
      %v2230 = vadd.f32 0.0, %v2229
      %2231 = vdwg.mxu0
      %v2232 = vadd.f32 %v2153, %v2209
      %v2233 = vadd.f32 %v2153, %v2212
      %v2234 = vadd.f32 %v2153, %v2215
      %v2235 = vadd.f32 %v2153, %v2218
      %v2236 = vadd.f32 %v2153, %v2221
      %v2237 = vadd.f32 %v2153, %v2224
      %v2238 = vadd.f32 %v2153, %v2227
      %v2239 = vadd.f32 %v2153, %v2230
      %v2240 = vld [vmem:[#allocation2 + $0x1] sm:$0xff]
      %v2241 = vld [vmem:[#allocation2 + $0x11] sm:$0xff]
      %v2242 = vld [vmem:[#allocation2 + $0x21] sm:$0xff]
      %v2243 = vld [vmem:[#allocation2 + $0x31] sm:$0xff]
      %v2244 = vld [vmem:[#allocation2 + $0x41] sm:$0xff]
      %v2245 = vld [vmem:[#allocation2 + $0x51] sm:$0xff]
      %v2246 = vld [vmem:[#allocation2 + $0x61] sm:$0xff]
      %v2247 = vld [vmem:[#allocation2 + $0x71] sm:$0xff]
      %v2248 = vld [vmem:[%s1450] sm:$0xf]
      %v2250 = vsel %vm423, %v2240, 0
      %v2253 = vsel %vm423, %v2241, 0
      %v2256 = vsel %vm423, %v2242, 0
      %v2259 = vsel %vm423, %v2243, 0
      %v2262 = vsel %vm423, %v2244, 0
      %v2265 = vsel %vm423, %v2245, 0
      %v2268 = vsel %vm423, %v2246, 0
      %v2271 = vsel %vm423, %v2247, 0
      %v2274 = vsel %vm534, %v2248, 0
      %2276 = vmatpush.msra.mxu0 0.0
      %2277 = vmatpush.msra.mxu0 0.0
      %2278 = vmatpush.msra.mxu0 0.0
      %2279 = vmatpush.msra.mxu0 0.0
      %2280 = vmatpush.msra.mxu0 0.0
      %2281 = vmatpush.msra.mxu0 0.0
      %2282 = vmatpush.msra.mxu0 0.0
      %2283 = vmatpush.msra.mxu0 0.0
      %2284 = vmatpush.msra.mxu0 0.0
      %2285 = vmatpush.msra.mxu0 0.0
      %2286 = vmatpush.msra.mxu0 0.0
      %2287 = vmatpush.msra.mxu0 0.0
      %2288 = vmatpush.msra.mxu0 0.0
      %2289 = vmatpush.msra.mxu0 0.0
      %2290 = vmatpush.msra.mxu0 0.0
      %2291 = vmatpush.msra.mxu0 %v2274
      %2292 = vmatmul.f32.gmra.mxu0 %v2250
      %v2293 = vpop.f32.mrf.mxu0
      %v2294 = vadd.f32 0.0, %v2293
      %2295 = vmatmul.f32.gmra.mxu0 %v2253
      %v2296 = vpop.f32.mrf.mxu0
      %v2297 = vadd.f32 0.0, %v2296
      %2298 = vmatmul.f32.gmra.mxu0 %v2256
      %v2299 = vpop.f32.mrf.mxu0
      %v2300 = vadd.f32 0.0, %v2299
      %2301 = vmatmul.f32.gmra.mxu0 %v2259
      %v2302 = vpop.f32.mrf.mxu0
      %v2303 = vadd.f32 0.0, %v2302
      %2304 = vmatmul.f32.gmra.mxu0 %v2262
      %v2305 = vpop.f32.mrf.mxu0
      %v2306 = vadd.f32 0.0, %v2305
      %2307 = vmatmul.f32.gmra.mxu0 %v2265
      %v2308 = vpop.f32.mrf.mxu0
      %v2309 = vadd.f32 0.0, %v2308
      %2310 = vmatmul.f32.gmra.mxu0 %v2268
      %v2311 = vpop.f32.mrf.mxu0
      %v2312 = vadd.f32 0.0, %v2311
      %2313 = vmatmul.f32.gmra.mxu0 %v2271
      %v2314 = vpop.f32.mrf.mxu0
      %v2315 = vadd.f32 0.0, %v2314
      %2316 = vdwg.mxu0
      %v2317 = vadd.f32 %v2232, %v2294
      %v2318 = vadd.f32 %v2233, %v2297
      %v2319 = vadd.f32 %v2234, %v2300
      %v2320 = vadd.f32 %v2235, %v2303
      %v2321 = vadd.f32 %v2236, %v2306
      %v2322 = vadd.f32 %v2237, %v2309
      %v2323 = vadd.f32 %v2238, %v2312
      %v2324 = vadd.f32 %v2239, %v2315
      %v2325 = vld [vmem:[%s1441 + $0x1] sm:$0xff]
      %v2326 = vld [vmem:[%s1441 + $0x11] sm:$0xff]
      %v2327 = vld [vmem:[%s1441 + $0x21] sm:$0xff]
      %v2328 = vld [vmem:[%s1441 + $0x31] sm:$0xff]
      %v2329 = vld [vmem:[%s1441 + $0x41] sm:$0xff]
      %v2330 = vld [vmem:[%s1441 + $0x51] sm:$0xff]
      %v2331 = vld [vmem:[%s1441 + $0x61] sm:$0xff]
      %v2332 = vld [vmem:[%s1441 + $0x71] sm:$0xff]
      %v2333 = vld [vmem:[%s1536] sm:$0xf]
      %v2335 = vsel %vm423, %v2325, 0
      %v2338 = vsel %vm423, %v2326, 0
      %v2341 = vsel %vm423, %v2327, 0
      %v2344 = vsel %vm423, %v2328, 0
      %v2347 = vsel %vm423, %v2329, 0
      %v2350 = vsel %vm423, %v2330, 0
      %v2353 = vsel %vm423, %v2331, 0
      %v2356 = vsel %vm423, %v2332, 0
      %v2359 = vsel %vm534, %v2333, 0
      %2361 = vmatpush.msra.mxu0 0.0
      %2362 = vmatpush.msra.mxu0 0.0
      %2363 = vmatpush.msra.mxu0 0.0
      %2364 = vmatpush.msra.mxu0 0.0
      %2365 = vmatpush.msra.mxu0 0.0
      %2366 = vmatpush.msra.mxu0 0.0
      %2367 = vmatpush.msra.mxu0 0.0
      %2368 = vmatpush.msra.mxu0 0.0
      %2369 = vmatpush.msra.mxu0 0.0
      %2370 = vmatpush.msra.mxu0 0.0
      %2371 = vmatpush.msra.mxu0 0.0
      %2372 = vmatpush.msra.mxu0 0.0
      %2373 = vmatpush.msra.mxu0 0.0
      %2374 = vmatpush.msra.mxu0 0.0
      %2375 = vmatpush.msra.mxu0 0.0
      %2376 = vmatpush.msra.mxu0 %v2359
      %2377 = vmatmul.f32.gmra.mxu0 %v2335
      %v2378 = vpop.f32.mrf.mxu0
      %v2379 = vadd.f32 0.0, %v2378
      %2380 = vmatmul.f32.gmra.mxu0 %v2338
      %v2381 = vpop.f32.mrf.mxu0
      %v2382 = vadd.f32 0.0, %v2381
      %2383 = vmatmul.f32.gmra.mxu0 %v2341
      %v2384 = vpop.f32.mrf.mxu0
      %v2385 = vadd.f32 0.0, %v2384
      %2386 = vmatmul.f32.gmra.mxu0 %v2344
      %v2387 = vpop.f32.mrf.mxu0
      %v2388 = vadd.f32 0.0, %v2387
      %2389 = vmatmul.f32.gmra.mxu0 %v2347
      %v2390 = vpop.f32.mrf.mxu0
      %v2391 = vadd.f32 0.0, %v2390
      %2392 = vmatmul.f32.gmra.mxu0 %v2350
      %v2393 = vpop.f32.mrf.mxu0
      %v2394 = vadd.f32 0.0, %v2393
      %2395 = vmatmul.f32.gmra.mxu0 %v2353
      %v2396 = vpop.f32.mrf.mxu0
      %v2397 = vadd.f32 0.0, %v2396
      %2398 = vmatmul.f32.gmra.mxu0 %v2356
      %v2399 = vpop.f32.mrf.mxu0
      %v2400 = vadd.f32 0.0, %v2399
      %2401 = vdwg.mxu0
      %v2402 = vadd.f32 %v2317, %v2379
      %v2403 = vadd.f32 %v2318, %v2382
      %v2404 = vadd.f32 %v2319, %v2385
      %v2405 = vadd.f32 %v2320, %v2388
      %v2406 = vadd.f32 %v2321, %v2391
      %v2407 = vadd.f32 %v2322, %v2394
      %v2408 = vadd.f32 %v2323, %v2397
      %v2409 = vadd.f32 %v2324, %v2400
      %v2410 = vld [vmem:[%s1701] sm:$0xff]
      %v2411 = vld [vmem:[%s1701 + $0x10] sm:$0xff]
      %v2412 = vld [vmem:[%s1701 + $0x20] sm:$0xff]
      %v2413 = vld [vmem:[%s1701 + $0x30] sm:$0xff]
      %v2414 = vld [vmem:[%s1701 + $0x40] sm:$0xff]
      %v2415 = vld [vmem:[%s1701 + $0x50] sm:$0xff]
      %v2416 = vld [vmem:[%s1701 + $0x60] sm:$0xff]
      %v2417 = vld [vmem:[%s1701 + $0x70] sm:$0xff]
      %v2418 = vld [vmem:[%s1623] sm:$0xf]
      %v2420 = vsel %vm423, %v2410, 0
      %v2423 = vsel %vm423, %v2411, 0
      %v2426 = vsel %vm423, %v2412, 0
      %v2429 = vsel %vm423, %v2413, 0
      %v2432 = vsel %vm423, %v2414, 0
      %v2435 = vsel %vm423, %v2415, 0
      %v2438 = vsel %vm423, %v2416, 0
      %v2441 = vsel %vm423, %v2417, 0
      %v2444 = vsel %vm534, %v2418, 0
      %2446 = vmatpush.msra.mxu0 0.0
      %2447 = vmatpush.msra.mxu0 0.0
      %2448 = vmatpush.msra.mxu0 0.0
      %2449 = vmatpush.msra.mxu0 0.0
      %2450 = vmatpush.msra.mxu0 0.0
      %2451 = vmatpush.msra.mxu0 0.0
      %2452 = vmatpush.msra.mxu0 0.0
      %2453 = vmatpush.msra.mxu0 0.0
      %2454 = vmatpush.msra.mxu0 0.0
      %2455 = vmatpush.msra.mxu0 0.0
      %2456 = vmatpush.msra.mxu0 0.0
      %2457 = vmatpush.msra.mxu0 0.0
      %2458 = vmatpush.msra.mxu0 0.0
      %2459 = vmatpush.msra.mxu0 0.0
      %2460 = vmatpush.msra.mxu0 0.0
      %2461 = vmatpush.msra.mxu0 %v2444
      %2462 = vmatmul.f32.gmra.mxu0 %v2420
      %v2463 = vpop.f32.mrf.mxu0
      %v2464 = vadd.f32 0.0, %v2463
      %2465 = vmatmul.f32.gmra.mxu0 %v2423
      %v2466 = vpop.f32.mrf.mxu0
      %v2467 = vadd.f32 0.0, %v2466
      %2468 = vmatmul.f32.gmra.mxu0 %v2426
      %v2469 = vpop.f32.mrf.mxu0
      %v2470 = vadd.f32 0.0, %v2469
      %2471 = vmatmul.f32.gmra.mxu0 %v2429
      %v2472 = vpop.f32.mrf.mxu0
      %v2473 = vadd.f32 0.0, %v2472
      %2474 = vmatmul.f32.gmra.mxu0 %v2432
      %v2475 = vpop.f32.mrf.mxu0
      %v2476 = vadd.f32 0.0, %v2475
      %2477 = vmatmul.f32.gmra.mxu0 %v2435
      %v2478 = vpop.f32.mrf.mxu0
      %v2479 = vadd.f32 0.0, %v2478
      %2480 = vmatmul.f32.gmra.mxu0 %v2438
      %v2481 = vpop.f32.mrf.mxu0
      %v2482 = vadd.f32 0.0, %v2481
      %2483 = vmatmul.f32.gmra.mxu0 %v2441
      %v2484 = vpop.f32.mrf.mxu0
      %v2485 = vadd.f32 0.0, %v2484
      %2486 = vdwg.mxu0
      %v2487 = vadd.f32 %v2402, %v2464
      %v2488 = vadd.f32 %v2403, %v2467
      %v2489 = vadd.f32 %v2404, %v2470
      %v2490 = vadd.f32 %v2405, %v2473
      %v2491 = vadd.f32 %v2406, %v2476
      %v2492 = vadd.f32 %v2407, %v2479
      %v2493 = vadd.f32 %v2408, %v2482
      %v2494 = vadd.f32 %v2409, %v2485
      %v2495 = vld [vmem:[%s1614 + $0x1] sm:$0xff]
      %v2496 = vld [vmem:[%s1614 + $0x11] sm:$0xff]
      %v2497 = vld [vmem:[%s1614 + $0x21] sm:$0xff]
      %v2498 = vld [vmem:[%s1614 + $0x31] sm:$0xff]
      %v2499 = vld [vmem:[%s1614 + $0x41] sm:$0xff]
      %v2500 = vld [vmem:[%s1614 + $0x51] sm:$0xff]
      %v2501 = vld [vmem:[%s1614 + $0x61] sm:$0xff]
      %v2502 = vld [vmem:[%s1614 + $0x71] sm:$0xff]
      %v2503 = vld [vmem:[%s1710] sm:$0xf]
      %v2505 = vsel %vm423, %v2495, 0
      %v2508 = vsel %vm423, %v2496, 0
      %v2511 = vsel %vm423, %v2497, 0
      %v2514 = vsel %vm423, %v2498, 0
      %v2517 = vsel %vm423, %v2499, 0
      %v2520 = vsel %vm423, %v2500, 0
      %v2523 = vsel %vm423, %v2501, 0
      %v2526 = vsel %vm423, %v2502, 0
      %v2529 = vsel %vm534, %v2503, 0
      %2531 = vmatpush.msra.mxu0 0.0
      %2532 = vmatpush.msra.mxu0 0.0
      %2533 = vmatpush.msra.mxu0 0.0
      %2534 = vmatpush.msra.mxu0 0.0
      %2535 = vmatpush.msra.mxu0 0.0
      %2536 = vmatpush.msra.mxu0 0.0
      %2537 = vmatpush.msra.mxu0 0.0
      %2538 = vmatpush.msra.mxu0 0.0
      %2539 = vmatpush.msra.mxu0 0.0
      %2540 = vmatpush.msra.mxu0 0.0
      %2541 = vmatpush.msra.mxu0 0.0
      %2542 = vmatpush.msra.mxu0 0.0
      %2543 = vmatpush.msra.mxu0 0.0
      %2544 = vmatpush.msra.mxu0 0.0
      %2545 = vmatpush.msra.mxu0 0.0
      %2546 = vmatpush.msra.mxu0 %v2529
      %2547 = vmatmul.f32.gmra.mxu0 %v2505
      %v2548 = vpop.f32.mrf.mxu0
      %v2549 = vadd.f32 0.0, %v2548
      %2550 = vmatmul.f32.gmra.mxu0 %v2508
      %v2551 = vpop.f32.mrf.mxu0
      %v2552 = vadd.f32 0.0, %v2551
      %2553 = vmatmul.f32.gmra.mxu0 %v2511
      %v2554 = vpop.f32.mrf.mxu0
      %v2555 = vadd.f32 0.0, %v2554
      %2556 = vmatmul.f32.gmra.mxu0 %v2514
      %v2557 = vpop.f32.mrf.mxu0
      %v2558 = vadd.f32 0.0, %v2557
      %2559 = vmatmul.f32.gmra.mxu0 %v2517
      %v2560 = vpop.f32.mrf.mxu0
      %v2561 = vadd.f32 0.0, %v2560
      %2562 = vmatmul.f32.gmra.mxu0 %v2520
      %v2563 = vpop.f32.mrf.mxu0
      %v2564 = vadd.f32 0.0, %v2563
      %2565 = vmatmul.f32.gmra.mxu0 %v2523
      %v2566 = vpop.f32.mrf.mxu0
      %v2567 = vadd.f32 0.0, %v2566
      %2568 = vmatmul.f32.gmra.mxu0 %v2526
      %v2569 = vpop.f32.mrf.mxu0
      %v2570 = vadd.f32 0.0, %v2569
      %2571 = vdwg.mxu0
      %v2572 = vadd.f32 %v2487, %v2549
      %v2573 = vadd.f32 %v2488, %v2552
      %v2574 = vadd.f32 %v2489, %v2555
      %v2575 = vadd.f32 %v2490, %v2558
      %v2576 = vadd.f32 %v2491, %v2561
      %v2577 = vadd.f32 %v2492, %v2564
      %v2578 = vadd.f32 %v2493, %v2567
      %v2579 = vadd.f32 %v2494, %v2570
      %v2580 = vld [vmem:[%s1701 + $0x1] sm:$0xff]
      %v2581 = vld [vmem:[%s1701 + $0x11] sm:$0xff]
      %v2582 = vld [vmem:[%s1701 + $0x21] sm:$0xff]
      %v2583 = vld [vmem:[%s1701 + $0x31] sm:$0xff]
      %v2584 = vld [vmem:[%s1701 + $0x41] sm:$0xff]
      %v2585 = vld [vmem:[%s1701 + $0x51] sm:$0xff]
      %v2586 = vld [vmem:[%s1701 + $0x61] sm:$0xff]
      %v2587 = vld [vmem:[%s1701 + $0x71] sm:$0xff]
      %v2588 = vld [vmem:[%s1796] sm:$0xf]
      %v2590 = vsel %vm423, %v2580, 0
      %v2593 = vsel %vm423, %v2581, 0
      %v2596 = vsel %vm423, %v2582, 0
      %v2599 = vsel %vm423, %v2583, 0
      %v2602 = vsel %vm423, %v2584, 0
      %v2605 = vsel %vm423, %v2585, 0
      %v2608 = vsel %vm423, %v2586, 0
      %v2611 = vsel %vm423, %v2587, 0
      %v2614 = vsel %vm534, %v2588, 0
      %2616 = vmatpush.msra.mxu0 0.0
      %2617 = vmatpush.msra.mxu0 0.0
      %2618 = vmatpush.msra.mxu0 0.0
      %2619 = vmatpush.msra.mxu0 0.0
      %2620 = vmatpush.msra.mxu0 0.0
      %2621 = vmatpush.msra.mxu0 0.0
      %2622 = vmatpush.msra.mxu0 0.0
      %2623 = vmatpush.msra.mxu0 0.0
      %2624 = vmatpush.msra.mxu0 0.0
      %2625 = vmatpush.msra.mxu0 0.0
      %2626 = vmatpush.msra.mxu0 0.0
      %2627 = vmatpush.msra.mxu0 0.0
      %2628 = vmatpush.msra.mxu0 0.0
      %2629 = vmatpush.msra.mxu0 0.0
      %2630 = vmatpush.msra.mxu0 0.0
      %2631 = vmatpush.msra.mxu0 %v2614
      %2632 = vmatmul.f32.gmra.mxu0 %v2590
      %v2633 = vpop.f32.mrf.mxu0
      %v2634 = vadd.f32 0.0, %v2633
      %2635 = vmatmul.f32.gmra.mxu0 %v2593
      %v2636 = vpop.f32.mrf.mxu0
      %v2637 = vadd.f32 0.0, %v2636
      %2638 = vmatmul.f32.gmra.mxu0 %v2596
      %v2639 = vpop.f32.mrf.mxu0
      %v2640 = vadd.f32 0.0, %v2639
      %2641 = vmatmul.f32.gmra.mxu0 %v2599
      %v2642 = vpop.f32.mrf.mxu0
      %v2643 = vadd.f32 0.0, %v2642
      %2644 = vmatmul.f32.gmra.mxu0 %v2602
      %v2645 = vpop.f32.mrf.mxu0
      %v2646 = vadd.f32 0.0, %v2645
      %2647 = vmatmul.f32.gmra.mxu0 %v2605
      %v2648 = vpop.f32.mrf.mxu0
      %v2649 = vadd.f32 0.0, %v2648
      %2650 = vmatmul.f32.gmra.mxu0 %v2608
      %v2651 = vpop.f32.mrf.mxu0
      %v2652 = vadd.f32 0.0, %v2651
      %2653 = vmatmul.f32.gmra.mxu0 %v2611
      %v2654 = vpop.f32.mrf.mxu0
      %v2655 = vadd.f32 0.0, %v2654
      %2656 = vdwg.mxu0
      %v2657 = vadd.f32 %v2572, %v2634
      %v2658 = vadd.f32 %v2573, %v2637
      %v2659 = vadd.f32 %v2574, %v2640
      %v2660 = vadd.f32 %v2575, %v2643
      %v2661 = vadd.f32 %v2576, %v2646
      %v2662 = vadd.f32 %v2577, %v2649
      %v2663 = vadd.f32 %v2578, %v2652
      %v2664 = vadd.f32 %v2579, %v2655
      %v2665 = vld [vmem:[%s1961] sm:$0xff]
      %v2666 = vld [vmem:[%s1961 + $0x10] sm:$0xff]
      %v2667 = vld [vmem:[%s1961 + $0x20] sm:$0xff]
      %v2668 = vld [vmem:[%s1961 + $0x30] sm:$0xff]
      %v2669 = vld [vmem:[%s1961 + $0x40] sm:$0xff]
      %v2670 = vld [vmem:[%s1961 + $0x50] sm:$0xff]
      %v2671 = vld [vmem:[%s1961 + $0x60] sm:$0xff]
      %v2672 = vld [vmem:[%s1961 + $0x70] sm:$0xff]
      %v2673 = vld [vmem:[%s1883] sm:$0xf]
      %v2675 = vsel %vm423, %v2665, 0
      %v2678 = vsel %vm423, %v2666, 0
      %v2681 = vsel %vm423, %v2667, 0
      %v2684 = vsel %vm423, %v2668, 0
      %v2687 = vsel %vm423, %v2669, 0
      %v2690 = vsel %vm423, %v2670, 0
      %v2693 = vsel %vm423, %v2671, 0
      %v2696 = vsel %vm423, %v2672, 0
      %v2699 = vsel %vm534, %v2673, 0
      %2701 = vmatpush.msra.mxu0 0.0
      %2702 = vmatpush.msra.mxu0 0.0
      %2703 = vmatpush.msra.mxu0 0.0
      %2704 = vmatpush.msra.mxu0 0.0
      %2705 = vmatpush.msra.mxu0 0.0
      %2706 = vmatpush.msra.mxu0 0.0
      %2707 = vmatpush.msra.mxu0 0.0
      %2708 = vmatpush.msra.mxu0 0.0
      %2709 = vmatpush.msra.mxu0 0.0
      %2710 = vmatpush.msra.mxu0 0.0
      %2711 = vmatpush.msra.mxu0 0.0
      %2712 = vmatpush.msra.mxu0 0.0
      %2713 = vmatpush.msra.mxu0 0.0
      %2714 = vmatpush.msra.mxu0 0.0
      %2715 = vmatpush.msra.mxu0 0.0
      %2716 = vmatpush.msra.mxu0 %v2699
      %2717 = vmatmul.f32.gmra.mxu0 %v2675
      %v2718 = vpop.f32.mrf.mxu0
      %v2719 = vadd.f32 0.0, %v2718
      %2720 = vmatmul.f32.gmra.mxu0 %v2678
      %v2721 = vpop.f32.mrf.mxu0
      %v2722 = vadd.f32 0.0, %v2721
      %2723 = vmatmul.f32.gmra.mxu0 %v2681
      %v2724 = vpop.f32.mrf.mxu0
      %v2725 = vadd.f32 0.0, %v2724
      %2726 = vmatmul.f32.gmra.mxu0 %v2684
      %v2727 = vpop.f32.mrf.mxu0
      %v2728 = vadd.f32 0.0, %v2727
      %2729 = vmatmul.f32.gmra.mxu0 %v2687
      %v2730 = vpop.f32.mrf.mxu0
      %v2731 = vadd.f32 0.0, %v2730
      %2732 = vmatmul.f32.gmra.mxu0 %v2690
      %v2733 = vpop.f32.mrf.mxu0
      %v2734 = vadd.f32 0.0, %v2733
      %2735 = vmatmul.f32.gmra.mxu0 %v2693
      %v2736 = vpop.f32.mrf.mxu0
      %v2737 = vadd.f32 0.0, %v2736
      %2738 = vmatmul.f32.gmra.mxu0 %v2696
      %v2739 = vpop.f32.mrf.mxu0
      %v2740 = vadd.f32 0.0, %v2739
      %2741 = vdwg.mxu0
      %v2742 = vadd.f32 %v2657, %v2719
      %v2743 = vadd.f32 %v2658, %v2722
      %v2744 = vadd.f32 %v2659, %v2725
      %v2745 = vadd.f32 %v2660, %v2728
      %v2746 = vadd.f32 %v2661, %v2731
      %v2747 = vadd.f32 %v2662, %v2734
      %v2748 = vadd.f32 %v2663, %v2737
      %v2749 = vadd.f32 %v2664, %v2740
      %v2750 = vld [vmem:[%s1874 + $0x1] sm:$0xff]
      %v2751 = vld [vmem:[%s1874 + $0x11] sm:$0xff]
      %v2752 = vld [vmem:[%s1874 + $0x21] sm:$0xff]
      %v2753 = vld [vmem:[%s1874 + $0x31] sm:$0xff]
      %v2754 = vld [vmem:[%s1874 + $0x41] sm:$0xff]
      %v2755 = vld [vmem:[%s1874 + $0x51] sm:$0xff]
      %v2756 = vld [vmem:[%s1874 + $0x61] sm:$0xff]
      %v2757 = vld [vmem:[%s1874 + $0x71] sm:$0xff]
      %v2758 = vld [vmem:[%s1970] sm:$0xf]
      %v2760 = vsel %vm423, %v2750, 0
      %v2763 = vsel %vm423, %v2751, 0
      %v2766 = vsel %vm423, %v2752, 0
      %v2769 = vsel %vm423, %v2753, 0
      %v2772 = vsel %vm423, %v2754, 0
      %v2775 = vsel %vm423, %v2755, 0
      %v2778 = vsel %vm423, %v2756, 0
      %v2781 = vsel %vm423, %v2757, 0
      %v2784 = vsel %vm534, %v2758, 0
      %2786 = vmatpush.msra.mxu0 0.0
      %2787 = vmatpush.msra.mxu0 0.0
      %2788 = vmatpush.msra.mxu0 0.0
      %2789 = vmatpush.msra.mxu0 0.0
      %2790 = vmatpush.msra.mxu0 0.0
      %2791 = vmatpush.msra.mxu0 0.0
      %2792 = vmatpush.msra.mxu0 0.0
      %2793 = vmatpush.msra.mxu0 0.0
      %2794 = vmatpush.msra.mxu0 0.0
      %2795 = vmatpush.msra.mxu0 0.0
      %2796 = vmatpush.msra.mxu0 0.0
      %2797 = vmatpush.msra.mxu0 0.0
      %2798 = vmatpush.msra.mxu0 0.0
      %2799 = vmatpush.msra.mxu0 0.0
      %2800 = vmatpush.msra.mxu0 0.0
      %2801 = vmatpush.msra.mxu0 %v2784
      %2802 = vmatmul.f32.gmra.mxu0 %v2760
      %v2803 = vpop.f32.mrf.mxu0
      %v2804 = vadd.f32 0.0, %v2803
      %2805 = vmatmul.f32.gmra.mxu0 %v2763
      %v2806 = vpop.f32.mrf.mxu0
      %v2807 = vadd.f32 0.0, %v2806
      %2808 = vmatmul.f32.gmra.mxu0 %v2766
      %v2809 = vpop.f32.mrf.mxu0
      %v2810 = vadd.f32 0.0, %v2809
      %2811 = vmatmul.f32.gmra.mxu0 %v2769
      %v2812 = vpop.f32.mrf.mxu0
      %v2813 = vadd.f32 0.0, %v2812
      %2814 = vmatmul.f32.gmra.mxu0 %v2772
      %v2815 = vpop.f32.mrf.mxu0
      %v2816 = vadd.f32 0.0, %v2815
      %2817 = vmatmul.f32.gmra.mxu0 %v2775
      %v2818 = vpop.f32.mrf.mxu0
      %v2819 = vadd.f32 0.0, %v2818
      %2820 = vmatmul.f32.gmra.mxu0 %v2778
      %v2821 = vpop.f32.mrf.mxu0
      %v2822 = vadd.f32 0.0, %v2821
      %2823 = vmatmul.f32.gmra.mxu0 %v2781
      %v2824 = vpop.f32.mrf.mxu0
      %v2825 = vadd.f32 0.0, %v2824
      %2826 = vdwg.mxu0
      %v2827 = vadd.f32 %v2742, %v2804
      %v2828 = vadd.f32 %v2743, %v2807
      %v2829 = vadd.f32 %v2744, %v2810
      %v2830 = vadd.f32 %v2745, %v2813
      %v2831 = vadd.f32 %v2746, %v2816
      %v2832 = vadd.f32 %v2747, %v2819
      %v2833 = vadd.f32 %v2748, %v2822
      %v2834 = vadd.f32 %v2749, %v2825
      %v2835 = vld [vmem:[%s1961 + $0x1] sm:$0xff]
      %v2836 = vld [vmem:[%s1961 + $0x11] sm:$0xff]
      %v2837 = vld [vmem:[%s1961 + $0x21] sm:$0xff]
      %v2838 = vld [vmem:[%s1961 + $0x31] sm:$0xff]
      %v2839 = vld [vmem:[%s1961 + $0x41] sm:$0xff]
      %v2840 = vld [vmem:[%s1961 + $0x51] sm:$0xff]
      %v2841 = vld [vmem:[%s1961 + $0x61] sm:$0xff]
      %v2842 = vld [vmem:[%s1961 + $0x71] sm:$0xff]
      %v2843 = vld [vmem:[%s2056] sm:$0xf]
      %v2845 = vsel %vm423, %v2835, 0
      %v2848 = vsel %vm423, %v2836, 0
      %v2851 = vsel %vm423, %v2837, 0
      %v2854 = vsel %vm423, %v2838, 0
      %v2857 = vsel %vm423, %v2839, 0
      %v2860 = vsel %vm423, %v2840, 0
      %v2863 = vsel %vm423, %v2841, 0
      %v2866 = vsel %vm423, %v2842, 0
      %v2869 = vsel %vm534, %v2843, 0
      %2871 = vmatpush.msra.mxu0 0.0
      %2872 = vmatpush.msra.mxu0 0.0
      %2873 = vmatpush.msra.mxu0 0.0
      %2874 = vmatpush.msra.mxu0 0.0
      %2875 = vmatpush.msra.mxu0 0.0
      %2876 = vmatpush.msra.mxu0 0.0
      %2877 = vmatpush.msra.mxu0 0.0
      %2878 = vmatpush.msra.mxu0 0.0
      %2879 = vmatpush.msra.mxu0 0.0
      %2880 = vmatpush.msra.mxu0 0.0
      %2881 = vmatpush.msra.mxu0 0.0
      %2882 = vmatpush.msra.mxu0 0.0
      %2883 = vmatpush.msra.mxu0 0.0
      %2884 = vmatpush.msra.mxu0 0.0
      %2885 = vmatpush.msra.mxu0 0.0
      %2886 = vmatpush.msra.mxu0 %v2869
      %2887 = vmatmul.f32.gmra.mxu0 %v2845
      %v2888 = vpop.f32.mrf.mxu0
      %v2889 = vadd.f32 0.0, %v2888
      %2890 = vmatmul.f32.gmra.mxu0 %v2848
      %v2891 = vpop.f32.mrf.mxu0
      %v2892 = vadd.f32 0.0, %v2891
      %2893 = vmatmul.f32.gmra.mxu0 %v2851
      %v2894 = vpop.f32.mrf.mxu0
      %v2895 = vadd.f32 0.0, %v2894
      %2896 = vmatmul.f32.gmra.mxu0 %v2854
      %v2897 = vpop.f32.mrf.mxu0
      %v2898 = vadd.f32 0.0, %v2897
      %2899 = vmatmul.f32.gmra.mxu0 %v2857
      %v2900 = vpop.f32.mrf.mxu0
      %v2901 = vadd.f32 0.0, %v2900
      %2902 = vmatmul.f32.gmra.mxu0 %v2860
      %v2903 = vpop.f32.mrf.mxu0
      %v2904 = vadd.f32 0.0, %v2903
      %2905 = vmatmul.f32.gmra.mxu0 %v2863
      %v2906 = vpop.f32.mrf.mxu0
      %v2907 = vadd.f32 0.0, %v2906
      %2908 = vmatmul.f32.gmra.mxu0 %v2866
      %v2909 = vpop.f32.mrf.mxu0
      %v2910 = vadd.f32 0.0, %v2909
      %2911 = vdwg.mxu0
      %v2912 = vadd.f32 %v2827, %v2889
      %v2913 = vadd.f32 %v2828, %v2892
      %v2914 = vadd.f32 %v2829, %v2895
      %v2915 = vadd.f32 %v2830, %v2898
      %v2916 = vadd.f32 %v2831, %v2901
      %v2917 = vadd.f32 %v2832, %v2904
      %v2918 = vadd.f32 %v2833, %v2907
      %v2919 = vadd.f32 %v2834, %v2910
      %v2920 = vmax.f32 %v2912, 0.0
      %v2921 = vmax.f32 %v2913, 0.0
      %v2922 = vmax.f32 %v2914, 0.0
      %v2923 = vmax.f32 %v2915, 0.0
      %v2924 = vmax.f32 %v2916, 0.0
      %v2925 = vmax.f32 %v2917, 0.0
      %v2926 = vmax.f32 %v2918, 0.0
      %v2927 = vmax.f32 %v2919, 0.0
      %s2928 = scalar_lea.vmem [#allocation3], 160
      %2929 = vst.msk [vmem:[%s2928 + $0x1] sm:$0xff] %vm423, %v2920
      %2930 = vst.msk [vmem:[%s2928 + $0x11] sm:$0xff] %vm423, %v2921
      %2931 = vst.msk [vmem:[%s2928 + $0x21] sm:$0xff] %vm423, %v2922
      %2932 = vst.msk [vmem:[%s2928 + $0x31] sm:$0xff] %vm423, %v2923
      %2933 = vst.msk [vmem:[%s2928 + $0x41] sm:$0xff] %vm423, %v2924
      %2934 = vst.msk [vmem:[%s2928 + $0x51] sm:$0xff] %vm423, %v2925
      %2935 = vst.msk [vmem:[%s2928 + $0x61] sm:$0xff] %vm423, %v2926
      %2936 = vst.msk [vmem:[%s2928 + $0x71] sm:$0xff] %vm423, %v2927
      %v2937 = vld [vmem:[%s2] sm:$0x1]
      %v2939 = vperm.slane %v2937, 0
      %v2941 = vld [vmem:[%s1614] sm:$0xff]
      %v2942 = vld [vmem:[%s1614 + $0x10] sm:$0xff]
      %v2943 = vld [vmem:[%s1614 + $0x20] sm:$0xff]
      %v2944 = vld [vmem:[%s1614 + $0x30] sm:$0xff]
      %v2945 = vld [vmem:[%s1614 + $0x40] sm:$0xff]
      %v2946 = vld [vmem:[%s1614 + $0x50] sm:$0xff]
      %v2947 = vld [vmem:[%s1614 + $0x60] sm:$0xff]
      %v2948 = vld [vmem:[%s1614 + $0x70] sm:$0xff]
      %v2949 = vld [vmem:[%s1] sm:$0xf]
      %v2951 = vsel %vm423, %v2941, 0
      %v2954 = vsel %vm423, %v2942, 0
      %v2957 = vsel %vm423, %v2943, 0
      %v2960 = vsel %vm423, %v2944, 0
      %v2963 = vsel %vm423, %v2945, 0
      %v2966 = vsel %vm423, %v2946, 0
      %v2969 = vsel %vm423, %v2947, 0
      %v2972 = vsel %vm423, %v2948, 0
      %v2975 = vsel %vm534, %v2949, 0
      %2977 = vmatpush.msra.mxu0 0.0
      %2978 = vmatpush.msra.mxu0 0.0
      %2979 = vmatpush.msra.mxu0 0.0
      %2980 = vmatpush.msra.mxu0 0.0
      %2981 = vmatpush.msra.mxu0 0.0
      %2982 = vmatpush.msra.mxu0 0.0
      %2983 = vmatpush.msra.mxu0 0.0
      %2984 = vmatpush.msra.mxu0 0.0
      %2985 = vmatpush.msra.mxu0 0.0
      %2986 = vmatpush.msra.mxu0 0.0
      %2987 = vmatpush.msra.mxu0 0.0
      %2988 = vmatpush.msra.mxu0 0.0
      %2989 = vmatpush.msra.mxu0 0.0
      %2990 = vmatpush.msra.mxu0 0.0
      %2991 = vmatpush.msra.mxu0 0.0
      %2992 = vmatpush.msra.mxu0 %v2975
      %2993 = vmatmul.f32.gmra.mxu0 %v2951
      %v2994 = vpop.f32.mrf.mxu0
      %v2995 = vadd.f32 0.0, %v2994
      %2996 = vmatmul.f32.gmra.mxu0 %v2954
      %v2997 = vpop.f32.mrf.mxu0
      %v2998 = vadd.f32 0.0, %v2997
      %2999 = vmatmul.f32.gmra.mxu0 %v2957
      %v3000 = vpop.f32.mrf.mxu0
      %v3001 = vadd.f32 0.0, %v3000
      %3002 = vmatmul.f32.gmra.mxu0 %v2960
      %v3003 = vpop.f32.mrf.mxu0
      %v3004 = vadd.f32 0.0, %v3003
      %3005 = vmatmul.f32.gmra.mxu0 %v2963
      %v3006 = vpop.f32.mrf.mxu0
      %v3007 = vadd.f32 0.0, %v3006
      %3008 = vmatmul.f32.gmra.mxu0 %v2966
      %v3009 = vpop.f32.mrf.mxu0
      %v3010 = vadd.f32 0.0, %v3009
      %3011 = vmatmul.f32.gmra.mxu0 %v2969
      %v3012 = vpop.f32.mrf.mxu0
      %v3013 = vadd.f32 0.0, %v3012
      %3014 = vmatmul.f32.gmra.mxu0 %v2972
      %v3015 = vpop.f32.mrf.mxu0
      %v3016 = vadd.f32 0.0, %v3015
      %3017 = vdwg.mxu0
      %v3018 = vadd.f32 %v2939, %v2995
      %v3019 = vadd.f32 %v2939, %v2998
      %v3020 = vadd.f32 %v2939, %v3001
      %v3021 = vadd.f32 %v2939, %v3004
      %v3022 = vadd.f32 %v2939, %v3007
      %v3023 = vadd.f32 %v2939, %v3010
      %v3024 = vadd.f32 %v2939, %v3013
      %v3025 = vadd.f32 %v2939, %v3016
      %v3026 = vld [vmem:[%s1701] sm:$0xff]
      %v3027 = vld [vmem:[%s1701 + $0x10] sm:$0xff]
      %v3028 = vld [vmem:[%s1701 + $0x20] sm:$0xff]
      %v3029 = vld [vmem:[%s1701 + $0x30] sm:$0xff]
      %v3030 = vld [vmem:[%s1701 + $0x40] sm:$0xff]
      %v3031 = vld [vmem:[%s1701 + $0x50] sm:$0xff]
      %v3032 = vld [vmem:[%s1701 + $0x60] sm:$0xff]
      %v3033 = vld [vmem:[%s1701 + $0x70] sm:$0xff]
      %v3034 = vld [vmem:[%s1450] sm:$0xf]
      %v3036 = vsel %vm423, %v3026, 0
      %v3039 = vsel %vm423, %v3027, 0
      %v3042 = vsel %vm423, %v3028, 0
      %v3045 = vsel %vm423, %v3029, 0
      %v3048 = vsel %vm423, %v3030, 0
      %v3051 = vsel %vm423, %v3031, 0
      %v3054 = vsel %vm423, %v3032, 0
      %v3057 = vsel %vm423, %v3033, 0
      %v3060 = vsel %vm534, %v3034, 0
      %3062 = vmatpush.msra.mxu0 0.0
      %3063 = vmatpush.msra.mxu0 0.0
      %3064 = vmatpush.msra.mxu0 0.0
      %3065 = vmatpush.msra.mxu0 0.0
      %3066 = vmatpush.msra.mxu0 0.0
      %3067 = vmatpush.msra.mxu0 0.0
      %3068 = vmatpush.msra.mxu0 0.0
      %3069 = vmatpush.msra.mxu0 0.0
      %3070 = vmatpush.msra.mxu0 0.0
      %3071 = vmatpush.msra.mxu0 0.0
      %3072 = vmatpush.msra.mxu0 0.0
      %3073 = vmatpush.msra.mxu0 0.0
      %3074 = vmatpush.msra.mxu0 0.0
      %3075 = vmatpush.msra.mxu0 0.0
      %3076 = vmatpush.msra.mxu0 0.0
      %3077 = vmatpush.msra.mxu0 %v3060
      %3078 = vmatmul.f32.gmra.mxu0 %v3036
      %v3079 = vpop.f32.mrf.mxu0
      %v3080 = vadd.f32 0.0, %v3079
      %3081 = vmatmul.f32.gmra.mxu0 %v3039
      %v3082 = vpop.f32.mrf.mxu0
      %v3083 = vadd.f32 0.0, %v3082
      %3084 = vmatmul.f32.gmra.mxu0 %v3042
      %v3085 = vpop.f32.mrf.mxu0
      %v3086 = vadd.f32 0.0, %v3085
      %3087 = vmatmul.f32.gmra.mxu0 %v3045
      %v3088 = vpop.f32.mrf.mxu0
      %v3089 = vadd.f32 0.0, %v3088
      %3090 = vmatmul.f32.gmra.mxu0 %v3048
      %v3091 = vpop.f32.mrf.mxu0
      %v3092 = vadd.f32 0.0, %v3091
      %3093 = vmatmul.f32.gmra.mxu0 %v3051
      %v3094 = vpop.f32.mrf.mxu0
      %v3095 = vadd.f32 0.0, %v3094
      %3096 = vmatmul.f32.gmra.mxu0 %v3054
      %v3097 = vpop.f32.mrf.mxu0
      %v3098 = vadd.f32 0.0, %v3097
      %3099 = vmatmul.f32.gmra.mxu0 %v3057
      %v3100 = vpop.f32.mrf.mxu0
      %v3101 = vadd.f32 0.0, %v3100
      %3102 = vdwg.mxu0
      %v3103 = vadd.f32 %v3018, %v3080
      %v3104 = vadd.f32 %v3019, %v3083
      %v3105 = vadd.f32 %v3020, %v3086
      %v3106 = vadd.f32 %v3021, %v3089
      %v3107 = vadd.f32 %v3022, %v3092
      %v3108 = vadd.f32 %v3023, %v3095
      %v3109 = vadd.f32 %v3024, %v3098
      %v3110 = vadd.f32 %v3025, %v3101
      %v3111 = vld [vmem:[%s1614 + $0x1] sm:$0xff]
      %v3112 = vld [vmem:[%s1614 + $0x11] sm:$0xff]
      %v3113 = vld [vmem:[%s1614 + $0x21] sm:$0xff]
      %v3114 = vld [vmem:[%s1614 + $0x31] sm:$0xff]
      %v3115 = vld [vmem:[%s1614 + $0x41] sm:$0xff]
      %v3116 = vld [vmem:[%s1614 + $0x51] sm:$0xff]
      %v3117 = vld [vmem:[%s1614 + $0x61] sm:$0xff]
      %v3118 = vld [vmem:[%s1614 + $0x71] sm:$0xff]
      %v3119 = vld [vmem:[%s1536] sm:$0xf]
      %v3121 = vsel %vm423, %v3111, 0
      %v3124 = vsel %vm423, %v3112, 0
      %v3127 = vsel %vm423, %v3113, 0
      %v3130 = vsel %vm423, %v3114, 0
      %v3133 = vsel %vm423, %v3115, 0
      %v3136 = vsel %vm423, %v3116, 0
      %v3139 = vsel %vm423, %v3117, 0
      %v3142 = vsel %vm423, %v3118, 0
      %v3145 = vsel %vm534, %v3119, 0
      %3147 = vmatpush.msra.mxu0 0.0
      %3148 = vmatpush.msra.mxu0 0.0
      %3149 = vmatpush.msra.mxu0 0.0
      %3150 = vmatpush.msra.mxu0 0.0
      %3151 = vmatpush.msra.mxu0 0.0
      %3152 = vmatpush.msra.mxu0 0.0
      %3153 = vmatpush.msra.mxu0 0.0
      %3154 = vmatpush.msra.mxu0 0.0
      %3155 = vmatpush.msra.mxu0 0.0
      %3156 = vmatpush.msra.mxu0 0.0
      %3157 = vmatpush.msra.mxu0 0.0
      %3158 = vmatpush.msra.mxu0 0.0
      %3159 = vmatpush.msra.mxu0 0.0
      %3160 = vmatpush.msra.mxu0 0.0
      %3161 = vmatpush.msra.mxu0 0.0
      %3162 = vmatpush.msra.mxu0 %v3145
      %3163 = vmatmul.f32.gmra.mxu0 %v3121
      %v3164 = vpop.f32.mrf.mxu0
      %v3165 = vadd.f32 0.0, %v3164
      %3166 = vmatmul.f32.gmra.mxu0 %v3124
      %v3167 = vpop.f32.mrf.mxu0
      %v3168 = vadd.f32 0.0, %v3167
      %3169 = vmatmul.f32.gmra.mxu0 %v3127
      %v3170 = vpop.f32.mrf.mxu0
      %v3171 = vadd.f32 0.0, %v3170
      %3172 = vmatmul.f32.gmra.mxu0 %v3130
      %v3173 = vpop.f32.mrf.mxu0
      %v3174 = vadd.f32 0.0, %v3173
      %3175 = vmatmul.f32.gmra.mxu0 %v3133
      %v3176 = vpop.f32.mrf.mxu0
      %v3177 = vadd.f32 0.0, %v3176
      %3178 = vmatmul.f32.gmra.mxu0 %v3136
      %v3179 = vpop.f32.mrf.mxu0
      %v3180 = vadd.f32 0.0, %v3179
      %3181 = vmatmul.f32.gmra.mxu0 %v3139
      %v3182 = vpop.f32.mrf.mxu0
      %v3183 = vadd.f32 0.0, %v3182
      %3184 = vmatmul.f32.gmra.mxu0 %v3142
      %v3185 = vpop.f32.mrf.mxu0
      %v3186 = vadd.f32 0.0, %v3185
      %3187 = vdwg.mxu0
      %v3188 = vadd.f32 %v3103, %v3165
      %v3189 = vadd.f32 %v3104, %v3168
      %v3190 = vadd.f32 %v3105, %v3171
      %v3191 = vadd.f32 %v3106, %v3174
      %v3192 = vadd.f32 %v3107, %v3177
      %v3193 = vadd.f32 %v3108, %v3180
      %v3194 = vadd.f32 %v3109, %v3183
      %v3195 = vadd.f32 %v3110, %v3186
      %v3196 = vld [vmem:[%s1874] sm:$0xff]
      %v3197 = vld [vmem:[%s1874 + $0x10] sm:$0xff]
      %v3198 = vld [vmem:[%s1874 + $0x20] sm:$0xff]
      %v3199 = vld [vmem:[%s1874 + $0x30] sm:$0xff]
      %v3200 = vld [vmem:[%s1874 + $0x40] sm:$0xff]
      %v3201 = vld [vmem:[%s1874 + $0x50] sm:$0xff]
      %v3202 = vld [vmem:[%s1874 + $0x60] sm:$0xff]
      %v3203 = vld [vmem:[%s1874 + $0x70] sm:$0xff]
      %v3204 = vld [vmem:[%s1623] sm:$0xf]
      %v3206 = vsel %vm423, %v3196, 0
      %v3209 = vsel %vm423, %v3197, 0
      %v3212 = vsel %vm423, %v3198, 0
      %v3215 = vsel %vm423, %v3199, 0
      %v3218 = vsel %vm423, %v3200, 0
      %v3221 = vsel %vm423, %v3201, 0
      %v3224 = vsel %vm423, %v3202, 0
      %v3227 = vsel %vm423, %v3203, 0
      %v3230 = vsel %vm534, %v3204, 0
      %3232 = vmatpush.msra.mxu0 0.0
      %3233 = vmatpush.msra.mxu0 0.0
      %3234 = vmatpush.msra.mxu0 0.0
      %3235 = vmatpush.msra.mxu0 0.0
      %3236 = vmatpush.msra.mxu0 0.0
      %3237 = vmatpush.msra.mxu0 0.0
      %3238 = vmatpush.msra.mxu0 0.0
      %3239 = vmatpush.msra.mxu0 0.0
      %3240 = vmatpush.msra.mxu0 0.0
      %3241 = vmatpush.msra.mxu0 0.0
      %3242 = vmatpush.msra.mxu0 0.0
      %3243 = vmatpush.msra.mxu0 0.0
      %3244 = vmatpush.msra.mxu0 0.0
      %3245 = vmatpush.msra.mxu0 0.0
      %3246 = vmatpush.msra.mxu0 0.0
      %3247 = vmatpush.msra.mxu0 %v3230
      %3248 = vmatmul.f32.gmra.mxu0 %v3206
      %v3249 = vpop.f32.mrf.mxu0
      %v3250 = vadd.f32 0.0, %v3249
      %3251 = vmatmul.f32.gmra.mxu0 %v3209
      %v3252 = vpop.f32.mrf.mxu0
      %v3253 = vadd.f32 0.0, %v3252
      %3254 = vmatmul.f32.gmra.mxu0 %v3212
      %v3255 = vpop.f32.mrf.mxu0
      %v3256 = vadd.f32 0.0, %v3255
      %3257 = vmatmul.f32.gmra.mxu0 %v3215
      %v3258 = vpop.f32.mrf.mxu0
      %v3259 = vadd.f32 0.0, %v3258
      %3260 = vmatmul.f32.gmra.mxu0 %v3218
      %v3261 = vpop.f32.mrf.mxu0
      %v3262 = vadd.f32 0.0, %v3261
      %3263 = vmatmul.f32.gmra.mxu0 %v3221
      %v3264 = vpop.f32.mrf.mxu0
      %v3265 = vadd.f32 0.0, %v3264
      %3266 = vmatmul.f32.gmra.mxu0 %v3224
      %v3267 = vpop.f32.mrf.mxu0
      %v3268 = vadd.f32 0.0, %v3267
      %3269 = vmatmul.f32.gmra.mxu0 %v3227
      %v3270 = vpop.f32.mrf.mxu0
      %v3271 = vadd.f32 0.0, %v3270
      %3272 = vdwg.mxu0
      %v3273 = vadd.f32 %v3188, %v3250
      %v3274 = vadd.f32 %v3189, %v3253
      %v3275 = vadd.f32 %v3190, %v3256
      %v3276 = vadd.f32 %v3191, %v3259
      %v3277 = vadd.f32 %v3192, %v3262
      %v3278 = vadd.f32 %v3193, %v3265
      %v3279 = vadd.f32 %v3194, %v3268
      %v3280 = vadd.f32 %v3195, %v3271
      %v3281 = vld [vmem:[%s1961] sm:$0xff]
      %v3282 = vld [vmem:[%s1961 + $0x10] sm:$0xff]
      %v3283 = vld [vmem:[%s1961 + $0x20] sm:$0xff]
      %v3284 = vld [vmem:[%s1961 + $0x30] sm:$0xff]
      %v3285 = vld [vmem:[%s1961 + $0x40] sm:$0xff]
      %v3286 = vld [vmem:[%s1961 + $0x50] sm:$0xff]
      %v3287 = vld [vmem:[%s1961 + $0x60] sm:$0xff]
      %v3288 = vld [vmem:[%s1961 + $0x70] sm:$0xff]
      %v3289 = vld [vmem:[%s1710] sm:$0xf]
      %v3291 = vsel %vm423, %v3281, 0
      %v3294 = vsel %vm423, %v3282, 0
      %v3297 = vsel %vm423, %v3283, 0
      %v3300 = vsel %vm423, %v3284, 0
      %v3303 = vsel %vm423, %v3285, 0
      %v3306 = vsel %vm423, %v3286, 0
      %v3309 = vsel %vm423, %v3287, 0
      %v3312 = vsel %vm423, %v3288, 0
      %v3315 = vsel %vm534, %v3289, 0
      %3317 = vmatpush.msra.mxu0 0.0
      %3318 = vmatpush.msra.mxu0 0.0
      %3319 = vmatpush.msra.mxu0 0.0
      %3320 = vmatpush.msra.mxu0 0.0
      %3321 = vmatpush.msra.mxu0 0.0
      %3322 = vmatpush.msra.mxu0 0.0
      %3323 = vmatpush.msra.mxu0 0.0
      %3324 = vmatpush.msra.mxu0 0.0
      %3325 = vmatpush.msra.mxu0 0.0
      %3326 = vmatpush.msra.mxu0 0.0
      %3327 = vmatpush.msra.mxu0 0.0
      %3328 = vmatpush.msra.mxu0 0.0
      %3329 = vmatpush.msra.mxu0 0.0
      %3330 = vmatpush.msra.mxu0 0.0
      %3331 = vmatpush.msra.mxu0 0.0
      %3332 = vmatpush.msra.mxu0 %v3315
      %3333 = vmatmul.f32.gmra.mxu0 %v3291
      %v3334 = vpop.f32.mrf.mxu0
      %v3335 = vadd.f32 0.0, %v3334
      %3336 = vmatmul.f32.gmra.mxu0 %v3294
      %v3337 = vpop.f32.mrf.mxu0
      %v3338 = vadd.f32 0.0, %v3337
      %3339 = vmatmul.f32.gmra.mxu0 %v3297
      %v3340 = vpop.f32.mrf.mxu0
      %v3341 = vadd.f32 0.0, %v3340
      %3342 = vmatmul.f32.gmra.mxu0 %v3300
      %v3343 = vpop.f32.mrf.mxu0
      %v3344 = vadd.f32 0.0, %v3343
      %3345 = vmatmul.f32.gmra.mxu0 %v3303
      %v3346 = vpop.f32.mrf.mxu0
      %v3347 = vadd.f32 0.0, %v3346
      %3348 = vmatmul.f32.gmra.mxu0 %v3306
      %v3349 = vpop.f32.mrf.mxu0
      %v3350 = vadd.f32 0.0, %v3349
      %3351 = vmatmul.f32.gmra.mxu0 %v3309
      %v3352 = vpop.f32.mrf.mxu0
      %v3353 = vadd.f32 0.0, %v3352
      %3354 = vmatmul.f32.gmra.mxu0 %v3312
      %v3355 = vpop.f32.mrf.mxu0
      %v3356 = vadd.f32 0.0, %v3355
      %3357 = vdwg.mxu0
      %v3358 = vadd.f32 %v3273, %v3335
      %v3359 = vadd.f32 %v3274, %v3338
      %v3360 = vadd.f32 %v3275, %v3341
      %v3361 = vadd.f32 %v3276, %v3344
      %v3362 = vadd.f32 %v3277, %v3347
      %v3363 = vadd.f32 %v3278, %v3350
      %v3364 = vadd.f32 %v3279, %v3353
      %v3365 = vadd.f32 %v3280, %v3356
      %v3366 = vld [vmem:[%s1874 + $0x1] sm:$0xff]
      %v3367 = vld [vmem:[%s1874 + $0x11] sm:$0xff]
      %v3368 = vld [vmem:[%s1874 + $0x21] sm:$0xff]
      %v3369 = vld [vmem:[%s1874 + $0x31] sm:$0xff]
      %v3370 = vld [vmem:[%s1874 + $0x41] sm:$0xff]
      %v3371 = vld [vmem:[%s1874 + $0x51] sm:$0xff]
      %v3372 = vld [vmem:[%s1874 + $0x61] sm:$0xff]
      %v3373 = vld [vmem:[%s1874 + $0x71] sm:$0xff]
      %v3374 = vld [vmem:[%s1796] sm:$0xf]
      %v3376 = vsel %vm423, %v3366, 0
      %v3379 = vsel %vm423, %v3367, 0
      %v3382 = vsel %vm423, %v3368, 0
      %v3385 = vsel %vm423, %v3369, 0
      %v3388 = vsel %vm423, %v3370, 0
      %v3391 = vsel %vm423, %v3371, 0
      %v3394 = vsel %vm423, %v3372, 0
      %v3397 = vsel %vm423, %v3373, 0
      %v3400 = vsel %vm534, %v3374, 0
      %3402 = vmatpush.msra.mxu0 0.0
      %3403 = vmatpush.msra.mxu0 0.0
      %3404 = vmatpush.msra.mxu0 0.0
      %3405 = vmatpush.msra.mxu0 0.0
      %3406 = vmatpush.msra.mxu0 0.0
      %3407 = vmatpush.msra.mxu0 0.0
      %3408 = vmatpush.msra.mxu0 0.0
      %3409 = vmatpush.msra.mxu0 0.0
      %3410 = vmatpush.msra.mxu0 0.0
      %3411 = vmatpush.msra.mxu0 0.0
      %3412 = vmatpush.msra.mxu0 0.0
      %3413 = vmatpush.msra.mxu0 0.0
      %3414 = vmatpush.msra.mxu0 0.0
      %3415 = vmatpush.msra.mxu0 0.0
      %3416 = vmatpush.msra.mxu0 0.0
      %3417 = vmatpush.msra.mxu0 %v3400
      %3418 = vmatmul.f32.gmra.mxu0 %v3376
      %v3419 = vpop.f32.mrf.mxu0
      %v3420 = vadd.f32 0.0, %v3419
      %3421 = vmatmul.f32.gmra.mxu0 %v3379
      %v3422 = vpop.f32.mrf.mxu0
      %v3423 = vadd.f32 0.0, %v3422
      %3424 = vmatmul.f32.gmra.mxu0 %v3382
      %v3425 = vpop.f32.mrf.mxu0
      %v3426 = vadd.f32 0.0, %v3425
      %3427 = vmatmul.f32.gmra.mxu0 %v3385
      %v3428 = vpop.f32.mrf.mxu0
      %v3429 = vadd.f32 0.0, %v3428
      %3430 = vmatmul.f32.gmra.mxu0 %v3388
      %v3431 = vpop.f32.mrf.mxu0
      %v3432 = vadd.f32 0.0, %v3431
      %3433 = vmatmul.f32.gmra.mxu0 %v3391
      %v3434 = vpop.f32.mrf.mxu0
      %v3435 = vadd.f32 0.0, %v3434
      %3436 = vmatmul.f32.gmra.mxu0 %v3394
      %v3437 = vpop.f32.mrf.mxu0
      %v3438 = vadd.f32 0.0, %v3437
      %3439 = vmatmul.f32.gmra.mxu0 %v3397
      %v3440 = vpop.f32.mrf.mxu0
      %v3441 = vadd.f32 0.0, %v3440
      %3442 = vdwg.mxu0
      %v3443 = vadd.f32 %v3358, %v3420
      %v3444 = vadd.f32 %v3359, %v3423
      %v3445 = vadd.f32 %v3360, %v3426
      %v3446 = vadd.f32 %v3361, %v3429
      %v3447 = vadd.f32 %v3362, %v3432
      %v3448 = vadd.f32 %v3363, %v3435
      %v3449 = vadd.f32 %v3364, %v3438
      %v3450 = vadd.f32 %v3365, %v3441
      %s3451 = scalar_lea.vmem [#allocation2], 304
      %v3452 = vld [vmem:[%s3451] sm:$0xff]
      %v3453 = vld [vmem:[%s3451 + $0x10] sm:$0xff]
      %v3454 = vld [vmem:[%s3451 + $0x20] sm:$0xff]
      %v3455 = vld [vmem:[%s3451 + $0x30] sm:$0xff]
      %v3456 = vld [vmem:[%s3451 + $0x40] sm:$0xff]
      %v3457 = vld [vmem:[%s3451 + $0x50] sm:$0xff]
      %v3458 = vld [vmem:[%s3451 + $0x60] sm:$0xff]
      %v3459 = vld [vmem:[%s3451 + $0x70] sm:$0xff]
      %v3460 = vld [vmem:[%s1883] sm:$0xf]
      %v3462 = vsel %vm423, %v3452, 0
      %v3465 = vsel %vm423, %v3453, 0
      %v3468 = vsel %vm423, %v3454, 0
      %v3471 = vsel %vm423, %v3455, 0
      %v3474 = vsel %vm423, %v3456, 0
      %v3477 = vsel %vm423, %v3457, 0
      %v3480 = vsel %vm423, %v3458, 0
      %v3483 = vsel %vm423, %v3459, 0
      %v3486 = vsel %vm534, %v3460, 0
      %3488 = vmatpush.msra.mxu0 0.0
      %3489 = vmatpush.msra.mxu0 0.0
      %3490 = vmatpush.msra.mxu0 0.0
      %3491 = vmatpush.msra.mxu0 0.0
      %3492 = vmatpush.msra.mxu0 0.0
      %3493 = vmatpush.msra.mxu0 0.0
      %3494 = vmatpush.msra.mxu0 0.0
      %3495 = vmatpush.msra.mxu0 0.0
      %3496 = vmatpush.msra.mxu0 0.0
      %3497 = vmatpush.msra.mxu0 0.0
      %3498 = vmatpush.msra.mxu0 0.0
      %3499 = vmatpush.msra.mxu0 0.0
      %3500 = vmatpush.msra.mxu0 0.0
      %3501 = vmatpush.msra.mxu0 0.0
      %3502 = vmatpush.msra.mxu0 0.0
      %3503 = vmatpush.msra.mxu0 %v3486
      %3504 = vmatmul.f32.gmra.mxu0 %v3462
      %v3505 = vpop.f32.mrf.mxu0
      %v3506 = vadd.f32 0.0, %v3505
      %3507 = vmatmul.f32.gmra.mxu0 %v3465
      %v3508 = vpop.f32.mrf.mxu0
      %v3509 = vadd.f32 0.0, %v3508
      %3510 = vmatmul.f32.gmra.mxu0 %v3468
      %v3511 = vpop.f32.mrf.mxu0
      %v3512 = vadd.f32 0.0, %v3511
      %3513 = vmatmul.f32.gmra.mxu0 %v3471
      %v3514 = vpop.f32.mrf.mxu0
      %v3515 = vadd.f32 0.0, %v3514
      %3516 = vmatmul.f32.gmra.mxu0 %v3474
      %v3517 = vpop.f32.mrf.mxu0
      %v3518 = vadd.f32 0.0, %v3517
      %3519 = vmatmul.f32.gmra.mxu0 %v3477
      %v3520 = vpop.f32.mrf.mxu0
      %v3521 = vadd.f32 0.0, %v3520
      %3522 = vmatmul.f32.gmra.mxu0 %v3480
      %v3523 = vpop.f32.mrf.mxu0
      %v3524 = vadd.f32 0.0, %v3523
      %3525 = vmatmul.f32.gmra.mxu0 %v3483
      %v3526 = vpop.f32.mrf.mxu0
      %v3527 = vadd.f32 0.0, %v3526
      %3528 = vdwg.mxu0
      %v3529 = vadd.f32 %v3443, %v3506
      %v3530 = vadd.f32 %v3444, %v3509
      %v3531 = vadd.f32 %v3445, %v3512
      %v3532 = vadd.f32 %v3446, %v3515
      %v3533 = vadd.f32 %v3447, %v3518
      %v3534 = vadd.f32 %v3448, %v3521
      %v3535 = vadd.f32 %v3449, %v3524
      %v3536 = vadd.f32 %v3450, %v3527
      %s3537 = scalar_lea.vmem [#allocation2], 448
      %v3538 = vld [vmem:[%s3537] sm:$0xff]
      %v3539 = vld [vmem:[%s3537 + $0x10] sm:$0xff]
      %v3540 = vld [vmem:[%s3537 + $0x20] sm:$0xff]
      %v3541 = vld [vmem:[%s3537 + $0x30] sm:$0xff]
      %v3542 = vld [vmem:[%s3537 + $0x40] sm:$0xff]
      %v3543 = vld [vmem:[%s3537 + $0x50] sm:$0xff]
      %v3544 = vld [vmem:[%s3537 + $0x60] sm:$0xff]
      %v3545 = vld [vmem:[%s3537 + $0x70] sm:$0xff]
      %v3546 = vld [vmem:[%s1970] sm:$0xf]
      %v3548 = vsel %vm423, %v3538, 0
      %v3551 = vsel %vm423, %v3539, 0
      %v3554 = vsel %vm423, %v3540, 0
      %v3557 = vsel %vm423, %v3541, 0
      %v3560 = vsel %vm423, %v3542, 0
      %v3563 = vsel %vm423, %v3543, 0
      %v3566 = vsel %vm423, %v3544, 0
      %v3569 = vsel %vm423, %v3545, 0
      %v3572 = vsel %vm534, %v3546, 0
      %3574 = vmatpush.msra.mxu0 0.0
      %3575 = vmatpush.msra.mxu0 0.0
      %3576 = vmatpush.msra.mxu0 0.0
      %3577 = vmatpush.msra.mxu0 0.0
      %3578 = vmatpush.msra.mxu0 0.0
      %3579 = vmatpush.msra.mxu0 0.0
      %3580 = vmatpush.msra.mxu0 0.0
      %3581 = vmatpush.msra.mxu0 0.0
      %3582 = vmatpush.msra.mxu0 0.0
      %3583 = vmatpush.msra.mxu0 0.0
      %3584 = vmatpush.msra.mxu0 0.0
      %3585 = vmatpush.msra.mxu0 0.0
      %3586 = vmatpush.msra.mxu0 0.0
      %3587 = vmatpush.msra.mxu0 0.0
      %3588 = vmatpush.msra.mxu0 0.0
      %3589 = vmatpush.msra.mxu0 %v3572
      %3590 = vmatmul.f32.gmra.mxu0 %v3548
      %v3591 = vpop.f32.mrf.mxu0
      %v3592 = vadd.f32 0.0, %v3591
      %3593 = vmatmul.f32.gmra.mxu0 %v3551
      %v3594 = vpop.f32.mrf.mxu0
      %v3595 = vadd.f32 0.0, %v3594
      %3596 = vmatmul.f32.gmra.mxu0 %v3554
      %v3597 = vpop.f32.mrf.mxu0
      %v3598 = vadd.f32 0.0, %v3597
      %3599 = vmatmul.f32.gmra.mxu0 %v3557
      %v3600 = vpop.f32.mrf.mxu0
      %v3601 = vadd.f32 0.0, %v3600
      %3602 = vmatmul.f32.gmra.mxu0 %v3560
      %v3603 = vpop.f32.mrf.mxu0
      %v3604 = vadd.f32 0.0, %v3603
      %3605 = vmatmul.f32.gmra.mxu0 %v3563
      %v3606 = vpop.f32.mrf.mxu0
      %v3607 = vadd.f32 0.0, %v3606
      %3608 = vmatmul.f32.gmra.mxu0 %v3566
      %v3609 = vpop.f32.mrf.mxu0
      %v3610 = vadd.f32 0.0, %v3609
      %3611 = vmatmul.f32.gmra.mxu0 %v3569
      %v3612 = vpop.f32.mrf.mxu0
      %v3613 = vadd.f32 0.0, %v3612
      %3614 = vdwg.mxu0
      %v3615 = vadd.f32 %v3529, %v3592
      %v3616 = vadd.f32 %v3530, %v3595
      %v3617 = vadd.f32 %v3531, %v3598
      %v3618 = vadd.f32 %v3532, %v3601
      %v3619 = vadd.f32 %v3533, %v3604
      %v3620 = vadd.f32 %v3534, %v3607
      %v3621 = vadd.f32 %v3535, %v3610
      %v3622 = vadd.f32 %v3536, %v3613
      %v3623 = vld [vmem:[%s3451 + $0x1] sm:$0xff]
      %v3624 = vld [vmem:[%s3451 + $0x11] sm:$0xff]
      %v3625 = vld [vmem:[%s3451 + $0x21] sm:$0xff]
      %v3626 = vld [vmem:[%s3451 + $0x31] sm:$0xff]
      %v3627 = vld [vmem:[%s3451 + $0x41] sm:$0xff]
      %v3628 = vld [vmem:[%s3451 + $0x51] sm:$0xff]
      %v3629 = vld [vmem:[%s3451 + $0x61] sm:$0xff]
      %v3630 = vld [vmem:[%s3451 + $0x71] sm:$0xff]
      %v3631 = vld [vmem:[%s2056] sm:$0xf]
      %v3633 = vsel %vm423, %v3623, 0
      %v3636 = vsel %vm423, %v3624, 0
      %v3639 = vsel %vm423, %v3625, 0
      %v3642 = vsel %vm423, %v3626, 0
      %v3645 = vsel %vm423, %v3627, 0
      %v3648 = vsel %vm423, %v3628, 0
      %v3651 = vsel %vm423, %v3629, 0
      %v3654 = vsel %vm423, %v3630, 0
      %v3657 = vsel %vm534, %v3631, 0
      %3659 = vmatpush.msra.mxu0 0.0
      %3660 = vmatpush.msra.mxu0 0.0
      %3661 = vmatpush.msra.mxu0 0.0
      %3662 = vmatpush.msra.mxu0 0.0
      %3663 = vmatpush.msra.mxu0 0.0
      %3664 = vmatpush.msra.mxu0 0.0
      %3665 = vmatpush.msra.mxu0 0.0
      %3666 = vmatpush.msra.mxu0 0.0
      %3667 = vmatpush.msra.mxu0 0.0
      %3668 = vmatpush.msra.mxu0 0.0
      %3669 = vmatpush.msra.mxu0 0.0
      %3670 = vmatpush.msra.mxu0 0.0
      %3671 = vmatpush.msra.mxu0 0.0
      %3672 = vmatpush.msra.mxu0 0.0
      %3673 = vmatpush.msra.mxu0 0.0
      %3674 = vmatpush.msra.mxu0 %v3657
      %3675 = vmatmul.f32.gmra.mxu0 %v3633
      %v3676 = vpop.f32.mrf.mxu0
      %v3677 = vadd.f32 0.0, %v3676
      %3678 = vmatmul.f32.gmra.mxu0 %v3636
      %v3679 = vpop.f32.mrf.mxu0
      %v3680 = vadd.f32 0.0, %v3679
      %3681 = vmatmul.f32.gmra.mxu0 %v3639
      %v3682 = vpop.f32.mrf.mxu0
      %v3683 = vadd.f32 0.0, %v3682
      %3684 = vmatmul.f32.gmra.mxu0 %v3642
      %v3685 = vpop.f32.mrf.mxu0
      %v3686 = vadd.f32 0.0, %v3685
      %3687 = vmatmul.f32.gmra.mxu0 %v3645
      %v3688 = vpop.f32.mrf.mxu0
      %v3689 = vadd.f32 0.0, %v3688
      %3690 = vmatmul.f32.gmra.mxu0 %v3648
      %v3691 = vpop.f32.mrf.mxu0
      %v3692 = vadd.f32 0.0, %v3691
      %3693 = vmatmul.f32.gmra.mxu0 %v3651
      %v3694 = vpop.f32.mrf.mxu0
      %v3695 = vadd.f32 0.0, %v3694
      %3696 = vmatmul.f32.gmra.mxu0 %v3654
      %v3697 = vpop.f32.mrf.mxu0
      %v3698 = vadd.f32 0.0, %v3697
      %3699 = vdwg.mxu0
      %v3700 = vadd.f32 %v3615, %v3677
      %v3701 = vadd.f32 %v3616, %v3680
      %v3702 = vadd.f32 %v3617, %v3683
      %v3703 = vadd.f32 %v3618, %v3686
      %v3704 = vadd.f32 %v3619, %v3689
      %v3705 = vadd.f32 %v3620, %v3692
      %v3706 = vadd.f32 %v3621, %v3695
      %v3707 = vadd.f32 %v3622, %v3698
      %v3708 = vmax.f32 %v3700, 0.0
      %v3709 = vmax.f32 %v3701, 0.0
      %v3710 = vmax.f32 %v3702, 0.0
      %v3711 = vmax.f32 %v3703, 0.0
      %v3712 = vmax.f32 %v3704, 0.0
      %v3713 = vmax.f32 %v3705, 0.0
      %v3714 = vmax.f32 %v3706, 0.0
      %v3715 = vmax.f32 %v3707, 0.0
      %s3716 = scalar_lea.vmem [#allocation3], 304
      %3717 = vst.msk [vmem:[%s3716 + $0x1] sm:$0xff] %vm423, %v3708
      %3718 = vst.msk [vmem:[%s3716 + $0x11] sm:$0xff] %vm423, %v3709
      %3719 = vst.msk [vmem:[%s3716 + $0x21] sm:$0xff] %vm423, %v3710
      %3720 = vst.msk [vmem:[%s3716 + $0x31] sm:$0xff] %vm423, %v3711
      %3721 = vst.msk [vmem:[%s3716 + $0x41] sm:$0xff] %vm423, %v3712
      %3722 = vst.msk [vmem:[%s3716 + $0x51] sm:$0xff] %vm423, %v3713
      %3723 = vst.msk [vmem:[%s3716 + $0x61] sm:$0xff] %vm423, %v3714
      %3724 = vst.msk [vmem:[%s3716 + $0x71] sm:$0xff] %vm423, %v3715
      %v3725 = vld [vmem:[%s2] sm:$0x1]
      %v3727 = vperm.slane %v3725, 0
      %v3729 = vld [vmem:[%s1701] sm:$0xff]
      %v3730 = vld [vmem:[%s1701 + $0x10] sm:$0xff]
      %v3731 = vld [vmem:[%s1701 + $0x20] sm:$0xff]
      %v3732 = vld [vmem:[%s1701 + $0x30] sm:$0xff]
      %v3733 = vld [vmem:[%s1701 + $0x40] sm:$0xff]
      %v3734 = vld [vmem:[%s1701 + $0x50] sm:$0xff]
      %v3735 = vld [vmem:[%s1701 + $0x60] sm:$0xff]
      %v3736 = vld [vmem:[%s1701 + $0x70] sm:$0xff]
      %v3737 = vld [vmem:[%s1] sm:$0xf]
      %v3739 = vsel %vm423, %v3729, 0
      %v3742 = vsel %vm423, %v3730, 0
      %v3745 = vsel %vm423, %v3731, 0
      %v3748 = vsel %vm423, %v3732, 0
      %v3751 = vsel %vm423, %v3733, 0
      %v3754 = vsel %vm423, %v3734, 0
      %v3757 = vsel %vm423, %v3735, 0
      %v3760 = vsel %vm423, %v3736, 0
      %v3763 = vsel %vm534, %v3737, 0
      %3765 = vmatpush.msra.mxu0 0.0
      %3766 = vmatpush.msra.mxu0 0.0
      %3767 = vmatpush.msra.mxu0 0.0
      %3768 = vmatpush.msra.mxu0 0.0
      %3769 = vmatpush.msra.mxu0 0.0
      %3770 = vmatpush.msra.mxu0 0.0
      %3771 = vmatpush.msra.mxu0 0.0
      %3772 = vmatpush.msra.mxu0 0.0
      %3773 = vmatpush.msra.mxu0 0.0
      %3774 = vmatpush.msra.mxu0 0.0
      %3775 = vmatpush.msra.mxu0 0.0
      %3776 = vmatpush.msra.mxu0 0.0
      %3777 = vmatpush.msra.mxu0 0.0
      %3778 = vmatpush.msra.mxu0 0.0
      %3779 = vmatpush.msra.mxu0 0.0
      %3780 = vmatpush.msra.mxu0 %v3763
      %3781 = vmatmul.f32.gmra.mxu0 %v3739
      %v3782 = vpop.f32.mrf.mxu0
      %v3783 = vadd.f32 0.0, %v3782
      %3784 = vmatmul.f32.gmra.mxu0 %v3742
      %v3785 = vpop.f32.mrf.mxu0
      %v3786 = vadd.f32 0.0, %v3785
      %3787 = vmatmul.f32.gmra.mxu0 %v3745
      %v3788 = vpop.f32.mrf.mxu0
      %v3789 = vadd.f32 0.0, %v3788
      %3790 = vmatmul.f32.gmra.mxu0 %v3748
      %v3791 = vpop.f32.mrf.mxu0
      %v3792 = vadd.f32 0.0, %v3791
      %3793 = vmatmul.f32.gmra.mxu0 %v3751
      %v3794 = vpop.f32.mrf.mxu0
      %v3795 = vadd.f32 0.0, %v3794
      %3796 = vmatmul.f32.gmra.mxu0 %v3754
      %v3797 = vpop.f32.mrf.mxu0
      %v3798 = vadd.f32 0.0, %v3797
      %3799 = vmatmul.f32.gmra.mxu0 %v3757
      %v3800 = vpop.f32.mrf.mxu0
      %v3801 = vadd.f32 0.0, %v3800
      %3802 = vmatmul.f32.gmra.mxu0 %v3760
      %v3803 = vpop.f32.mrf.mxu0
      %v3804 = vadd.f32 0.0, %v3803
      %3805 = vdwg.mxu0
      %v3806 = vadd.f32 %v3727, %v3783
      %v3807 = vadd.f32 %v3727, %v3786
      %v3808 = vadd.f32 %v3727, %v3789
      %v3809 = vadd.f32 %v3727, %v3792
      %v3810 = vadd.f32 %v3727, %v3795
      %v3811 = vadd.f32 %v3727, %v3798
      %v3812 = vadd.f32 %v3727, %v3801
      %v3813 = vadd.f32 %v3727, %v3804
      %v3814 = vld [vmem:[%s1614 + $0x1] sm:$0xff]
      %v3815 = vld [vmem:[%s1614 + $0x11] sm:$0xff]
      %v3816 = vld [vmem:[%s1614 + $0x21] sm:$0xff]
      %v3817 = vld [vmem:[%s1614 + $0x31] sm:$0xff]
      %v3818 = vld [vmem:[%s1614 + $0x41] sm:$0xff]
      %v3819 = vld [vmem:[%s1614 + $0x51] sm:$0xff]
      %v3820 = vld [vmem:[%s1614 + $0x61] sm:$0xff]
      %v3821 = vld [vmem:[%s1614 + $0x71] sm:$0xff]
      %v3822 = vld [vmem:[%s1450] sm:$0xf]
      %v3824 = vsel %vm423, %v3814, 0
      %v3827 = vsel %vm423, %v3815, 0
      %v3830 = vsel %vm423, %v3816, 0
      %v3833 = vsel %vm423, %v3817, 0
      %v3836 = vsel %vm423, %v3818, 0
      %v3839 = vsel %vm423, %v3819, 0
      %v3842 = vsel %vm423, %v3820, 0
      %v3845 = vsel %vm423, %v3821, 0
      %v3848 = vsel %vm534, %v3822, 0
      %3850 = vmatpush.msra.mxu0 0.0
      %3851 = vmatpush.msra.mxu0 0.0
      %3852 = vmatpush.msra.mxu0 0.0
      %3853 = vmatpush.msra.mxu0 0.0
      %3854 = vmatpush.msra.mxu0 0.0
      %3855 = vmatpush.msra.mxu0 0.0
      %3856 = vmatpush.msra.mxu0 0.0
      %3857 = vmatpush.msra.mxu0 0.0
      %3858 = vmatpush.msra.mxu0 0.0
      %3859 = vmatpush.msra.mxu0 0.0
      %3860 = vmatpush.msra.mxu0 0.0
      %3861 = vmatpush.msra.mxu0 0.0
      %3862 = vmatpush.msra.mxu0 0.0
      %3863 = vmatpush.msra.mxu0 0.0
      %3864 = vmatpush.msra.mxu0 0.0
      %3865 = vmatpush.msra.mxu0 %v3848
      %3866 = vmatmul.f32.gmra.mxu0 %v3824
      %v3867 = vpop.f32.mrf.mxu0
      %v3868 = vadd.f32 0.0, %v3867
      %3869 = vmatmul.f32.gmra.mxu0 %v3827
      %v3870 = vpop.f32.mrf.mxu0
      %v3871 = vadd.f32 0.0, %v3870
      %3872 = vmatmul.f32.gmra.mxu0 %v3830
      %v3873 = vpop.f32.mrf.mxu0
      %v3874 = vadd.f32 0.0, %v3873
      %3875 = vmatmul.f32.gmra.mxu0 %v3833
      %v3876 = vpop.f32.mrf.mxu0
      %v3877 = vadd.f32 0.0, %v3876
      %3878 = vmatmul.f32.gmra.mxu0 %v3836
      %v3879 = vpop.f32.mrf.mxu0
      %v3880 = vadd.f32 0.0, %v3879
      %3881 = vmatmul.f32.gmra.mxu0 %v3839
      %v3882 = vpop.f32.mrf.mxu0
      %v3883 = vadd.f32 0.0, %v3882
      %3884 = vmatmul.f32.gmra.mxu0 %v3842
      %v3885 = vpop.f32.mrf.mxu0
      %v3886 = vadd.f32 0.0, %v3885
      %3887 = vmatmul.f32.gmra.mxu0 %v3845
      %v3888 = vpop.f32.mrf.mxu0
      %v3889 = vadd.f32 0.0, %v3888
      %3890 = vdwg.mxu0
      %v3891 = vadd.f32 %v3806, %v3868
      %v3892 = vadd.f32 %v3807, %v3871
      %v3893 = vadd.f32 %v3808, %v3874
      %v3894 = vadd.f32 %v3809, %v3877
      %v3895 = vadd.f32 %v3810, %v3880
      %v3896 = vadd.f32 %v3811, %v3883
      %v3897 = vadd.f32 %v3812, %v3886
      %v3898 = vadd.f32 %v3813, %v3889
      %v3899 = vld [vmem:[%s1701 + $0x1] sm:$0xff]
      %v3900 = vld [vmem:[%s1701 + $0x11] sm:$0xff]
      %v3901 = vld [vmem:[%s1701 + $0x21] sm:$0xff]
      %v3902 = vld [vmem:[%s1701 + $0x31] sm:$0xff]
      %v3903 = vld [vmem:[%s1701 + $0x41] sm:$0xff]
      %v3904 = vld [vmem:[%s1701 + $0x51] sm:$0xff]
      %v3905 = vld [vmem:[%s1701 + $0x61] sm:$0xff]
      %v3906 = vld [vmem:[%s1701 + $0x71] sm:$0xff]
      %v3907 = vld [vmem:[%s1536] sm:$0xf]
      %v3909 = vsel %vm423, %v3899, 0
      %v3912 = vsel %vm423, %v3900, 0
      %v3915 = vsel %vm423, %v3901, 0
      %v3918 = vsel %vm423, %v3902, 0
      %v3921 = vsel %vm423, %v3903, 0
      %v3924 = vsel %vm423, %v3904, 0
      %v3927 = vsel %vm423, %v3905, 0
      %v3930 = vsel %vm423, %v3906, 0
      %v3933 = vsel %vm534, %v3907, 0
      %3935 = vmatpush.msra.mxu0 0.0
      %3936 = vmatpush.msra.mxu0 0.0
      %3937 = vmatpush.msra.mxu0 0.0
      %3938 = vmatpush.msra.mxu0 0.0
      %3939 = vmatpush.msra.mxu0 0.0
      %3940 = vmatpush.msra.mxu0 0.0
      %3941 = vmatpush.msra.mxu0 0.0
      %3942 = vmatpush.msra.mxu0 0.0
      %3943 = vmatpush.msra.mxu0 0.0
      %3944 = vmatpush.msra.mxu0 0.0
      %3945 = vmatpush.msra.mxu0 0.0
      %3946 = vmatpush.msra.mxu0 0.0
      %3947 = vmatpush.msra.mxu0 0.0
      %3948 = vmatpush.msra.mxu0 0.0
      %3949 = vmatpush.msra.mxu0 0.0
      %3950 = vmatpush.msra.mxu0 %v3933
      %3951 = vmatmul.f32.gmra.mxu0 %v3909
      %v3952 = vpop.f32.mrf.mxu0
      %v3953 = vadd.f32 0.0, %v3952
      %3954 = vmatmul.f32.gmra.mxu0 %v3912
      %v3955 = vpop.f32.mrf.mxu0
      %v3956 = vadd.f32 0.0, %v3955
      %3957 = vmatmul.f32.gmra.mxu0 %v3915
      %v3958 = vpop.f32.mrf.mxu0
      %v3959 = vadd.f32 0.0, %v3958
      %3960 = vmatmul.f32.gmra.mxu0 %v3918
      %v3961 = vpop.f32.mrf.mxu0
      %v3962 = vadd.f32 0.0, %v3961
      %3963 = vmatmul.f32.gmra.mxu0 %v3921
      %v3964 = vpop.f32.mrf.mxu0
      %v3965 = vadd.f32 0.0, %v3964
      %3966 = vmatmul.f32.gmra.mxu0 %v3924
      %v3967 = vpop.f32.mrf.mxu0
      %v3968 = vadd.f32 0.0, %v3967
      %3969 = vmatmul.f32.gmra.mxu0 %v3927
      %v3970 = vpop.f32.mrf.mxu0
      %v3971 = vadd.f32 0.0, %v3970
      %3972 = vmatmul.f32.gmra.mxu0 %v3930
      %v3973 = vpop.f32.mrf.mxu0
      %v3974 = vadd.f32 0.0, %v3973
      %3975 = vdwg.mxu0
      %v3976 = vadd.f32 %v3891, %v3953
      %v3977 = vadd.f32 %v3892, %v3956
      %v3978 = vadd.f32 %v3893, %v3959
      %v3979 = vadd.f32 %v3894, %v3962
      %v3980 = vadd.f32 %v3895, %v3965
      %v3981 = vadd.f32 %v3896, %v3968
      %v3982 = vadd.f32 %v3897, %v3971
      %v3983 = vadd.f32 %v3898, %v3974
      %v3984 = vld [vmem:[%s1961] sm:$0xff]
      %v3985 = vld [vmem:[%s1961 + $0x10] sm:$0xff]
      %v3986 = vld [vmem:[%s1961 + $0x20] sm:$0xff]
      %v3987 = vld [vmem:[%s1961 + $0x30] sm:$0xff]
      %v3988 = vld [vmem:[%s1961 + $0x40] sm:$0xff]
      %v3989 = vld [vmem:[%s1961 + $0x50] sm:$0xff]
      %v3990 = vld [vmem:[%s1961 + $0x60] sm:$0xff]
      %v3991 = vld [vmem:[%s1961 + $0x70] sm:$0xff]
      %v3992 = vld [vmem:[%s1623] sm:$0xf]
      %v3994 = vsel %vm423, %v3984, 0
      %v3997 = vsel %vm423, %v3985, 0
      %v4000 = vsel %vm423, %v3986, 0
      %v4003 = vsel %vm423, %v3987, 0
      %v4006 = vsel %vm423, %v3988, 0
      %v4009 = vsel %vm423, %v3989, 0
      %v4012 = vsel %vm423, %v3990, 0
      %v4015 = vsel %vm423, %v3991, 0
      %v4018 = vsel %vm534, %v3992, 0
      %4020 = vmatpush.msra.mxu0 0.0
      %4021 = vmatpush.msra.mxu0 0.0
      %4022 = vmatpush.msra.mxu0 0.0
      %4023 = vmatpush.msra.mxu0 0.0
      %4024 = vmatpush.msra.mxu0 0.0
      %4025 = vmatpush.msra.mxu0 0.0
      %4026 = vmatpush.msra.mxu0 0.0
      %4027 = vmatpush.msra.mxu0 0.0
      %4028 = vmatpush.msra.mxu0 0.0
      %4029 = vmatpush.msra.mxu0 0.0
      %4030 = vmatpush.msra.mxu0 0.0
      %4031 = vmatpush.msra.mxu0 0.0
      %4032 = vmatpush.msra.mxu0 0.0
      %4033 = vmatpush.msra.mxu0 0.0
      %4034 = vmatpush.msra.mxu0 0.0
      %4035 = vmatpush.msra.mxu0 %v4018
      %4036 = vmatmul.f32.gmra.mxu0 %v3994
      %v4037 = vpop.f32.mrf.mxu0
      %v4038 = vadd.f32 0.0, %v4037
      %4039 = vmatmul.f32.gmra.mxu0 %v3997
      %v4040 = vpop.f32.mrf.mxu0
      %v4041 = vadd.f32 0.0, %v4040
      %4042 = vmatmul.f32.gmra.mxu0 %v4000
      %v4043 = vpop.f32.mrf.mxu0
      %v4044 = vadd.f32 0.0, %v4043
      %4045 = vmatmul.f32.gmra.mxu0 %v4003
      %v4046 = vpop.f32.mrf.mxu0
      %v4047 = vadd.f32 0.0, %v4046
      %4048 = vmatmul.f32.gmra.mxu0 %v4006
      %v4049 = vpop.f32.mrf.mxu0
      %v4050 = vadd.f32 0.0, %v4049
      %4051 = vmatmul.f32.gmra.mxu0 %v4009
      %v4052 = vpop.f32.mrf.mxu0
      %v4053 = vadd.f32 0.0, %v4052
      %4054 = vmatmul.f32.gmra.mxu0 %v4012
      %v4055 = vpop.f32.mrf.mxu0
      %v4056 = vadd.f32 0.0, %v4055
      %4057 = vmatmul.f32.gmra.mxu0 %v4015
      %v4058 = vpop.f32.mrf.mxu0
      %v4059 = vadd.f32 0.0, %v4058
      %4060 = vdwg.mxu0
      %v4061 = vadd.f32 %v3976, %v4038
      %v4062 = vadd.f32 %v3977, %v4041
      %v4063 = vadd.f32 %v3978, %v4044
      %v4064 = vadd.f32 %v3979, %v4047
      %v4065 = vadd.f32 %v3980, %v4050
      %v4066 = vadd.f32 %v3981, %v4053
      %v4067 = vadd.f32 %v3982, %v4056
      %v4068 = vadd.f32 %v3983, %v4059
      %v4069 = vld [vmem:[%s1874 + $0x1] sm:$0xff]
      %v4070 = vld [vmem:[%s1874 + $0x11] sm:$0xff]
      %v4071 = vld [vmem:[%s1874 + $0x21] sm:$0xff]
      %v4072 = vld [vmem:[%s1874 + $0x31] sm:$0xff]
      %v4073 = vld [vmem:[%s1874 + $0x41] sm:$0xff]
      %v4074 = vld [vmem:[%s1874 + $0x51] sm:$0xff]
      %v4075 = vld [vmem:[%s1874 + $0x61] sm:$0xff]
      %v4076 = vld [vmem:[%s1874 + $0x71] sm:$0xff]
      %v4077 = vld [vmem:[%s1710] sm:$0xf]
      %v4079 = vsel %vm423, %v4069, 0
      %v4082 = vsel %vm423, %v4070, 0
      %v4085 = vsel %vm423, %v4071, 0
      %v4088 = vsel %vm423, %v4072, 0
      %v4091 = vsel %vm423, %v4073, 0
      %v4094 = vsel %vm423, %v4074, 0
      %v4097 = vsel %vm423, %v4075, 0
      %v4100 = vsel %vm423, %v4076, 0
      %v4103 = vsel %vm534, %v4077, 0
      %4105 = vmatpush.msra.mxu0 0.0
      %4106 = vmatpush.msra.mxu0 0.0
      %4107 = vmatpush.msra.mxu0 0.0
      %4108 = vmatpush.msra.mxu0 0.0
      %4109 = vmatpush.msra.mxu0 0.0
      %4110 = vmatpush.msra.mxu0 0.0
      %4111 = vmatpush.msra.mxu0 0.0
      %4112 = vmatpush.msra.mxu0 0.0
      %4113 = vmatpush.msra.mxu0 0.0
      %4114 = vmatpush.msra.mxu0 0.0
      %4115 = vmatpush.msra.mxu0 0.0
      %4116 = vmatpush.msra.mxu0 0.0
      %4117 = vmatpush.msra.mxu0 0.0
      %4118 = vmatpush.msra.mxu0 0.0
      %4119 = vmatpush.msra.mxu0 0.0
      %4120 = vmatpush.msra.mxu0 %v4103
      %4121 = vmatmul.f32.gmra.mxu0 %v4079
      %v4122 = vpop.f32.mrf.mxu0
      %v4123 = vadd.f32 0.0, %v4122
      %4124 = vmatmul.f32.gmra.mxu0 %v4082
      %v4125 = vpop.f32.mrf.mxu0
      %v4126 = vadd.f32 0.0, %v4125
      %4127 = vmatmul.f32.gmra.mxu0 %v4085
      %v4128 = vpop.f32.mrf.mxu0
      %v4129 = vadd.f32 0.0, %v4128
      %4130 = vmatmul.f32.gmra.mxu0 %v4088
      %v4131 = vpop.f32.mrf.mxu0
      %v4132 = vadd.f32 0.0, %v4131
      %4133 = vmatmul.f32.gmra.mxu0 %v4091
      %v4134 = vpop.f32.mrf.mxu0
      %v4135 = vadd.f32 0.0, %v4134
      %4136 = vmatmul.f32.gmra.mxu0 %v4094
      %v4137 = vpop.f32.mrf.mxu0
      %v4138 = vadd.f32 0.0, %v4137
      %4139 = vmatmul.f32.gmra.mxu0 %v4097
      %v4140 = vpop.f32.mrf.mxu0
      %v4141 = vadd.f32 0.0, %v4140
      %4142 = vmatmul.f32.gmra.mxu0 %v4100
      %v4143 = vpop.f32.mrf.mxu0
      %v4144 = vadd.f32 0.0, %v4143
      %4145 = vdwg.mxu0
      %v4146 = vadd.f32 %v4061, %v4123
      %v4147 = vadd.f32 %v4062, %v4126
      %v4148 = vadd.f32 %v4063, %v4129
      %v4149 = vadd.f32 %v4064, %v4132
      %v4150 = vadd.f32 %v4065, %v4135
      %v4151 = vadd.f32 %v4066, %v4138
      %v4152 = vadd.f32 %v4067, %v4141
      %v4153 = vadd.f32 %v4068, %v4144
      %v4154 = vld [vmem:[%s1961 + $0x1] sm:$0xff]
      %v4155 = vld [vmem:[%s1961 + $0x11] sm:$0xff]
      %v4156 = vld [vmem:[%s1961 + $0x21] sm:$0xff]
      %v4157 = vld [vmem:[%s1961 + $0x31] sm:$0xff]
      %v4158 = vld [vmem:[%s1961 + $0x41] sm:$0xff]
      %v4159 = vld [vmem:[%s1961 + $0x51] sm:$0xff]
      %v4160 = vld [vmem:[%s1961 + $0x61] sm:$0xff]
      %v4161 = vld [vmem:[%s1961 + $0x71] sm:$0xff]
      %v4162 = vld [vmem:[%s1796] sm:$0xf]
      %v4164 = vsel %vm423, %v4154, 0
      %v4167 = vsel %vm423, %v4155, 0
      %v4170 = vsel %vm423, %v4156, 0
      %v4173 = vsel %vm423, %v4157, 0
      %v4176 = vsel %vm423, %v4158, 0
      %v4179 = vsel %vm423, %v4159, 0
      %v4182 = vsel %vm423, %v4160, 0
      %v4185 = vsel %vm423, %v4161, 0
      %v4188 = vsel %vm534, %v4162, 0
      %4190 = vmatpush.msra.mxu0 0.0
      %4191 = vmatpush.msra.mxu0 0.0
      %4192 = vmatpush.msra.mxu0 0.0
      %4193 = vmatpush.msra.mxu0 0.0
      %4194 = vmatpush.msra.mxu0 0.0
      %4195 = vmatpush.msra.mxu0 0.0
      %4196 = vmatpush.msra.mxu0 0.0
      %4197 = vmatpush.msra.mxu0 0.0
      %4198 = vmatpush.msra.mxu0 0.0
      %4199 = vmatpush.msra.mxu0 0.0
      %4200 = vmatpush.msra.mxu0 0.0
      %4201 = vmatpush.msra.mxu0 0.0
      %4202 = vmatpush.msra.mxu0 0.0
      %4203 = vmatpush.msra.mxu0 0.0
      %4204 = vmatpush.msra.mxu0 0.0
      %4205 = vmatpush.msra.mxu0 %v4188
      %4206 = vmatmul.f32.gmra.mxu0 %v4164
      %v4207 = vpop.f32.mrf.mxu0
      %v4208 = vadd.f32 0.0, %v4207
      %4209 = vmatmul.f32.gmra.mxu0 %v4167
      %v4210 = vpop.f32.mrf.mxu0
      %v4211 = vadd.f32 0.0, %v4210
      %4212 = vmatmul.f32.gmra.mxu0 %v4170
      %v4213 = vpop.f32.mrf.mxu0
      %v4214 = vadd.f32 0.0, %v4213
      %4215 = vmatmul.f32.gmra.mxu0 %v4173
      %v4216 = vpop.f32.mrf.mxu0
      %v4217 = vadd.f32 0.0, %v4216
      %4218 = vmatmul.f32.gmra.mxu0 %v4176
      %v4219 = vpop.f32.mrf.mxu0
      %v4220 = vadd.f32 0.0, %v4219
      %4221 = vmatmul.f32.gmra.mxu0 %v4179
      %v4222 = vpop.f32.mrf.mxu0
      %v4223 = vadd.f32 0.0, %v4222
      %4224 = vmatmul.f32.gmra.mxu0 %v4182
      %v4225 = vpop.f32.mrf.mxu0
      %v4226 = vadd.f32 0.0, %v4225
      %4227 = vmatmul.f32.gmra.mxu0 %v4185
      %v4228 = vpop.f32.mrf.mxu0
      %v4229 = vadd.f32 0.0, %v4228
      %4230 = vdwg.mxu0
      %v4231 = vadd.f32 %v4146, %v4208
      %v4232 = vadd.f32 %v4147, %v4211
      %v4233 = vadd.f32 %v4148, %v4214
      %v4234 = vadd.f32 %v4149, %v4217
      %v4235 = vadd.f32 %v4150, %v4220
      %v4236 = vadd.f32 %v4151, %v4223
      %v4237 = vadd.f32 %v4152, %v4226
      %v4238 = vadd.f32 %v4153, %v4229
      %v4239 = vld [vmem:[%s3537] sm:$0xff]
      %v4240 = vld [vmem:[%s3537 + $0x10] sm:$0xff]
      %v4241 = vld [vmem:[%s3537 + $0x20] sm:$0xff]
      %v4242 = vld [vmem:[%s3537 + $0x30] sm:$0xff]
      %v4243 = vld [vmem:[%s3537 + $0x40] sm:$0xff]
      %v4244 = vld [vmem:[%s3537 + $0x50] sm:$0xff]
      %v4245 = vld [vmem:[%s3537 + $0x60] sm:$0xff]
      %v4246 = vld [vmem:[%s3537 + $0x70] sm:$0xff]
      %v4247 = vld [vmem:[%s1883] sm:$0xf]
      %v4249 = vsel %vm423, %v4239, 0
      %v4252 = vsel %vm423, %v4240, 0
      %v4255 = vsel %vm423, %v4241, 0
      %v4258 = vsel %vm423, %v4242, 0
      %v4261 = vsel %vm423, %v4243, 0
      %v4264 = vsel %vm423, %v4244, 0
      %v4267 = vsel %vm423, %v4245, 0
      %v4270 = vsel %vm423, %v4246, 0
      %v4273 = vsel %vm534, %v4247, 0
      %4275 = vmatpush.msra.mxu0 0.0
      %4276 = vmatpush.msra.mxu0 0.0
      %4277 = vmatpush.msra.mxu0 0.0
      %4278 = vmatpush.msra.mxu0 0.0
      %4279 = vmatpush.msra.mxu0 0.0
      %4280 = vmatpush.msra.mxu0 0.0
      %4281 = vmatpush.msra.mxu0 0.0
      %4282 = vmatpush.msra.mxu0 0.0
      %4283 = vmatpush.msra.mxu0 0.0
      %4284 = vmatpush.msra.mxu0 0.0
      %4285 = vmatpush.msra.mxu0 0.0
      %4286 = vmatpush.msra.mxu0 0.0
      %4287 = vmatpush.msra.mxu0 0.0
      %4288 = vmatpush.msra.mxu0 0.0
      %4289 = vmatpush.msra.mxu0 0.0
      %4290 = vmatpush.msra.mxu0 %v4273
      %4291 = vmatmul.f32.gmra.mxu0 %v4249
      %v4292 = vpop.f32.mrf.mxu0
      %v4293 = vadd.f32 0.0, %v4292
      %4294 = vmatmul.f32.gmra.mxu0 %v4252
      %v4295 = vpop.f32.mrf.mxu0
      %v4296 = vadd.f32 0.0, %v4295
      %4297 = vmatmul.f32.gmra.mxu0 %v4255
      %v4298 = vpop.f32.mrf.mxu0
      %v4299 = vadd.f32 0.0, %v4298
      %4300 = vmatmul.f32.gmra.mxu0 %v4258
      %v4301 = vpop.f32.mrf.mxu0
      %v4302 = vadd.f32 0.0, %v4301
      %4303 = vmatmul.f32.gmra.mxu0 %v4261
      %v4304 = vpop.f32.mrf.mxu0
      %v4305 = vadd.f32 0.0, %v4304
      %4306 = vmatmul.f32.gmra.mxu0 %v4264
      %v4307 = vpop.f32.mrf.mxu0
      %v4308 = vadd.f32 0.0, %v4307
      %4309 = vmatmul.f32.gmra.mxu0 %v4267
      %v4310 = vpop.f32.mrf.mxu0
      %v4311 = vadd.f32 0.0, %v4310
      %4312 = vmatmul.f32.gmra.mxu0 %v4270
      %v4313 = vpop.f32.mrf.mxu0
      %v4314 = vadd.f32 0.0, %v4313
      %4315 = vdwg.mxu0
      %v4316 = vadd.f32 %v4231, %v4293
      %v4317 = vadd.f32 %v4232, %v4296
      %v4318 = vadd.f32 %v4233, %v4299
      %v4319 = vadd.f32 %v4234, %v4302
      %v4320 = vadd.f32 %v4235, %v4305
      %v4321 = vadd.f32 %v4236, %v4308
      %v4322 = vadd.f32 %v4237, %v4311
      %v4323 = vadd.f32 %v4238, %v4314
      %v4324 = vld [vmem:[%s3451 + $0x1] sm:$0xff]
      %v4325 = vld [vmem:[%s3451 + $0x11] sm:$0xff]
      %v4326 = vld [vmem:[%s3451 + $0x21] sm:$0xff]
      %v4327 = vld [vmem:[%s3451 + $0x31] sm:$0xff]
      %v4328 = vld [vmem:[%s3451 + $0x41] sm:$0xff]
      %v4329 = vld [vmem:[%s3451 + $0x51] sm:$0xff]
      %v4330 = vld [vmem:[%s3451 + $0x61] sm:$0xff]
      %v4331 = vld [vmem:[%s3451 + $0x71] sm:$0xff]
      %v4332 = vld [vmem:[%s1970] sm:$0xf]
      %v4334 = vsel %vm423, %v4324, 0
      %v4337 = vsel %vm423, %v4325, 0
      %v4340 = vsel %vm423, %v4326, 0
      %v4343 = vsel %vm423, %v4327, 0
      %v4346 = vsel %vm423, %v4328, 0
      %v4349 = vsel %vm423, %v4329, 0
      %v4352 = vsel %vm423, %v4330, 0
      %v4355 = vsel %vm423, %v4331, 0
      %v4358 = vsel %vm534, %v4332, 0
      %4360 = vmatpush.msra.mxu0 0.0
      %4361 = vmatpush.msra.mxu0 0.0
      %4362 = vmatpush.msra.mxu0 0.0
      %4363 = vmatpush.msra.mxu0 0.0
      %4364 = vmatpush.msra.mxu0 0.0
      %4365 = vmatpush.msra.mxu0 0.0
      %4366 = vmatpush.msra.mxu0 0.0
      %4367 = vmatpush.msra.mxu0 0.0
      %4368 = vmatpush.msra.mxu0 0.0
      %4369 = vmatpush.msra.mxu0 0.0
      %4370 = vmatpush.msra.mxu0 0.0
      %4371 = vmatpush.msra.mxu0 0.0
      %4372 = vmatpush.msra.mxu0 0.0
      %4373 = vmatpush.msra.mxu0 0.0
      %4374 = vmatpush.msra.mxu0 0.0
      %4375 = vmatpush.msra.mxu0 %v4358
      %4376 = vmatmul.f32.gmra.mxu0 %v4334
      %v4377 = vpop.f32.mrf.mxu0
      %v4378 = vadd.f32 0.0, %v4377
      %4379 = vmatmul.f32.gmra.mxu0 %v4337
      %v4380 = vpop.f32.mrf.mxu0
      %v4381 = vadd.f32 0.0, %v4380
      %4382 = vmatmul.f32.gmra.mxu0 %v4340
      %v4383 = vpop.f32.mrf.mxu0
      %v4384 = vadd.f32 0.0, %v4383
      %4385 = vmatmul.f32.gmra.mxu0 %v4343
      %v4386 = vpop.f32.mrf.mxu0
      %v4387 = vadd.f32 0.0, %v4386
      %4388 = vmatmul.f32.gmra.mxu0 %v4346
      %v4389 = vpop.f32.mrf.mxu0
      %v4390 = vadd.f32 0.0, %v4389
      %4391 = vmatmul.f32.gmra.mxu0 %v4349
      %v4392 = vpop.f32.mrf.mxu0
      %v4393 = vadd.f32 0.0, %v4392
      %4394 = vmatmul.f32.gmra.mxu0 %v4352
      %v4395 = vpop.f32.mrf.mxu0
      %v4396 = vadd.f32 0.0, %v4395
      %4397 = vmatmul.f32.gmra.mxu0 %v4355
      %v4398 = vpop.f32.mrf.mxu0
      %v4399 = vadd.f32 0.0, %v4398
      %4400 = vdwg.mxu0
      %v4401 = vadd.f32 %v4316, %v4378
      %v4402 = vadd.f32 %v4317, %v4381
      %v4403 = vadd.f32 %v4318, %v4384
      %v4404 = vadd.f32 %v4319, %v4387
      %v4405 = vadd.f32 %v4320, %v4390
      %v4406 = vadd.f32 %v4321, %v4393
      %v4407 = vadd.f32 %v4322, %v4396
      %v4408 = vadd.f32 %v4323, %v4399
      %v4409 = vld [vmem:[%s3537 + $0x1] sm:$0xff]
      %v4410 = vld [vmem:[%s3537 + $0x11] sm:$0xff]
      %v4411 = vld [vmem:[%s3537 + $0x21] sm:$0xff]
      %v4412 = vld [vmem:[%s3537 + $0x31] sm:$0xff]
      %v4413 = vld [vmem:[%s3537 + $0x41] sm:$0xff]
      %v4414 = vld [vmem:[%s3537 + $0x51] sm:$0xff]
      %v4415 = vld [vmem:[%s3537 + $0x61] sm:$0xff]
      %v4416 = vld [vmem:[%s3537 + $0x71] sm:$0xff]
      %v4417 = vld [vmem:[%s2056] sm:$0xf]
      %v4419 = vsel %vm423, %v4409, 0
      %v4422 = vsel %vm423, %v4410, 0
      %v4425 = vsel %vm423, %v4411, 0
      %v4428 = vsel %vm423, %v4412, 0
      %v4431 = vsel %vm423, %v4413, 0
      %v4434 = vsel %vm423, %v4414, 0
      %v4437 = vsel %vm423, %v4415, 0
      %v4440 = vsel %vm423, %v4416, 0
      %v4443 = vsel %vm534, %v4417, 0
      %4445 = vmatpush.msra.mxu0 0.0
      %4446 = vmatpush.msra.mxu0 0.0
      %4447 = vmatpush.msra.mxu0 0.0
      %4448 = vmatpush.msra.mxu0 0.0
      %4449 = vmatpush.msra.mxu0 0.0
      %4450 = vmatpush.msra.mxu0 0.0
      %4451 = vmatpush.msra.mxu0 0.0
      %4452 = vmatpush.msra.mxu0 0.0
      %4453 = vmatpush.msra.mxu0 0.0
      %4454 = vmatpush.msra.mxu0 0.0
      %4455 = vmatpush.msra.mxu0 0.0
      %4456 = vmatpush.msra.mxu0 0.0
      %4457 = vmatpush.msra.mxu0 0.0
      %4458 = vmatpush.msra.mxu0 0.0
      %4459 = vmatpush.msra.mxu0 0.0
      %4460 = vmatpush.msra.mxu0 %v4443
      %4461 = vmatmul.f32.gmra.mxu0 %v4419
      %v4462 = vpop.f32.mrf.mxu0
      %v4463 = vadd.f32 0.0, %v4462
      %4464 = vmatmul.f32.gmra.mxu0 %v4422
      %v4465 = vpop.f32.mrf.mxu0
      %v4466 = vadd.f32 0.0, %v4465
      %4467 = vmatmul.f32.gmra.mxu0 %v4425
      %v4468 = vpop.f32.mrf.mxu0
      %v4469 = vadd.f32 0.0, %v4468
      %4470 = vmatmul.f32.gmra.mxu0 %v4428
      %v4471 = vpop.f32.mrf.mxu0
      %v4472 = vadd.f32 0.0, %v4471
      %4473 = vmatmul.f32.gmra.mxu0 %v4431
      %v4474 = vpop.f32.mrf.mxu0
      %v4475 = vadd.f32 0.0, %v4474
      %4476 = vmatmul.f32.gmra.mxu0 %v4434
      %v4477 = vpop.f32.mrf.mxu0
      %v4478 = vadd.f32 0.0, %v4477
      %4479 = vmatmul.f32.gmra.mxu0 %v4437
      %v4480 = vpop.f32.mrf.mxu0
      %v4481 = vadd.f32 0.0, %v4480
      %4482 = vmatmul.f32.gmra.mxu0 %v4440
      %v4483 = vpop.f32.mrf.mxu0
      %v4484 = vadd.f32 0.0, %v4483
      %4485 = vdwg.mxu0
      %v4486 = vadd.f32 %v4401, %v4463
      %v4487 = vadd.f32 %v4402, %v4466
      %v4488 = vadd.f32 %v4403, %v4469
      %v4489 = vadd.f32 %v4404, %v4472
      %v4490 = vadd.f32 %v4405, %v4475
      %v4491 = vadd.f32 %v4406, %v4478
      %v4492 = vadd.f32 %v4407, %v4481
      %v4493 = vadd.f32 %v4408, %v4484
      %v4494 = vmax.f32 %v4486, 0.0
      %v4495 = vmax.f32 %v4487, 0.0
      %v4496 = vmax.f32 %v4488, 0.0
      %v4497 = vmax.f32 %v4489, 0.0
      %v4498 = vmax.f32 %v4490, 0.0
      %v4499 = vmax.f32 %v4491, 0.0
      %v4500 = vmax.f32 %v4492, 0.0
      %v4501 = vmax.f32 %v4493, 0.0
      %s4502 = scalar_lea.vmem [#allocation3], 448
      %4503 = vst.msk [vmem:[%s4502 + $0x1] sm:$0xff] %vm423, %v4494
      %4504 = vst.msk [vmem:[%s4502 + $0x11] sm:$0xff] %vm423, %v4495
      %4505 = vst.msk [vmem:[%s4502 + $0x21] sm:$0xff] %vm423, %v4496
      %4506 = vst.msk [vmem:[%s4502 + $0x31] sm:$0xff] %vm423, %v4497
      %4507 = vst.msk [vmem:[%s4502 + $0x41] sm:$0xff] %vm423, %v4498
      %4508 = vst.msk [vmem:[%s4502 + $0x51] sm:$0xff] %vm423, %v4499
      %4509 = vst.msk [vmem:[%s4502 + $0x61] sm:$0xff] %vm423, %v4500
      %4510 = vst.msk [vmem:[%s4502 + $0x71] sm:$0xff] %vm423, %v4501
      %v4511 = vld [vmem:[%s4] sm:$0x1]
      %v4513 = vperm.slane %v4511, 0
      %v4515 = vadd.f32 %v1272, %v4513
      %v4516 = vadd.f32 %v1273, %v4513
      %v4517 = vadd.f32 %v1274, %v4513
      %v4518 = vadd.f32 %v1275, %v4513
      %v4519 = vadd.f32 %v1276, %v4513
      %v4520 = vadd.f32 %v1277, %v4513
      %v4521 = vadd.f32 %v1278, %v4513
      %v4522 = vadd.f32 %v1279, %v4513
      %s4523 = scalar_lea.vmem [#allocation3], 432
      %v4524 = vld [vmem:[%s4523] sm:$0xff]
      %v4525 = vld [vmem:[%s4523 + $0x10] sm:$0xff]
      %v4526 = vld [vmem:[%s4523 + $0x20] sm:$0xff]
      %v4527 = vld [vmem:[%s4523 + $0x30] sm:$0xff]
      %v4528 = vld [vmem:[%s4523 + $0x40] sm:$0xff]
      %v4529 = vld [vmem:[%s4523 + $0x50] sm:$0xff]
      %v4530 = vld [vmem:[%s4523 + $0x60] sm:$0xff]
      %v4531 = vld [vmem:[%s4523 + $0x70] sm:$0xff]
      %v4532 = vld [vmem:[%s3] sm:$0xf]
      %v4534 = vsel %vm423, %v4524, 0
      %v4537 = vsel %vm423, %v4525, 0
      %v4540 = vsel %vm423, %v4526, 0
      %v4543 = vsel %vm423, %v4527, 0
      %v4546 = vsel %vm423, %v4528, 0
      %v4549 = vsel %vm423, %v4529, 0
      %v4552 = vsel %vm423, %v4530, 0
      %v4555 = vsel %vm423, %v4531, 0
      %v4558 = vsel %vm534, %v4532, 0
      %4560 = vmatpush.msra.mxu0 0.0
      %4561 = vmatpush.msra.mxu0 0.0
      %4562 = vmatpush.msra.mxu0 0.0
      %4563 = vmatpush.msra.mxu0 0.0
      %4564 = vmatpush.msra.mxu0 0.0
      %4565 = vmatpush.msra.mxu0 0.0
      %4566 = vmatpush.msra.mxu0 0.0
      %4567 = vmatpush.msra.mxu0 0.0
      %4568 = vmatpush.msra.mxu0 0.0
      %4569 = vmatpush.msra.mxu0 0.0
      %4570 = vmatpush.msra.mxu0 0.0
      %4571 = vmatpush.msra.mxu0 0.0
      %4572 = vmatpush.msra.mxu0 0.0
      %4573 = vmatpush.msra.mxu0 0.0
      %4574 = vmatpush.msra.mxu0 0.0
      %4575 = vmatpush.msra.mxu0 %v4558
      %4576 = vmatmul.f32.gmra.mxu0 %v4534
      %v4577 = vpop.f32.mrf.mxu0
      %v4578 = vadd.f32 0.0, %v4577
      %4579 = vmatmul.f32.gmra.mxu0 %v4537
      %v4580 = vpop.f32.mrf.mxu0
      %v4581 = vadd.f32 0.0, %v4580
      %4582 = vmatmul.f32.gmra.mxu0 %v4540
      %v4583 = vpop.f32.mrf.mxu0
      %v4584 = vadd.f32 0.0, %v4583
      %4585 = vmatmul.f32.gmra.mxu0 %v4543
      %v4586 = vpop.f32.mrf.mxu0
      %v4587 = vadd.f32 0.0, %v4586
      %4588 = vmatmul.f32.gmra.mxu0 %v4546
      %v4589 = vpop.f32.mrf.mxu0
      %v4590 = vadd.f32 0.0, %v4589
      %4591 = vmatmul.f32.gmra.mxu0 %v4549
      %v4592 = vpop.f32.mrf.mxu0
      %v4593 = vadd.f32 0.0, %v4592
      %4594 = vmatmul.f32.gmra.mxu0 %v4552
      %v4595 = vpop.f32.mrf.mxu0
      %v4596 = vadd.f32 0.0, %v4595
      %4597 = vmatmul.f32.gmra.mxu0 %v4555
      %v4598 = vpop.f32.mrf.mxu0
      %v4599 = vadd.f32 0.0, %v4598
      %4600 = vdwg.mxu0
      %v4601 = vadd.f32 %v4515, %v4578
      %v4602 = vadd.f32 %v4516, %v4581
      %v4603 = vadd.f32 %v4517, %v4584
      %v4604 = vadd.f32 %v4518, %v4587
      %v4605 = vadd.f32 %v4519, %v4590
      %v4606 = vadd.f32 %v4520, %v4593
      %v4607 = vadd.f32 %v4521, %v4596
      %v4608 = vadd.f32 %v4522, %v4599
      %s4609 = scalar_lea.vmem [#allocation3], 288
      %v4610 = vld [vmem:[%s4609 + $0x1] sm:$0xff]
      %v4611 = vld [vmem:[%s4609 + $0x11] sm:$0xff]
      %v4612 = vld [vmem:[%s4609 + $0x21] sm:$0xff]
      %v4613 = vld [vmem:[%s4609 + $0x31] sm:$0xff]
      %v4614 = vld [vmem:[%s4609 + $0x41] sm:$0xff]
      %v4615 = vld [vmem:[%s4609 + $0x51] sm:$0xff]
      %v4616 = vld [vmem:[%s4609 + $0x61] sm:$0xff]
      %v4617 = vld [vmem:[%s4609 + $0x71] sm:$0xff]
      %s4618 = scalar_lea.vmem %s3, 4
      %v4619 = vld [vmem:[%s4618] sm:$0xf]
      %v4621 = vsel %vm423, %v4610, 0
      %v4624 = vsel %vm423, %v4611, 0
      %v4627 = vsel %vm423, %v4612, 0
      %v4630 = vsel %vm423, %v4613, 0
      %v4633 = vsel %vm423, %v4614, 0
      %v4636 = vsel %vm423, %v4615, 0
      %v4639 = vsel %vm423, %v4616, 0
      %v4642 = vsel %vm423, %v4617, 0
      %v4645 = vsel %vm534, %v4619, 0
      %4647 = vmatpush.msra.mxu0 0.0
      %4648 = vmatpush.msra.mxu0 0.0
      %4649 = vmatpush.msra.mxu0 0.0
      %4650 = vmatpush.msra.mxu0 0.0
      %4651 = vmatpush.msra.mxu0 0.0
      %4652 = vmatpush.msra.mxu0 0.0
      %4653 = vmatpush.msra.mxu0 0.0
      %4654 = vmatpush.msra.mxu0 0.0
      %4655 = vmatpush.msra.mxu0 0.0
      %4656 = vmatpush.msra.mxu0 0.0
      %4657 = vmatpush.msra.mxu0 0.0
      %4658 = vmatpush.msra.mxu0 0.0
      %4659 = vmatpush.msra.mxu0 0.0
      %4660 = vmatpush.msra.mxu0 0.0
      %4661 = vmatpush.msra.mxu0 0.0
      %4662 = vmatpush.msra.mxu0 %v4645
      %4663 = vmatmul.f32.gmra.mxu0 %v4621
      %v4664 = vpop.f32.mrf.mxu0
      %v4665 = vadd.f32 0.0, %v4664
      %4666 = vmatmul.f32.gmra.mxu0 %v4624
      %v4667 = vpop.f32.mrf.mxu0
      %v4668 = vadd.f32 0.0, %v4667
      %4669 = vmatmul.f32.gmra.mxu0 %v4627
      %v4670 = vpop.f32.mrf.mxu0
      %v4671 = vadd.f32 0.0, %v4670
      %4672 = vmatmul.f32.gmra.mxu0 %v4630
      %v4673 = vpop.f32.mrf.mxu0
      %v4674 = vadd.f32 0.0, %v4673
      %4675 = vmatmul.f32.gmra.mxu0 %v4633
      %v4676 = vpop.f32.mrf.mxu0
      %v4677 = vadd.f32 0.0, %v4676
      %4678 = vmatmul.f32.gmra.mxu0 %v4636
      %v4679 = vpop.f32.mrf.mxu0
      %v4680 = vadd.f32 0.0, %v4679
      %4681 = vmatmul.f32.gmra.mxu0 %v4639
      %v4682 = vpop.f32.mrf.mxu0
      %v4683 = vadd.f32 0.0, %v4682
      %4684 = vmatmul.f32.gmra.mxu0 %v4642
      %v4685 = vpop.f32.mrf.mxu0
      %v4686 = vadd.f32 0.0, %v4685
      %4687 = vdwg.mxu0
      %v4688 = vadd.f32 %v4601, %v4665
      %v4689 = vadd.f32 %v4602, %v4668
      %v4690 = vadd.f32 %v4603, %v4671
      %v4691 = vadd.f32 %v4604, %v4674
      %v4692 = vadd.f32 %v4605, %v4677
      %v4693 = vadd.f32 %v4606, %v4680
      %v4694 = vadd.f32 %v4607, %v4683
      %v4695 = vadd.f32 %v4608, %v4686
      %v4696 = vld [vmem:[%s4523 + $0x1] sm:$0xff]
      %v4697 = vld [vmem:[%s4523 + $0x11] sm:$0xff]
      %v4698 = vld [vmem:[%s4523 + $0x21] sm:$0xff]
      %v4699 = vld [vmem:[%s4523 + $0x31] sm:$0xff]
      %v4700 = vld [vmem:[%s4523 + $0x41] sm:$0xff]
      %v4701 = vld [vmem:[%s4523 + $0x51] sm:$0xff]
      %v4702 = vld [vmem:[%s4523 + $0x61] sm:$0xff]
      %v4703 = vld [vmem:[%s4523 + $0x71] sm:$0xff]
      %s4704 = scalar_lea.vmem %s3, 8
      %v4705 = vld [vmem:[%s4704] sm:$0xf]
      %v4707 = vsel %vm423, %v4696, 0
      %v4710 = vsel %vm423, %v4697, 0
      %v4713 = vsel %vm423, %v4698, 0
      %v4716 = vsel %vm423, %v4699, 0
      %v4719 = vsel %vm423, %v4700, 0
      %v4722 = vsel %vm423, %v4701, 0
      %v4725 = vsel %vm423, %v4702, 0
      %v4728 = vsel %vm423, %v4703, 0
      %v4731 = vsel %vm534, %v4705, 0
      %4733 = vmatpush.msra.mxu0 0.0
      %4734 = vmatpush.msra.mxu0 0.0
      %4735 = vmatpush.msra.mxu0 0.0
      %4736 = vmatpush.msra.mxu0 0.0
      %4737 = vmatpush.msra.mxu0 0.0
      %4738 = vmatpush.msra.mxu0 0.0
      %4739 = vmatpush.msra.mxu0 0.0
      %4740 = vmatpush.msra.mxu0 0.0
      %4741 = vmatpush.msra.mxu0 0.0
      %4742 = vmatpush.msra.mxu0 0.0
      %4743 = vmatpush.msra.mxu0 0.0
      %4744 = vmatpush.msra.mxu0 0.0
      %4745 = vmatpush.msra.mxu0 0.0
      %4746 = vmatpush.msra.mxu0 0.0
      %4747 = vmatpush.msra.mxu0 0.0
      %4748 = vmatpush.msra.mxu0 %v4731
      %4749 = vmatmul.f32.gmra.mxu0 %v4707
      %v4750 = vpop.f32.mrf.mxu0
      %v4751 = vadd.f32 0.0, %v4750
      %4752 = vmatmul.f32.gmra.mxu0 %v4710
      %v4753 = vpop.f32.mrf.mxu0
      %v4754 = vadd.f32 0.0, %v4753
      %4755 = vmatmul.f32.gmra.mxu0 %v4713
      %v4756 = vpop.f32.mrf.mxu0
      %v4757 = vadd.f32 0.0, %v4756
      %4758 = vmatmul.f32.gmra.mxu0 %v4716
      %v4759 = vpop.f32.mrf.mxu0
      %v4760 = vadd.f32 0.0, %v4759
      %4761 = vmatmul.f32.gmra.mxu0 %v4719
      %v4762 = vpop.f32.mrf.mxu0
      %v4763 = vadd.f32 0.0, %v4762
      %4764 = vmatmul.f32.gmra.mxu0 %v4722
      %v4765 = vpop.f32.mrf.mxu0
      %v4766 = vadd.f32 0.0, %v4765
      %4767 = vmatmul.f32.gmra.mxu0 %v4725
      %v4768 = vpop.f32.mrf.mxu0
      %v4769 = vadd.f32 0.0, %v4768
      %4770 = vmatmul.f32.gmra.mxu0 %v4728
      %v4771 = vpop.f32.mrf.mxu0
      %v4772 = vadd.f32 0.0, %v4771
      %4773 = vdwg.mxu0
      %v4774 = vadd.f32 %v4688, %v4751
      %v4775 = vadd.f32 %v4689, %v4754
      %v4776 = vadd.f32 %v4690, %v4757
      %v4777 = vadd.f32 %v4691, %v4760
      %v4778 = vadd.f32 %v4692, %v4763
      %v4779 = vadd.f32 %v4693, %v4766
      %v4780 = vadd.f32 %v4694, %v4769
      %v4781 = vadd.f32 %v4695, %v4772
      %v4782 = vld [vmem:[%s2928] sm:$0xff]
      %v4783 = vld [vmem:[%s2928 + $0x10] sm:$0xff]
      %v4784 = vld [vmem:[%s2928 + $0x20] sm:$0xff]
      %v4785 = vld [vmem:[%s2928 + $0x30] sm:$0xff]
      %v4786 = vld [vmem:[%s2928 + $0x40] sm:$0xff]
      %v4787 = vld [vmem:[%s2928 + $0x50] sm:$0xff]
      %v4788 = vld [vmem:[%s2928 + $0x60] sm:$0xff]
      %v4789 = vld [vmem:[%s2928 + $0x70] sm:$0xff]
      %s4790 = scalar_lea.vmem %s3, 12
      %v4791 = vld [vmem:[%s4790] sm:$0xf]
      %v4793 = vsel %vm423, %v4782, 0
      %v4796 = vsel %vm423, %v4783, 0
      %v4799 = vsel %vm423, %v4784, 0
      %v4802 = vsel %vm423, %v4785, 0
      %v4805 = vsel %vm423, %v4786, 0
      %v4808 = vsel %vm423, %v4787, 0
      %v4811 = vsel %vm423, %v4788, 0
      %v4814 = vsel %vm423, %v4789, 0
      %v4817 = vsel %vm534, %v4791, 0
      %4819 = vmatpush.msra.mxu0 0.0
      %4820 = vmatpush.msra.mxu0 0.0
      %4821 = vmatpush.msra.mxu0 0.0
      %4822 = vmatpush.msra.mxu0 0.0
      %4823 = vmatpush.msra.mxu0 0.0
      %4824 = vmatpush.msra.mxu0 0.0
      %4825 = vmatpush.msra.mxu0 0.0
      %4826 = vmatpush.msra.mxu0 0.0
      %4827 = vmatpush.msra.mxu0 0.0
      %4828 = vmatpush.msra.mxu0 0.0
      %4829 = vmatpush.msra.mxu0 0.0
      %4830 = vmatpush.msra.mxu0 0.0
      %4831 = vmatpush.msra.mxu0 0.0
      %4832 = vmatpush.msra.mxu0 0.0
      %4833 = vmatpush.msra.mxu0 0.0
      %4834 = vmatpush.msra.mxu0 %v4817
      %4835 = vmatmul.f32.gmra.mxu0 %v4793
      %v4836 = vpop.f32.mrf.mxu0
      %v4837 = vadd.f32 0.0, %v4836
      %4838 = vmatmul.f32.gmra.mxu0 %v4796
      %v4839 = vpop.f32.mrf.mxu0
      %v4840 = vadd.f32 0.0, %v4839
      %4841 = vmatmul.f32.gmra.mxu0 %v4799
      %v4842 = vpop.f32.mrf.mxu0
      %v4843 = vadd.f32 0.0, %v4842
      %4844 = vmatmul.f32.gmra.mxu0 %v4802
      %v4845 = vpop.f32.mrf.mxu0
      %v4846 = vadd.f32 0.0, %v4845
      %4847 = vmatmul.f32.gmra.mxu0 %v4805
      %v4848 = vpop.f32.mrf.mxu0
      %v4849 = vadd.f32 0.0, %v4848
      %4850 = vmatmul.f32.gmra.mxu0 %v4808
      %v4851 = vpop.f32.mrf.mxu0
      %v4852 = vadd.f32 0.0, %v4851
      %4853 = vmatmul.f32.gmra.mxu0 %v4811
      %v4854 = vpop.f32.mrf.mxu0
      %v4855 = vadd.f32 0.0, %v4854
      %4856 = vmatmul.f32.gmra.mxu0 %v4814
      %v4857 = vpop.f32.mrf.mxu0
      %v4858 = vadd.f32 0.0, %v4857
      %4859 = vdwg.mxu0
      %v4860 = vadd.f32 %v4774, %v4837
      %v4861 = vadd.f32 %v4775, %v4840
      %v4862 = vadd.f32 %v4776, %v4843
      %v4863 = vadd.f32 %v4777, %v4846
      %v4864 = vadd.f32 %v4778, %v4849
      %v4865 = vadd.f32 %v4779, %v4852
      %v4866 = vadd.f32 %v4780, %v4855
      %v4867 = vadd.f32 %v4781, %v4858
      %v4868 = vld [vmem:[%s2142 + $0x1] sm:$0xff]
      %v4869 = vld [vmem:[%s2142 + $0x11] sm:$0xff]
      %v4870 = vld [vmem:[%s2142 + $0x21] sm:$0xff]
      %v4871 = vld [vmem:[%s2142 + $0x31] sm:$0xff]
      %v4872 = vld [vmem:[%s2142 + $0x41] sm:$0xff]
      %v4873 = vld [vmem:[%s2142 + $0x51] sm:$0xff]
      %v4874 = vld [vmem:[%s2142 + $0x61] sm:$0xff]
      %v4875 = vld [vmem:[%s2142 + $0x71] sm:$0xff]
      %s4876 = scalar_lea.vmem %s3, 16
      %v4877 = vld [vmem:[%s4876] sm:$0xf]
      %v4879 = vsel %vm423, %v4868, 0
      %v4882 = vsel %vm423, %v4869, 0
      %v4885 = vsel %vm423, %v4870, 0
      %v4888 = vsel %vm423, %v4871, 0
      %v4891 = vsel %vm423, %v4872, 0
      %v4894 = vsel %vm423, %v4873, 0
      %v4897 = vsel %vm423, %v4874, 0
      %v4900 = vsel %vm423, %v4875, 0
      %v4903 = vsel %vm534, %v4877, 0
      %4905 = vmatpush.msra.mxu0 0.0
      %4906 = vmatpush.msra.mxu0 0.0
      %4907 = vmatpush.msra.mxu0 0.0
      %4908 = vmatpush.msra.mxu0 0.0
      %4909 = vmatpush.msra.mxu0 0.0
      %4910 = vmatpush.msra.mxu0 0.0
      %4911 = vmatpush.msra.mxu0 0.0
      %4912 = vmatpush.msra.mxu0 0.0
      %4913 = vmatpush.msra.mxu0 0.0
      %4914 = vmatpush.msra.mxu0 0.0
      %4915 = vmatpush.msra.mxu0 0.0
      %4916 = vmatpush.msra.mxu0 0.0
      %4917 = vmatpush.msra.mxu0 0.0
      %4918 = vmatpush.msra.mxu0 0.0
      %4919 = vmatpush.msra.mxu0 0.0
      %4920 = vmatpush.msra.mxu0 %v4903
      %4921 = vmatmul.f32.gmra.mxu0 %v4879
      %v4922 = vpop.f32.mrf.mxu0
      %v4923 = vadd.f32 0.0, %v4922
      %4924 = vmatmul.f32.gmra.mxu0 %v4882
      %v4925 = vpop.f32.mrf.mxu0
      %v4926 = vadd.f32 0.0, %v4925
      %4927 = vmatmul.f32.gmra.mxu0 %v4885
      %v4928 = vpop.f32.mrf.mxu0
      %v4929 = vadd.f32 0.0, %v4928
      %4930 = vmatmul.f32.gmra.mxu0 %v4888
      %v4931 = vpop.f32.mrf.mxu0
      %v4932 = vadd.f32 0.0, %v4931
      %4933 = vmatmul.f32.gmra.mxu0 %v4891
      %v4934 = vpop.f32.mrf.mxu0
      %v4935 = vadd.f32 0.0, %v4934
      %4936 = vmatmul.f32.gmra.mxu0 %v4894
      %v4937 = vpop.f32.mrf.mxu0
      %v4938 = vadd.f32 0.0, %v4937
      %4939 = vmatmul.f32.gmra.mxu0 %v4897
      %v4940 = vpop.f32.mrf.mxu0
      %v4941 = vadd.f32 0.0, %v4940
      %4942 = vmatmul.f32.gmra.mxu0 %v4900
      %v4943 = vpop.f32.mrf.mxu0
      %v4944 = vadd.f32 0.0, %v4943
      %4945 = vdwg.mxu0
      %v4946 = vadd.f32 %v4860, %v4923
      %v4947 = vadd.f32 %v4861, %v4926
      %v4948 = vadd.f32 %v4862, %v4929
      %v4949 = vadd.f32 %v4863, %v4932
      %v4950 = vadd.f32 %v4864, %v4935
      %v4951 = vadd.f32 %v4865, %v4938
      %v4952 = vadd.f32 %v4866, %v4941
      %v4953 = vadd.f32 %v4867, %v4944
      %v4954 = vld [vmem:[%s2928 + $0x1] sm:$0xff]
      %v4955 = vld [vmem:[%s2928 + $0x11] sm:$0xff]
      %v4956 = vld [vmem:[%s2928 + $0x21] sm:$0xff]
      %v4957 = vld [vmem:[%s2928 + $0x31] sm:$0xff]
      %v4958 = vld [vmem:[%s2928 + $0x41] sm:$0xff]
      %v4959 = vld [vmem:[%s2928 + $0x51] sm:$0xff]
      %v4960 = vld [vmem:[%s2928 + $0x61] sm:$0xff]
      %v4961 = vld [vmem:[%s2928 + $0x71] sm:$0xff]
      %s4962 = scalar_lea.vmem %s3, 20
      %v4963 = vld [vmem:[%s4962] sm:$0xf]
      %v4965 = vsel %vm423, %v4954, 0
      %v4968 = vsel %vm423, %v4955, 0
      %v4971 = vsel %vm423, %v4956, 0
      %v4974 = vsel %vm423, %v4957, 0
      %v4977 = vsel %vm423, %v4958, 0
      %v4980 = vsel %vm423, %v4959, 0
      %v4983 = vsel %vm423, %v4960, 0
      %v4986 = vsel %vm423, %v4961, 0
      %v4989 = vsel %vm534, %v4963, 0
      %4991 = vmatpush.msra.mxu0 0.0
      %4992 = vmatpush.msra.mxu0 0.0
      %4993 = vmatpush.msra.mxu0 0.0
      %4994 = vmatpush.msra.mxu0 0.0
      %4995 = vmatpush.msra.mxu0 0.0
      %4996 = vmatpush.msra.mxu0 0.0
      %4997 = vmatpush.msra.mxu0 0.0
      %4998 = vmatpush.msra.mxu0 0.0
      %4999 = vmatpush.msra.mxu0 0.0
      %5000 = vmatpush.msra.mxu0 0.0
      %5001 = vmatpush.msra.mxu0 0.0
      %5002 = vmatpush.msra.mxu0 0.0
      %5003 = vmatpush.msra.mxu0 0.0
      %5004 = vmatpush.msra.mxu0 0.0
      %5005 = vmatpush.msra.mxu0 0.0
      %5006 = vmatpush.msra.mxu0 %v4989
      %5007 = vmatmul.f32.gmra.mxu0 %v4965
      %v5008 = vpop.f32.mrf.mxu0
      %v5009 = vadd.f32 0.0, %v5008
      %5010 = vmatmul.f32.gmra.mxu0 %v4968
      %v5011 = vpop.f32.mrf.mxu0
      %v5012 = vadd.f32 0.0, %v5011
      %5013 = vmatmul.f32.gmra.mxu0 %v4971
      %v5014 = vpop.f32.mrf.mxu0
      %v5015 = vadd.f32 0.0, %v5014
      %5016 = vmatmul.f32.gmra.mxu0 %v4974
      %v5017 = vpop.f32.mrf.mxu0
      %v5018 = vadd.f32 0.0, %v5017
      %5019 = vmatmul.f32.gmra.mxu0 %v4977
      %v5020 = vpop.f32.mrf.mxu0
      %v5021 = vadd.f32 0.0, %v5020
      %5022 = vmatmul.f32.gmra.mxu0 %v4980
      %v5023 = vpop.f32.mrf.mxu0
      %v5024 = vadd.f32 0.0, %v5023
      %5025 = vmatmul.f32.gmra.mxu0 %v4983
      %v5026 = vpop.f32.mrf.mxu0
      %v5027 = vadd.f32 0.0, %v5026
      %5028 = vmatmul.f32.gmra.mxu0 %v4986
      %v5029 = vpop.f32.mrf.mxu0
      %v5030 = vadd.f32 0.0, %v5029
      %5031 = vdwg.mxu0
      %v5032 = vadd.f32 %v4946, %v5009
      %v5033 = vadd.f32 %v4947, %v5012
      %v5034 = vadd.f32 %v4948, %v5015
      %v5035 = vadd.f32 %v4949, %v5018
      %v5036 = vadd.f32 %v4950, %v5021
      %v5037 = vadd.f32 %v4951, %v5024
      %v5038 = vadd.f32 %v4952, %v5027
      %v5039 = vadd.f32 %v4953, %v5030
      %v5040 = vld [vmem:[%s4502] sm:$0xff]
      %v5041 = vld [vmem:[%s4502 + $0x10] sm:$0xff]
      %v5042 = vld [vmem:[%s4502 + $0x20] sm:$0xff]
      %v5043 = vld [vmem:[%s4502 + $0x30] sm:$0xff]
      %v5044 = vld [vmem:[%s4502 + $0x40] sm:$0xff]
      %v5045 = vld [vmem:[%s4502 + $0x50] sm:$0xff]
      %v5046 = vld [vmem:[%s4502 + $0x60] sm:$0xff]
      %v5047 = vld [vmem:[%s4502 + $0x70] sm:$0xff]
      %s5048 = scalar_lea.vmem %s3, 24
      %v5049 = vld [vmem:[%s5048] sm:$0xf]
      %v5051 = vsel %vm423, %v5040, 0
      %v5054 = vsel %vm423, %v5041, 0
      %v5057 = vsel %vm423, %v5042, 0
      %v5060 = vsel %vm423, %v5043, 0
      %v5063 = vsel %vm423, %v5044, 0
      %v5066 = vsel %vm423, %v5045, 0
      %v5069 = vsel %vm423, %v5046, 0
      %v5072 = vsel %vm423, %v5047, 0
      %v5075 = vsel %vm534, %v5049, 0
      %5077 = vmatpush.msra.mxu0 0.0
      %5078 = vmatpush.msra.mxu0 0.0
      %5079 = vmatpush.msra.mxu0 0.0
      %5080 = vmatpush.msra.mxu0 0.0
      %5081 = vmatpush.msra.mxu0 0.0
      %5082 = vmatpush.msra.mxu0 0.0
      %5083 = vmatpush.msra.mxu0 0.0
      %5084 = vmatpush.msra.mxu0 0.0
      %5085 = vmatpush.msra.mxu0 0.0
      %5086 = vmatpush.msra.mxu0 0.0
      %5087 = vmatpush.msra.mxu0 0.0
      %5088 = vmatpush.msra.mxu0 0.0
      %5089 = vmatpush.msra.mxu0 0.0
      %5090 = vmatpush.msra.mxu0 0.0
      %5091 = vmatpush.msra.mxu0 0.0
      %5092 = vmatpush.msra.mxu0 %v5075
      %5093 = vmatmul.f32.gmra.mxu0 %v5051
      %v5094 = vpop.f32.mrf.mxu0
      %v5095 = vadd.f32 0.0, %v5094
      %5096 = vmatmul.f32.gmra.mxu0 %v5054
      %v5097 = vpop.f32.mrf.mxu0
      %v5098 = vadd.f32 0.0, %v5097
      %5099 = vmatmul.f32.gmra.mxu0 %v5057
      %v5100 = vpop.f32.mrf.mxu0
      %v5101 = vadd.f32 0.0, %v5100
      %5102 = vmatmul.f32.gmra.mxu0 %v5060
      %v5103 = vpop.f32.mrf.mxu0
      %v5104 = vadd.f32 0.0, %v5103
      %5105 = vmatmul.f32.gmra.mxu0 %v5063
      %v5106 = vpop.f32.mrf.mxu0
      %v5107 = vadd.f32 0.0, %v5106
      %5108 = vmatmul.f32.gmra.mxu0 %v5066
      %v5109 = vpop.f32.mrf.mxu0
      %v5110 = vadd.f32 0.0, %v5109
      %5111 = vmatmul.f32.gmra.mxu0 %v5069
      %v5112 = vpop.f32.mrf.mxu0
      %v5113 = vadd.f32 0.0, %v5112
      %5114 = vmatmul.f32.gmra.mxu0 %v5072
      %v5115 = vpop.f32.mrf.mxu0
      %v5116 = vadd.f32 0.0, %v5115
      %5117 = vdwg.mxu0
      %v5118 = vadd.f32 %v5032, %v5095
      %v5119 = vadd.f32 %v5033, %v5098
      %v5120 = vadd.f32 %v5034, %v5101
      %v5121 = vadd.f32 %v5035, %v5104
      %v5122 = vadd.f32 %v5036, %v5107
      %v5123 = vadd.f32 %v5037, %v5110
      %v5124 = vadd.f32 %v5038, %v5113
      %v5125 = vadd.f32 %v5039, %v5116
      %v5126 = vld [vmem:[%s3716 + $0x1] sm:$0xff]
      %v5127 = vld [vmem:[%s3716 + $0x11] sm:$0xff]
      %v5128 = vld [vmem:[%s3716 + $0x21] sm:$0xff]
      %v5129 = vld [vmem:[%s3716 + $0x31] sm:$0xff]
      %v5130 = vld [vmem:[%s3716 + $0x41] sm:$0xff]
      %v5131 = vld [vmem:[%s3716 + $0x51] sm:$0xff]
      %v5132 = vld [vmem:[%s3716 + $0x61] sm:$0xff]
      %v5133 = vld [vmem:[%s3716 + $0x71] sm:$0xff]
      %s5134 = scalar_lea.vmem %s3, 28
      %v5135 = vld [vmem:[%s5134] sm:$0xf]
      %v5137 = vsel %vm423, %v5126, 0
      %v5140 = vsel %vm423, %v5127, 0
      %v5143 = vsel %vm423, %v5128, 0
      %v5146 = vsel %vm423, %v5129, 0
      %v5149 = vsel %vm423, %v5130, 0
      %v5152 = vsel %vm423, %v5131, 0
      %v5155 = vsel %vm423, %v5132, 0
      %v5158 = vsel %vm423, %v5133, 0
      %v5161 = vsel %vm534, %v5135, 0
      %5163 = vmatpush.msra.mxu0 0.0
      %5164 = vmatpush.msra.mxu0 0.0
      %5165 = vmatpush.msra.mxu0 0.0
      %5166 = vmatpush.msra.mxu0 0.0
      %5167 = vmatpush.msra.mxu0 0.0
      %5168 = vmatpush.msra.mxu0 0.0
      %5169 = vmatpush.msra.mxu0 0.0
      %5170 = vmatpush.msra.mxu0 0.0
      %5171 = vmatpush.msra.mxu0 0.0
      %5172 = vmatpush.msra.mxu0 0.0
      %5173 = vmatpush.msra.mxu0 0.0
      %5174 = vmatpush.msra.mxu0 0.0
      %5175 = vmatpush.msra.mxu0 0.0
      %5176 = vmatpush.msra.mxu0 0.0
      %5177 = vmatpush.msra.mxu0 0.0
      %5178 = vmatpush.msra.mxu0 %v5161
      %5179 = vmatmul.f32.gmra.mxu0 %v5137
      %v5180 = vpop.f32.mrf.mxu0
      %v5181 = vadd.f32 0.0, %v5180
      %5182 = vmatmul.f32.gmra.mxu0 %v5140
      %v5183 = vpop.f32.mrf.mxu0
      %v5184 = vadd.f32 0.0, %v5183
      %5185 = vmatmul.f32.gmra.mxu0 %v5143
      %v5186 = vpop.f32.mrf.mxu0
      %v5187 = vadd.f32 0.0, %v5186
      %5188 = vmatmul.f32.gmra.mxu0 %v5146
      %v5189 = vpop.f32.mrf.mxu0
      %v5190 = vadd.f32 0.0, %v5189
      %5191 = vmatmul.f32.gmra.mxu0 %v5149
      %v5192 = vpop.f32.mrf.mxu0
      %v5193 = vadd.f32 0.0, %v5192
      %5194 = vmatmul.f32.gmra.mxu0 %v5152
      %v5195 = vpop.f32.mrf.mxu0
      %v5196 = vadd.f32 0.0, %v5195
      %5197 = vmatmul.f32.gmra.mxu0 %v5155
      %v5198 = vpop.f32.mrf.mxu0
      %v5199 = vadd.f32 0.0, %v5198
      %5200 = vmatmul.f32.gmra.mxu0 %v5158
      %v5201 = vpop.f32.mrf.mxu0
      %v5202 = vadd.f32 0.0, %v5201
      %5203 = vdwg.mxu0
      %v5204 = vadd.f32 %v5118, %v5181
      %v5205 = vadd.f32 %v5119, %v5184
      %v5206 = vadd.f32 %v5120, %v5187
      %v5207 = vadd.f32 %v5121, %v5190
      %v5208 = vadd.f32 %v5122, %v5193
      %v5209 = vadd.f32 %v5123, %v5196
      %v5210 = vadd.f32 %v5124, %v5199
      %v5211 = vadd.f32 %v5125, %v5202
      %v5212 = vld [vmem:[%s4502 + $0x1] sm:$0xff]
      %v5213 = vld [vmem:[%s4502 + $0x11] sm:$0xff]
      %v5214 = vld [vmem:[%s4502 + $0x21] sm:$0xff]
      %v5215 = vld [vmem:[%s4502 + $0x31] sm:$0xff]
      %v5216 = vld [vmem:[%s4502 + $0x41] sm:$0xff]
      %v5217 = vld [vmem:[%s4502 + $0x51] sm:$0xff]
      %v5218 = vld [vmem:[%s4502 + $0x61] sm:$0xff]
      %v5219 = vld [vmem:[%s4502 + $0x71] sm:$0xff]
      %s5220 = scalar_lea.vmem %s3, 32
      %v5221 = vld [vmem:[%s5220] sm:$0xf]
      %v5223 = vsel %vm423, %v5212, 0
      %v5226 = vsel %vm423, %v5213, 0
      %v5229 = vsel %vm423, %v5214, 0
      %v5232 = vsel %vm423, %v5215, 0
      %v5235 = vsel %vm423, %v5216, 0
      %v5238 = vsel %vm423, %v5217, 0
      %v5241 = vsel %vm423, %v5218, 0
      %v5244 = vsel %vm423, %v5219, 0
      %v5247 = vsel %vm534, %v5221, 0
      %5249 = vmatpush.msra.mxu0 0.0
      %5250 = vmatpush.msra.mxu0 0.0
      %5251 = vmatpush.msra.mxu0 0.0
      %5252 = vmatpush.msra.mxu0 0.0
      %5253 = vmatpush.msra.mxu0 0.0
      %5254 = vmatpush.msra.mxu0 0.0
      %5255 = vmatpush.msra.mxu0 0.0
      %5256 = vmatpush.msra.mxu0 0.0
      %5257 = vmatpush.msra.mxu0 0.0
      %5258 = vmatpush.msra.mxu0 0.0
      %5259 = vmatpush.msra.mxu0 0.0
      %5260 = vmatpush.msra.mxu0 0.0
      %5261 = vmatpush.msra.mxu0 0.0
      %5262 = vmatpush.msra.mxu0 0.0
      %5263 = vmatpush.msra.mxu0 0.0
      %5264 = vmatpush.msra.mxu0 %v5247
      %5265 = vmatmul.f32.gmra.mxu0 %v5223
      %v5266 = vpop.f32.mrf.mxu0
      %v5267 = vadd.f32 0.0, %v5266
      %5268 = vmatmul.f32.gmra.mxu0 %v5226
      %v5269 = vpop.f32.mrf.mxu0
      %v5270 = vadd.f32 0.0, %v5269
      %5271 = vmatmul.f32.gmra.mxu0 %v5229
      %v5272 = vpop.f32.mrf.mxu0
      %v5273 = vadd.f32 0.0, %v5272
      %5274 = vmatmul.f32.gmra.mxu0 %v5232
      %v5275 = vpop.f32.mrf.mxu0
      %v5276 = vadd.f32 0.0, %v5275
      %5277 = vmatmul.f32.gmra.mxu0 %v5235
      %v5278 = vpop.f32.mrf.mxu0
      %v5279 = vadd.f32 0.0, %v5278
      %5280 = vmatmul.f32.gmra.mxu0 %v5238
      %v5281 = vpop.f32.mrf.mxu0
      %v5282 = vadd.f32 0.0, %v5281
      %5283 = vmatmul.f32.gmra.mxu0 %v5241
      %v5284 = vpop.f32.mrf.mxu0
      %v5285 = vadd.f32 0.0, %v5284
      %5286 = vmatmul.f32.gmra.mxu0 %v5244
      %v5287 = vpop.f32.mrf.mxu0
      %v5288 = vadd.f32 0.0, %v5287
      %5289 = vdwg.mxu0
      %v5290 = vadd.f32 %v5204, %v5267
      %v5291 = vadd.f32 %v5205, %v5270
      %v5292 = vadd.f32 %v5206, %v5273
      %v5293 = vadd.f32 %v5207, %v5276
      %v5294 = vadd.f32 %v5208, %v5279
      %v5295 = vadd.f32 %v5209, %v5282
      %v5296 = vadd.f32 %v5210, %v5285
      %v5297 = vadd.f32 %v5211, %v5288
      %vm5298 = vcmask 64512
      %5299 = vst.msk [vmem:[%s278] sm:$0xff] %vm5298, %v5290
      %5300 = vst.msk [vmem:[%s278 + $0x8] sm:$0xff] %vm5298, %v5291
      %5301 = vst.msk [vmem:[%s278 + $0x10] sm:$0xff] %vm5298, %v5292
      %5302 = vst.msk [vmem:[%s278 + $0x18] sm:$0xff] %vm5298, %v5293
      %5303 = vst.msk [vmem:[%s278 + $0x20] sm:$0xff] %vm5298, %v5294
      %5304 = vst.msk [vmem:[%s278 + $0x28] sm:$0xff] %vm5298, %v5295
      %5305 = vst.msk [vmem:[%s278 + $0x30] sm:$0xff] %vm5298, %v5296
      %5306 = vst.msk [vmem:[%s278 + $0x38] sm:$0xff] %vm5298, %v5297
      %p5307 = scmp.lt.s32.totalorder %s18, 1
      %s5308 = scalar_select %p5307, %s18, 1
      %s5309 = smul.addr %s5308, 8
      %s5310 = smul.addr %s5309, 8
      %s5311 = scalar_lea.vmem %s7, %s5310
      // Predicated region
      $region49: #{down_conv_block_forward.1} parent=47 // pred_check
        %p5312 = pneg %p188
      $region50: #{down_conv_block_forward.1} parent=47 // pred_check_branch
        %5314 = sbr.rel (%p5312) target = $region52
      $region51: #{down_conv_block_forward.1} parent=47 // pred_region
        _
      $region52: #{down_conv_block_forward.1} parent=47 // pred_fallthru
        _
    $region48: #{down_conv_block_forward.1} parent=5 // pred_fallthru
      _
    %p5315 = scmp.le.s32.totalorder 2, %s13
    // Predicated region
    $region53: #{down_conv_block_forward.1} parent=5 // pred_check
      %p5316 = pneg %p5315
    $region54: #{down_conv_block_forward.1} parent=5 // pred_check_branch
      %5318 = sbr.rel (%p5316) target = $region56
    $region55: #{down_conv_block_forward.1} parent=5 // pred_region
      %s5319 = ssub.s32 %s13, 2
      // Predicated region
      $region57: #{down_conv_block_forward.1} parent=55 // pred_check
        %p5320 = pneg %p194
      $region58: #{down_conv_block_forward.1} parent=55 // pred_check_branch
        %5322 = sbr.rel (%p5320) target = $region60
      $region59: #{down_conv_block_forward.1} parent=55 // pred_region
        %p5323 = scmp.lt.s32.totalorder %s19, 1
        %s5324 = scalar_select %p5323, %s19, 1
        %s5325 = smul.addr %s5324, 8
        %s5326 = smul.addr %s5325, 8
        %s5327 = scalar_lea.vmem %s7, %s5326
      $region60: #{down_conv_block_forward.1} parent=55 // pred_fallthru
        _
    $region56: #{down_conv_block_forward.1} parent=5 // pred_fallthru
      _
  $region6: #{down_conv_block_forward.1} parent=0 // loop_footer
    %s17 = sadd.s32 1, %s13
  $region7: #{down_conv_block_forward.1} parent=0 // loop_footer_branch
    %12 = sbr.rel target = $region3
  $region8: #{down_conv_block_forward.1} parent=0 // loop_exit
    _

</llo_original>
